<compile_context>
chip_gen: v7x
topology: tpu7x:2x2x1
jax: 0.10.0
libtpu: 0.0.40
codegen_flags: <defaults>
</compile_context>

<pallas_src>
import functools

import jax
import jax.numpy as jnp
from jax import lax
from jax.experimental import pallas as pl
from jax.experimental.pallas import tpu as pltpu


# --------------------------------- config ----------------------------------

CFG = dict(
    tubelet_size=(5, 4, 8, 8),   # hardcoded in the module
    embed_dim=128,
    depth=2,
    num_heads=4,
    mlp_ratio=4.0,
    patch_size=8,
    in_chans=3,                  # encoder_pred out = 8*8*3 = 192
    final_in=192,                # final_inverse_projection: 192 -> 16*8*8
    final_out=16 * 8 * 8,
    num_patches=16,              # scaled-down analog of 256
    seq_pad=24,                  # P + 1 = 17 padded up to a multiple of 8
    ln_eps=1e-5,
)


# --------------------------- in-kernel helpers ------------------------------

def _layernorm(x, g, b, eps):
    """Row-wise LayerNorm on f32 values."""
    mean = jnp.mean(x, axis=-1, keepdims=True)
    xc = x - mean
    var = jnp.mean(xc * xc, axis=-1, keepdims=True)
    return xc * lax.rsqrt(var + eps) * g + b


def _gelu_tanh(y):
    # TODO(synk): PyTorch nn.GELU default is erf-exact; tanh approximation is
    # used because exact-erf lowering in Mosaic is not guaranteed (~1e-3 diff).
    c = jnp.float32(0.7978845608028654)  # sqrt(2/pi)
    return 0.5 * y * (1.0 + jnp.tanh(c * (y + 0.044715 * y * y * y)))


# ----------------------------- fused MAE kernel ------------------------------

def _mae_kernel(xp_ref, tw_ref, tb_ref, posp_ref, clsp_ref,
                ln1g_ref, ln1b_ref, qkvw_ref, qkvb_ref,
                projw_ref, projb_ref, ln2g_ref, ln2b_ref,
                fc1w_ref, fc1b_ref, fc2w_ref, fc2b_ref,
                ng_ref, nb_ref, pw_ref, pb_ref, fw_ref, fb_ref,
                o_ref, act_ref,
                *, num_heads, head_dim, scale, num_patches, seq_pad, eps):
    """Whole forward; activation carried in VMEM scratch across depth."""
    blk = pl.program_id(1)
    D = num_heads * head_dim
    P = num_patches
    valid_s = P + 1                                 # patches + cls (cls at row P)

    # ---- embedding: only on the first depth step ----------------------------
    @pl.when(blk == 0)
    def _():
        xp = xp_ref[0]                              # (P, tub_dim) f32
        tok = jnp.dot(xp.astype(jnp.bfloat16), tw_ref[...],
                      preferred_element_type=jnp.float32)
        tok = tok + tb_ref[...] + posp_ref[...]     # (P, D)
        cls = clsp_ref[...]                         # (1, D) = cls_token + pos[0]
        pad = jnp.zeros((seq_pad - P - 1, D), jnp.float32)
        # token layout: [patches, cls, pad] -> head slice [:P] is aligned
        act_ref[...] = jnp.concatenate([tok, cls, pad], axis=0)

    x = act_ref[...]                                # (S_pad, D) f32

    # ---- attention sub-block -------------------------------------------------
    y = _layernorm(x, ln1g_ref[0], ln1b_ref[0], eps)
    qkv = jnp.dot(y.astype(jnp.bfloat16), qkvw_ref[0],
                  preferred_element_type=jnp.float32) + qkvb_ref[0]   # (S, 3D)

    s_pad = x.shape[0]
    col = lax.broadcasted_iota(jnp.int32, (s_pad, s_pad), 1)
    neg_bias = jnp.where(col < valid_s, 0.0, -1e30).astype(jnp.float32)

    heads = []
    for h in range(num_heads):                      # static unroll, nh=4
        lo = h * head_dim
        hi = lo + head_dim
        qh = qkv[:, lo:hi]
        kh = qkv[:, D + lo:D + hi]
        vh = qkv[:, 2 * D + lo:2 * D + hi]
        s = lax.dot_general(qh, kh, (((1,), (1,)), ((), ())),
                            preferred_element_type=jnp.float32) * scale
        s = s + neg_bias                            # mask padded keys
        s = s - jnp.max(s, axis=-1, keepdims=True)
        p = jnp.exp(s)
        p = p * pl.reciprocal(jnp.sum(p, axis=-1, keepdims=True), approx=True)
        heads.append(jnp.dot(p.astype(jnp.bfloat16), vh.astype(jnp.bfloat16),
                             preferred_element_type=jnp.float32))
    attn = jnp.concatenate(heads, axis=-1)          # (S, D) lane-dense

    x = x + jnp.dot(attn.astype(jnp.bfloat16), projw_ref[0],
                    preferred_element_type=jnp.float32) + projb_ref[0]

    # ---- MLP sub-block --------------------------------------------------------
    y = _layernorm(x, ln2g_ref[0], ln2b_ref[0], eps)
    h1 = jnp.dot(y.astype(jnp.bfloat16), fc1w_ref[0],
                 preferred_element_type=jnp.float32) + fc1b_ref[0]
    h1 = _gelu_tanh(h1)
    x = x + jnp.dot(h1.astype(jnp.bfloat16), fc2w_ref[0],
                    preferred_element_type=jnp.float32) + fc2b_ref[0]

    act_ref[...] = x

    # ---- prediction head: only on the last depth step --------------------------
    @pl.when(blk == pl.num_programs(1) - 1)
    def _():
        xv = x[:P, :]                               # drop cls + pad (aligned)
        yv = _layernorm(xv, ng_ref[...], nb_ref[...], eps)
        pred = jnp.dot(yv.astype(jnp.bfloat16), pw_ref[...],
                       preferred_element_type=jnp.float32) + pb_ref[...]
        out = jnp.dot(pred.astype(jnp.bfloat16), fw_ref[...],
                      preferred_element_type=jnp.float32) + fb_ref[...]
        o_ref[0] = out                              # (P, 1024) lane-dense


def pallas_mae(xp, params):
    N, P, K = xp.shape
    D = CFG["embed_dim"]
    S_pad = CFG["seq_pad"]
    depth = CFG["depth"]
    hidden = int(CFG["mlp_ratio"] * D)
    nh = CFG["num_heads"]
    dh = D // nh
    pred_dim = CFG["final_in"]
    out_dim = CFG["final_out"]
    blocks = params["blocks"]

    # one-time parameter rearrangement (plain JAX, negligible):
    posp = params["pos_embed"][1:, :]                          # (P, D)
    clsp = params["cls_token"] + params["pos_embed"][:1, :]    # (1, D)

    const2 = lambda b, l: (0, 0)
    per_blk = lambda b, l: (l, 0, 0)
    per_batch = lambda b, l: (b, 0, 0)

    return pl.pallas_call(
        functools.partial(_mae_kernel,
                          num_heads=nh, head_dim=dh, scale=dh ** -0.5,
                          num_patches=P, seq_pad=S_pad, eps=CFG["ln_eps"]),
        out_shape=jax.ShapeDtypeStruct((N, P, out_dim), jnp.float32),
        grid=(N, depth),
        in_specs=[
            pl.BlockSpec((1, P, K), per_batch),         # tubelet patches
            pl.BlockSpec((K, D), const2),               # tubelet_w (bf16)
            pl.BlockSpec((1, D), const2),               # tubelet_b
            pl.BlockSpec((P, D), const2),               # pos_embed[1:]
            pl.BlockSpec((1, D), const2),               # cls + pos_embed[0]
            pl.BlockSpec((1, 1, D), per_blk),           # ln1_g
            pl.BlockSpec((1, 1, D), per_blk),           # ln1_b
            pl.BlockSpec((1, D, 3 * D), per_blk),       # qkv_w (bf16)
            pl.BlockSpec((1, 1, 3 * D), per_blk),       # qkv_b
            pl.BlockSpec((1, D, D), per_blk),           # proj_w (bf16)
            pl.BlockSpec((1, 1, D), per_blk),           # proj_b
            pl.BlockSpec((1, 1, D), per_blk),           # ln2_g
            pl.BlockSpec((1, 1, D), per_blk),           # ln2_b
            pl.BlockSpec((1, D, hidden), per_blk),      # fc1_w (bf16)
            pl.BlockSpec((1, 1, hidden), per_blk),      # fc1_b
            pl.BlockSpec((1, hidden, D), per_blk),      # fc2_w (bf16)
            pl.BlockSpec((1, 1, D), per_blk),           # fc2_b
            pl.BlockSpec((1, D), const2),               # norm_g
            pl.BlockSpec((1, D), const2),               # norm_b
            pl.BlockSpec((D, pred_dim), const2),        # encoder_pred w (bf16)
            pl.BlockSpec((1, pred_dim), const2),        # encoder_pred b
            pl.BlockSpec((pred_dim, out_dim), const2),  # final_inverse w (bf16)
            pl.BlockSpec((1, out_dim), const2),         # final_inverse b
        ],
        out_specs=pl.BlockSpec((1, P, out_dim), per_batch),
        scratch_shapes=[pltpu.VMEM((S_pad, D), jnp.float32)],
        compiler_params=pltpu.CompilerParams(
            dimension_semantics=("parallel", "arbitrary"),
            vmem_limit_bytes=32 * 1024 * 1024),
    )(xp, params["tubelet_w"], params["tubelet_b"], posp, clsp,
      blocks["ln1_g"], blocks["ln1_b"], blocks["qkv_w"], blocks["qkv_b"],
      blocks["proj_w"], blocks["proj_b"], blocks["ln2_g"], blocks["ln2_b"],
      blocks["fc1_w"], blocks["fc1_b"], blocks["fc2_w"], blocks["fc2_b"],
      params["norm_g"], params["norm_b"],
      params["enc_pred_w"], params["enc_pred_b"],
      params["final_w"], params["final_b"])


# --------------------------- parameters / config ----------------------------

def init_params(key):
    D = CFG["embed_dim"]
    depth = CFG["depth"]
    hidden = int(CFG["mlp_ratio"] * D)
    tub_dim = 1
    for s in CFG["tubelet_size"]:
        tub_dim *= s                                         # 1280
    pred_dim = CFG["patch_size"] ** 2 * CFG["in_chans"]      # 192
    P = CFG["num_patches"]

    keys = iter(jax.random.split(key, 32))

    def w(shape, scale=0.02, dtype=jnp.float32):
        v = scale * jax.random.normal(next(keys), shape, dtype=jnp.float32)
        return v.astype(dtype)

    return {
        "tubelet_w": w((tub_dim, D), dtype=jnp.bfloat16),
        "tubelet_b": jnp.zeros((1, D), jnp.float32),
        "cls_token": w((1, D)),
        "pos_embed": w((P + 1, D)),
        "norm_g": jnp.ones((1, D), jnp.float32),
        "norm_b": jnp.zeros((1, D), jnp.float32),
        "enc_pred_w": w((D, pred_dim), dtype=jnp.bfloat16),
        "enc_pred_b": jnp.zeros((1, pred_dim), jnp.float32),
        "final_w": w((CFG["final_in"], CFG["final_out"]), dtype=jnp.bfloat16),
        "final_b": jnp.zeros((1, CFG["final_out"]), jnp.float32),
        "blocks": {
            "ln1_g": jnp.ones((depth, 1, D), jnp.float32),
            "ln1_b": jnp.zeros((depth, 1, D), jnp.float32),
            "qkv_w": w((depth, D, 3 * D), dtype=jnp.bfloat16),
            "qkv_b": jnp.zeros((depth, 1, 3 * D), jnp.float32),
            "proj_w": w((depth, D, D), dtype=jnp.bfloat16),
            "proj_b": jnp.zeros((depth, 1, D), jnp.float32),
            "ln2_g": jnp.ones((depth, 1, D), jnp.float32),
            "ln2_b": jnp.zeros((depth, 1, D), jnp.float32),
            "fc1_w": w((depth, D, hidden), dtype=jnp.bfloat16),
            "fc1_b": jnp.zeros((depth, 1, hidden), jnp.float32),
            "fc2_w": w((depth, hidden, D), dtype=jnp.bfloat16),
            "fc2_b": jnp.zeros((depth, 1, D), jnp.float32),
        },
    }


# ------------------------------- forward pass -------------------------------

def mae_forward(params, x):
    N, C, T, W, H = x.shape
    kc, kt, kw, kh = CFG["tubelet_size"]
    P = CFG["num_patches"]

    # tubelet unfold (same as torch unfold(1..4) with stride == size)
    patches = x.reshape(N, C // kc, kc, T // kt, kt, W // kw, kw, H // kh, kh)
    patches = patches.transpose(0, 1, 3, 5, 7, 2, 4, 6, 8)
    xp = patches.reshape(N, (C // kc) * (T // kt) * (W // kw) * (H // kh),
                         kc * kt * kw * kh)                  # (N, P, 1280)

    # whole MAE forward: single fused pallas_call
    out = pallas_mae(xp, params)                             # (N, P, 1024)
    return out.reshape(N, P, 16, 8, 8)


# ----------------------------------- main ------------------------------------

if __name__ == "__main__":
    key = jax.random.PRNGKey(0)
    k_param, k_input = jax.random.split(key)

    params = init_params(k_param)

    # (N, C, T, W, H): C=5, T=4, W=32, H=32  ->  P = 1*1*4*4 = 16 patches
    x = jax.random.normal(k_input, (2, 5, 4, 32, 32), dtype=jnp.float32)

    fwd = jax.jit(mae_forward)
    out = fwd(params, x)
    out = jax.block_until_ready(out)

    assert out.shape == (2, 16, 16, 8, 8), out.shape
    assert bool(jnp.all(jnp.isfinite(out)))
    print("KERNEL_OK")
</pallas_src>

<mosaic_0001>
module attributes {stable_mosaic.version = 11 : i64} {
  func.func @_mae_kernel(%arg0: i32, %arg1: i32, %arg2: memref<1x16x1280xf32, #tpu.memory_space<vmem>>, %arg3: memref<1280x128xbf16, #tpu.memory_space<vmem>>, %arg4: memref<1x128xf32, #tpu.memory_space<vmem>>, %arg5: memref<16x128xf32, #tpu.memory_space<vmem>>, %arg6: memref<1x128xf32, #tpu.memory_space<vmem>>, %arg7: memref<1x1x128xf32, #tpu.memory_space<vmem>>, %arg8: memref<1x1x128xf32, #tpu.memory_space<vmem>>, %arg9: memref<1x128x384xbf16, #tpu.memory_space<vmem>>, %arg10: memref<1x1x384xf32, #tpu.memory_space<vmem>>, %arg11: memref<1x128x128xbf16, #tpu.memory_space<vmem>>, %arg12: memref<1x1x128xf32, #tpu.memory_space<vmem>>, %arg13: memref<1x1x128xf32, #tpu.memory_space<vmem>>, %arg14: memref<1x1x128xf32, #tpu.memory_space<vmem>>, %arg15: memref<1x128x512xbf16, #tpu.memory_space<vmem>>, %arg16: memref<1x1x512xf32, #tpu.memory_space<vmem>>, %arg17: memref<1x512x128xbf16, #tpu.memory_space<vmem>>, %arg18: memref<1x1x128xf32, #tpu.memory_space<vmem>>, %arg19: memref<1x128xf32, #tpu.memory_space<vmem>>, %arg20: memref<1x128xf32, #tpu.memory_space<vmem>>, %arg21: memref<128x192xbf16, #tpu.memory_space<vmem>>, %arg22: memref<1x192xf32, #tpu.memory_space<vmem>>, %arg23: memref<192x1024xbf16, #tpu.memory_space<vmem>>, %arg24: memref<1x1024xf32, #tpu.memory_space<vmem>>, %arg25: memref<1x16x1024xf32, #tpu.memory_space<vmem>>, %arg26: memref<24x128xf32, #tpu.memory_space<vmem>>) attributes {dimension_semantics = [#tpu.dimension_semantics<parallel>, #tpu.dimension_semantics<arbitrary>], iteration_bounds = array<i64: 2, 2>, scalar_prefetch = 0 : i64, scratch_operands = 1 : i64, tpu.core_type = #tpu.core_type<tc>, window_params = [{transform_indices = @transform_0, window_bounds = array<i64: 1, 16, 1280>}, {pipeline_mode = #tpu.pipeline_mode<synchronous>, transform_indices = @transform_1, window_bounds = array<i64: 1280, 128>}, {pipeline_mode = #tpu.pipeline_mode<synchronous>, transform_indices = @transform_2, window_bounds = array<i64: 1, 128>}, {pipeline_mode = #tpu.pipeline_mode<synchronous>, transform_indices = @transform_3, window_bounds = array<i64: 16, 128>}, {pipeline_mode = #tpu.pipeline_mode<synchronous>, transform_indices = @transform_4, window_bounds = array<i64: 1, 128>}, {transform_indices = @transform_5, window_bounds = array<i64: 1, 1, 128>}, {transform_indices = @transform_6, window_bounds = array<i64: 1, 1, 128>}, {transform_indices = @transform_7, window_bounds = array<i64: 1, 128, 384>}, {transform_indices = @transform_8, window_bounds = array<i64: 1, 1, 384>}, {transform_indices = @transform_9, window_bounds = array<i64: 1, 128, 128>}, {transform_indices = @transform_10, window_bounds = array<i64: 1, 1, 128>}, {transform_indices = @transform_11, window_bounds = array<i64: 1, 1, 128>}, {transform_indices = @transform_12, window_bounds = array<i64: 1, 1, 128>}, {transform_indices = @transform_13, window_bounds = array<i64: 1, 128, 512>}, {transform_indices = @transform_14, window_bounds = array<i64: 1, 1, 512>}, {transform_indices = @transform_15, window_bounds = array<i64: 1, 512, 128>}, {transform_indices = @transform_16, window_bounds = array<i64: 1, 1, 128>}, {pipeline_mode = #tpu.pipeline_mode<synchronous>, transform_indices = @transform_17, window_bounds = array<i64: 1, 128>}, {pipeline_mode = #tpu.pipeline_mode<synchronous>, transform_indices = @transform_18, window_bounds = array<i64: 1, 128>}, {pipeline_mode = #tpu.pipeline_mode<synchronous>, transform_indices = @transform_19, window_bounds = array<i64: 128, 192>}, {pipeline_mode = #tpu.pipeline_mode<synchronous>, transform_indices = @transform_20, window_bounds = array<i64: 1, 192>}, {pipeline_mode = #tpu.pipeline_mode<synchronous>, transform_indices = @transform_21, window_bounds = array<i64: 192, 1024>}, {pipeline_mode = #tpu.pipeline_mode<synchronous>, transform_indices = @transform_22, window_bounds = array<i64: 1, 1024>}, {transform_indices = @transform_23, window_bounds = array<i64: 1, 16, 1024>}]} {
    %c0_i32 = arith.constant 0 : i32
    %0 = arith.cmpi eq, %arg1, %c0_i32 : i32
    %1 = arith.extui %0 : i1 to i32
    %c0_i32_0 = arith.constant 0 : i32
    %2 = arith.cmpi ne, %1, %c0_i32_0 : i32
    scf.if %2 {
      %c0_80 = arith.constant 0 : index
      %c0_81 = arith.constant 0 : index
      %c0_82 = arith.constant 0 : index
      %190 = vector.load %arg2[%c0_80, %c0_81, %c0_82] : memref<1x16x1280xf32, #tpu.memory_space<vmem>>, vector<1x16x1280xf32>
      %191 = vector.shape_cast %190 : vector<1x16x1280xf32> to vector<16x1280xf32>
      %192 = arith.truncf %191 : vector<16x1280xf32> to vector<16x1280xbf16>
      %c0_83 = arith.constant 0 : index
      %c0_84 = arith.constant 0 : index
      %193 = vector.load %arg3[%c0_83, %c0_84] : memref<1280x128xbf16, #tpu.memory_space<vmem>>, vector<1280x128xbf16>
      %cst_85 = arith.constant dense<0.000000e+00> : vector<16x128xf32>
      %194 = tpu.matmul %192, %193, %cst_85 {dimension_numbers = #tpu.dot_dimension_numbers<[1], [0], [0], [1], [0, 0, 1, 1], [], []>} : vector<16x1280xbf16>, vector<1280x128xbf16>, vector<16x128xf32> -> vector<16x128xf32>
      %c0_86 = arith.constant 0 : index
      %c0_87 = arith.constant 0 : index
      %195 = vector.load %arg4[%c0_86, %c0_87] : memref<1x128xf32, #tpu.memory_space<vmem>>, vector<1x128xf32>
      %196 = vector.broadcast %195 : vector<1x128xf32> to vector<16x128xf32>
      %197 = arith.addf %194, %196 : vector<16x128xf32>
      %c0_88 = arith.constant 0 : index
      %c0_89 = arith.constant 0 : index
      %198 = vector.load %arg5[%c0_88, %c0_89] : memref<16x128xf32, #tpu.memory_space<vmem>>, vector<16x128xf32>
      %199 = arith.addf %197, %198 : vector<16x128xf32>
      %c0_90 = arith.constant 0 : index
      %c0_91 = arith.constant 0 : index
      %200 = vector.load %arg6[%c0_90, %c0_91] : memref<1x128xf32, #tpu.memory_space<vmem>>, vector<1x128xf32>
      %cst_92 = arith.constant 0.000000e+00 : f32
      %201 = vector.broadcast %cst_92 : f32 to vector<7x128xf32>
      %202 = tpu.concatenate %199, %200, %201 in 0 : vector<16x128xf32>, vector<1x128xf32>, vector<7x128xf32> -> vector<24x128xf32>
      %c0_93 = arith.constant 0 : index
      %c0_94 = arith.constant 0 : index
      %203 = vector.load %arg26[%c0_93, %c0_94] : memref<24x128xf32, #tpu.memory_space<vmem>>, vector<24x128xf32>
      tpu.vector_store %arg26[%c0_93, %c0_94], %202 {strides = array<i32>} : memref<24x128xf32, #tpu.memory_space<vmem>>, vector<24x128xf32>,
    } else {
    }
    %c0 = arith.constant 0 : index
    %c0_1 = arith.constant 0 : index
    %3 = vector.load %arg26[%c0, %c0_1] : memref<24x128xf32, #tpu.memory_space<vmem>>, vector<24x128xf32>
    %c0_2 = arith.constant 0 : index
    %c0_3 = arith.constant 0 : index
    %c0_4 = arith.constant 0 : index
    %4 = vector.load %arg7[%c0_2, %c0_3, %c0_4] : memref<1x1x128xf32, #tpu.memory_space<vmem>>, vector<1x1x128xf32>
    %5 = vector.shape_cast %4 : vector<1x1x128xf32> to vector<1x128xf32>
    %c0_5 = arith.constant 0 : index
    %c0_6 = arith.constant 0 : index
    %c0_7 = arith.constant 0 : index
    %6 = vector.load %arg8[%c0_5, %c0_6, %c0_7] : memref<1x1x128xf32, #tpu.memory_space<vmem>>, vector<1x1x128xf32>
    %7 = vector.shape_cast %6 : vector<1x1x128xf32> to vector<1x128xf32>
    %cst = arith.constant dense<0.000000e+00> : vector<24xf32>
    %8 = vector.multi_reduction <add>, %3, %cst [1] : vector<24x128xf32> to vector<24xf32>
    %9 = vector.shape_cast %8 : vector<24xf32> to vector<24x1xf32>
    %cst_8 = arith.constant 1.280000e+02 : f32
    %10 = vector.broadcast %cst_8 : f32 to vector<24x1xf32>
    %11 = arith.divf %9, %10 : vector<24x1xf32>
    %12 = vector.broadcast %11 : vector<24x1xf32> to vector<24x128xf32>
    %13 = arith.subf %3, %12 : vector<24x128xf32>
    %14 = arith.mulf %13, %13 : vector<24x128xf32>
    %cst_9 = arith.constant dense<0.000000e+00> : vector<24xf32>
    %15 = vector.multi_reduction <add>, %14, %cst_9 [1] : vector<24x128xf32> to vector<24xf32>
    %16 = vector.shape_cast %15 : vector<24xf32> to vector<24x1xf32>
    %cst_10 = arith.constant 1.280000e+02 : f32
    %17 = vector.broadcast %cst_10 : f32 to vector<24x1xf32>
    %18 = arith.divf %16, %17 : vector<24x1xf32>
    %cst_11 = arith.constant 9.99999974E-6 : f32
    %19 = vector.broadcast %cst_11 : f32 to vector<24x1xf32>
    %20 = arith.addf %18, %19 : vector<24x1xf32>
    %21 = math.rsqrt %20 : vector<24x1xf32>
    %22 = vector.broadcast %21 : vector<24x1xf32> to vector<24x128xf32>
    %23 = arith.mulf %13, %22 : vector<24x128xf32>
    %24 = vector.broadcast %5 : vector<1x128xf32> to vector<24x128xf32>
    %25 = arith.mulf %23, %24 : vector<24x128xf32>
    %26 = vector.broadcast %7 : vector<1x128xf32> to vector<24x128xf32>
    %27 = arith.addf %25, %26 : vector<24x128xf32>
    %28 = arith.truncf %27 : vector<24x128xf32> to vector<24x128xbf16>
    %c0_12 = arith.constant 0 : index
    %c0_13 = arith.constant 0 : index
    %c0_14 = arith.constant 0 : index
    %29 = vector.load %arg9[%c0_12, %c0_13, %c0_14] : memref<1x128x384xbf16, #tpu.memory_space<vmem>>, vector<1x128x384xbf16>
    %30 = vector.shape_cast %29 : vector<1x128x384xbf16> to vector<128x384xbf16>
    %cst_15 = arith.constant dense<0.000000e+00> : vector<24x384xf32>
    %31 = tpu.matmul %28, %30, %cst_15 {dimension_numbers = #tpu.dot_dimension_numbers<[1], [0], [0], [1], [0, 0, 1, 1], [], []>} : vector<24x128xbf16>, vector<128x384xbf16>, vector<24x384xf32> -> vector<24x384xf32>
    %c0_16 = arith.constant 0 : index
    %c0_17 = arith.constant 0 : index
    %c0_18 = arith.constant 0 : index
    %32 = vector.load %arg10[%c0_16, %c0_17, %c0_18] : memref<1x1x384xf32, #tpu.memory_space<vmem>>, vector<1x1x384xf32>
    %33 = vector.shape_cast %32 : vector<1x1x384xf32> to vector<1x384xf32>
    %34 = vector.broadcast %33 : vector<1x384xf32> to vector<24x384xf32>
    %35 = arith.addf %31, %34 : vector<24x384xf32>
    %36 = tpu.iota {dimensions = array<i32: 1>} : vector<24x24xi32>
    %c17_i32 = arith.constant 17 : i32
    %37 = vector.broadcast %c17_i32 : i32 to vector<24x24xi32>
    %38 = arith.cmpi slt, %36, %37 : vector<24x24xi32>
    %cst_19 = arith.constant 0.000000e+00 : f32
    %cst_20 = arith.constant -1.000000e+30 : f32
    %39 = vector.broadcast %cst_19 : f32 to vector<24x24xf32>
    %40 = vector.broadcast %cst_20 : f32 to vector<24x24xf32>
    %41 = arith.select %38, %39, %40 : vector<24x24xi1>, vector<24x24xf32>
    %42 = vector.extract_strided_slice %35 {offsets = [0, 0], sizes = [24, 32], strides = [1, 1]} : vector<24x384xf32> to vector<24x32xf32>
    %43 = vector.extract_strided_slice %35 {offsets = [0, 128], sizes = [24, 32], strides = [1, 1]} : vector<24x384xf32> to vector<24x32xf32>
    %44 = vector.extract_strided_slice %35 {offsets = [0, 256], sizes = [24, 32], strides = [1, 1]} : vector<24x384xf32> to vector<24x32xf32>
    %cst_21 = arith.constant dense<0.000000e+00> : vector<24x24xf32>
    %45 = tpu.matmul %42, %43, %cst_21 {dimension_numbers = #tpu.dot_dimension_numbers<[1], [1], [0], [0], [0, 0, 1, 0], [], []>} : vector<24x32xf32>, vector<24x32xf32>, vector<24x24xf32> -> vector<24x24xf32>
    %cst_22 = arith.constant 0.176776692 : f32
    %46 = vector.broadcast %cst_22 : f32 to vector<24x24xf32>
    %47 = arith.mulf %45, %46 : vector<24x24xf32>
    %48 = arith.addf %47, %41 : vector<24x24xf32>
    %cst_23 = arith.constant dense<0xFF800000> : vector<24xf32>
    %49 = vector.multi_reduction <maximumf>, %48, %cst_23 [1] : vector<24x24xf32> to vector<24xf32>
    %50 = vector.shape_cast %49 : vector<24xf32> to vector<24x1xf32>
    %51 = vector.broadcast %50 : vector<24x1xf32> to vector<24x24xf32>
    %52 = arith.subf %48, %51 : vector<24x24xf32>
    %53 = math.exp %52 : vector<24x24xf32>
    %cst_24 = arith.constant dense<0.000000e+00> : vector<24xf32>
    %54 = vector.multi_reduction <add>, %53, %cst_24 [1] : vector<24x24xf32> to vector<24xf32>
    %55 = vector.shape_cast %54 : vector<24xf32> to vector<24x1xf32>
    %56 = tpu.reciprocal %55 {approx = true} : vector<24x1xf32> -> vector<24x1xf32>
    %57 = vector.broadcast %56 : vector<24x1xf32> to vector<24x24xf32>
    %58 = arith.mulf %53, %57 : vector<24x24xf32>
    %59 = arith.truncf %58 : vector<24x24xf32> to vector<24x24xbf16>
    %60 = arith.truncf %44 : vector<24x32xf32> to vector<24x32xbf16>
    %cst_25 = arith.constant dense<0.000000e+00> : vector<24x32xf32>
    %61 = tpu.matmul %59, %60, %cst_25 {dimension_numbers = #tpu.dot_dimension_numbers<[1], [0], [0], [1], [0, 0, 1, 1], [], []>} : vector<24x24xbf16>, vector<24x32xbf16>, vector<24x32xf32> -> vector<24x32xf32>
    %62 = vector.extract_strided_slice %35 {offsets = [0, 32], sizes = [24, 32], strides = [1, 1]} : vector<24x384xf32> to vector<24x32xf32>
    %63 = vector.extract_strided_slice %35 {offsets = [0, 160], sizes = [24, 32], strides = [1, 1]} : vector<24x384xf32> to vector<24x32xf32>
    %64 = vector.extract_strided_slice %35 {offsets = [0, 288], sizes = [24, 32], strides = [1, 1]} : vector<24x384xf32> to vector<24x32xf32>
    %cst_26 = arith.constant dense<0.000000e+00> : vector<24x24xf32>
    %65 = tpu.matmul %62, %63, %cst_26 {dimension_numbers = #tpu.dot_dimension_numbers<[1], [1], [0], [0], [0, 0, 1, 0], [], []>} : vector<24x32xf32>, vector<24x32xf32>, vector<24x24xf32> -> vector<24x24xf32>
    %cst_27 = arith.constant 0.176776692 : f32
    %66 = vector.broadcast %cst_27 : f32 to vector<24x24xf32>
    %67 = arith.mulf %65, %66 : vector<24x24xf32>
    %68 = arith.addf %67, %41 : vector<24x24xf32>
    %cst_28 = arith.constant dense<0xFF800000> : vector<24xf32>
    %69 = vector.multi_reduction <maximumf>, %68, %cst_28 [1] : vector<24x24xf32> to vector<24xf32>
    %70 = vector.shape_cast %69 : vector<24xf32> to vector<24x1xf32>
    %71 = vector.broadcast %70 : vector<24x1xf32> to vector<24x24xf32>
    %72 = arith.subf %68, %71 : vector<24x24xf32>
    %73 = math.exp %72 : vector<24x24xf32>
    %cst_29 = arith.constant dense<0.000000e+00> : vector<24xf32>
    %74 = vector.multi_reduction <add>, %73, %cst_29 [1] : vector<24x24xf32> to vector<24xf32>
    %75 = vector.shape_cast %74 : vector<24xf32> to vector<24x1xf32>
    %76 = tpu.reciprocal %75 {approx = true} : vector<24x1xf32> -> vector<24x1xf32>
    %77 = vector.broadcast %76 : vector<24x1xf32> to vector<24x24xf32>
    %78 = arith.mulf %73, %77 : vector<24x24xf32>
    %79 = arith.truncf %78 : vector<24x24xf32> to vector<24x24xbf16>
    %80 = arith.truncf %64 : vector<24x32xf32> to vector<24x32xbf16>
    %cst_30 = arith.constant dense<0.000000e+00> : vector<24x32xf32>
    %81 = tpu.matmul %79, %80, %cst_30 {dimension_numbers = #tpu.dot_dimension_numbers<[1], [0], [0], [1], [0, 0, 1, 1], [], []>} : vector<24x24xbf16>, vector<24x32xbf16>, vector<24x32xf32> -> vector<24x32xf32>
    %82 = vector.extract_strided_slice %35 {offsets = [0, 64], sizes = [24, 32], strides = [1, 1]} : vector<24x384xf32> to vector<24x32xf32>
    %83 = vector.extract_strided_slice %35 {offsets = [0, 192], sizes = [24, 32], strides = [1, 1]} : vector<24x384xf32> to vector<24x32xf32>
    %84 = vector.extract_strided_slice %35 {offsets = [0, 320], sizes = [24, 32], strides = [1, 1]} : vector<24x384xf32> to vector<24x32xf32>
    %cst_31 = arith.constant dense<0.000000e+00> : vector<24x24xf32>
    %85 = tpu.matmul %82, %83, %cst_31 {dimension_numbers = #tpu.dot_dimension_numbers<[1], [1], [0], [0], [0, 0, 1, 0], [], []>} : vector<24x32xf32>, vector<24x32xf32>, vector<24x24xf32> -> vector<24x24xf32>
    %cst_32 = arith.constant 0.176776692 : f32
    %86 = vector.broadcast %cst_32 : f32 to vector<24x24xf32>
    %87 = arith.mulf %85, %86 : vector<24x24xf32>
    %88 = arith.addf %87, %41 : vector<24x24xf32>
    %cst_33 = arith.constant dense<0xFF800000> : vector<24xf32>
    %89 = vector.multi_reduction <maximumf>, %88, %cst_33 [1] : vector<24x24xf32> to vector<24xf32>
    %90 = vector.shape_cast %89 : vector<24xf32> to vector<24x1xf32>
    %91 = vector.broadcast %90 : vector<24x1xf32> to vector<24x24xf32>
    %92 = arith.subf %88, %91 : vector<24x24xf32>
    %93 = math.exp %92 : vector<24x24xf32>
    %cst_34 = arith.constant dense<0.000000e+00> : vector<24xf32>
    %94 = vector.multi_reduction <add>, %93, %cst_34 [1] : vector<24x24xf32> to vector<24xf32>
    %95 = vector.shape_cast %94 : vector<24xf32> to vector<24x1xf32>
    %96 = tpu.reciprocal %95 {approx = true} : vector<24x1xf32> -> vector<24x1xf32>
    %97 = vector.broadcast %96 : vector<24x1xf32> to vector<24x24xf32>
    %98 = arith.mulf %93, %97 : vector<24x24xf32>
    %99 = arith.truncf %98 : vector<24x24xf32> to vector<24x24xbf16>
    %100 = arith.truncf %84 : vector<24x32xf32> to vector<24x32xbf16>
    %cst_35 = arith.constant dense<0.000000e+00> : vector<24x32xf32>
    %101 = tpu.matmul %99, %100, %cst_35 {dimension_numbers = #tpu.dot_dimension_numbers<[1], [0], [0], [1], [0, 0, 1, 1], [], []>} : vector<24x24xbf16>, vector<24x32xbf16>, vector<24x32xf32> -> vector<24x32xf32>
    %102 = vector.extract_strided_slice %35 {offsets = [0, 96], sizes = [24, 32], strides = [1, 1]} : vector<24x384xf32> to vector<24x32xf32>
    %103 = vector.extract_strided_slice %35 {offsets = [0, 224], sizes = [24, 32], strides = [1, 1]} : vector<24x384xf32> to vector<24x32xf32>
    %104 = vector.extract_strided_slice %35 {offsets = [0, 352], sizes = [24, 32], strides = [1, 1]} : vector<24x384xf32> to vector<24x32xf32>
    %cst_36 = arith.constant dense<0.000000e+00> : vector<24x24xf32>
    %105 = tpu.matmul %102, %103, %cst_36 {dimension_numbers = #tpu.dot_dimension_numbers<[1], [1], [0], [0], [0, 0, 1, 0], [], []>} : vector<24x32xf32>, vector<24x32xf32>, vector<24x24xf32> -> vector<24x24xf32>
    %cst_37 = arith.constant 0.176776692 : f32
    %106 = vector.broadcast %cst_37 : f32 to vector<24x24xf32>
    %107 = arith.mulf %105, %106 : vector<24x24xf32>
    %108 = arith.addf %107, %41 : vector<24x24xf32>
    %cst_38 = arith.constant dense<0xFF800000> : vector<24xf32>
    %109 = vector.multi_reduction <maximumf>, %108, %cst_38 [1] : vector<24x24xf32> to vector<24xf32>
    %110 = vector.shape_cast %109 : vector<24xf32> to vector<24x1xf32>
    %111 = vector.broadcast %110 : vector<24x1xf32> to vector<24x24xf32>
    %112 = arith.subf %108, %111 : vector<24x24xf32>
    %113 = math.exp %112 : vector<24x24xf32>
    %cst_39 = arith.constant dense<0.000000e+00> : vector<24xf32>
    %114 = vector.multi_reduction <add>, %113, %cst_39 [1] : vector<24x24xf32> to vector<24xf32>
    %115 = vector.shape_cast %114 : vector<24xf32> to vector<24x1xf32>
    %116 = tpu.reciprocal %115 {approx = true} : vector<24x1xf32> -> vector<24x1xf32>
    %117 = vector.broadcast %116 : vector<24x1xf32> to vector<24x24xf32>
    %118 = arith.mulf %113, %117 : vector<24x24xf32>
    %119 = arith.truncf %118 : vector<24x24xf32> to vector<24x24xbf16>
    %120 = arith.truncf %104 : vector<24x32xf32> to vector<24x32xbf16>
    %cst_40 = arith.constant dense<0.000000e+00> : vector<24x32xf32>
    %121 = tpu.matmul %119, %120, %cst_40 {dimension_numbers = #tpu.dot_dimension_numbers<[1], [0], [0], [1], [0, 0, 1, 1], [], []>} : vector<24x24xbf16>, vector<24x32xbf16>, vector<24x32xf32> -> vector<24x32xf32>
    %122 = tpu.concatenate %61, %81, %101, %121 in 1 : vector<24x32xf32>, vector<24x32xf32>, vector<24x32xf32>, vector<24x32xf32> -> vector<24x128xf32>
    %123 = arith.truncf %122 : vector<24x128xf32> to vector<24x128xbf16>
    %c0_41 = arith.constant 0 : index
    %c0_42 = arith.constant 0 : index
    %c0_43 = arith.constant 0 : index
    %124 = vector.load %arg11[%c0_41, %c0_42, %c0_43] : memref<1x128x128xbf16, #tpu.memory_space<vmem>>, vector<1x128x128xbf16>
    %125 = vector.shape_cast %124 : vector<1x128x128xbf16> to vector<128x128xbf16>
    %cst_44 = arith.constant dense<0.000000e+00> : vector<24x128xf32>
    %126 = tpu.matmul %123, %125, %cst_44 {dimension_numbers = #tpu.dot_dimension_numbers<[1], [0], [0], [1], [0, 0, 1, 1], [], []>} : vector<24x128xbf16>, vector<128x128xbf16>, vector<24x128xf32> -> vector<24x128xf32>
    %127 = arith.addf %3, %126 : vector<24x128xf32>
    %c0_45 = arith.constant 0 : index
    %c0_46 = arith.constant 0 : index
    %c0_47 = arith.constant 0 : index
    %128 = vector.load %arg12[%c0_45, %c0_46, %c0_47] : memref<1x1x128xf32, #tpu.memory_space<vmem>>, vector<1x1x128xf32>
    %129 = vector.shape_cast %128 : vector<1x1x128xf32> to vector<1x128xf32>
    %130 = vector.broadcast %129 : vector<1x128xf32> to vector<24x128xf32>
    %131 = arith.addf %127, %130 : vector<24x128xf32>
    %c0_48 = arith.constant 0 : index
    %c0_49 = arith.constant 0 : index
    %c0_50 = arith.constant 0 : index
    %132 = vector.load %arg13[%c0_48, %c0_49, %c0_50] : memref<1x1x128xf32, #tpu.memory_space<vmem>>, vector<1x1x128xf32>
    %133 = vector.shape_cast %132 : vector<1x1x128xf32> to vector<1x128xf32>
    %c0_51 = arith.constant 0 : index
    %c0_52 = arith.constant 0 : index
    %c0_53 = arith.constant 0 : index
    %134 = vector.load %arg14[%c0_51, %c0_52, %c0_53] : memref<1x1x128xf32, #tpu.memory_space<vmem>>, vector<1x1x128xf32>
    %135 = vector.shape_cast %134 : vector<1x1x128xf32> to vector<1x128xf32>
    %cst_54 = arith.constant dense<0.000000e+00> : vector<24xf32>
    %136 = vector.multi_reduction <add>, %131, %cst_54 [1] : vector<24x128xf32> to vector<24xf32>
    %137 = vector.shape_cast %136 : vector<24xf32> to vector<24x1xf32>
    %cst_55 = arith.constant 1.280000e+02 : f32
    %138 = vector.broadcast %cst_55 : f32 to vector<24x1xf32>
    %139 = arith.divf %137, %138 : vector<24x1xf32>
    %140 = vector.broadcast %139 : vector<24x1xf32> to vector<24x128xf32>
    %141 = arith.subf %131, %140 : vector<24x128xf32>
    %142 = arith.mulf %141, %141 : vector<24x128xf32>
    %cst_56 = arith.constant dense<0.000000e+00> : vector<24xf32>
    %143 = vector.multi_reduction <add>, %142, %cst_56 [1] : vector<24x128xf32> to vector<24xf32>
    %144 = vector.shape_cast %143 : vector<24xf32> to vector<24x1xf32>
    %cst_57 = arith.constant 1.280000e+02 : f32
    %145 = vector.broadcast %cst_57 : f32 to vector<24x1xf32>
    %146 = arith.divf %144, %145 : vector<24x1xf32>
    %cst_58 = arith.constant 9.99999974E-6 : f32
    %147 = vector.broadcast %cst_58 : f32 to vector<24x1xf32>
    %148 = arith.addf %146, %147 : vector<24x1xf32>
    %149 = math.rsqrt %148 : vector<24x1xf32>
    %150 = vector.broadcast %149 : vector<24x1xf32> to vector<24x128xf32>
    %151 = arith.mulf %141, %150 : vector<24x128xf32>
    %152 = vector.broadcast %133 : vector<1x128xf32> to vector<24x128xf32>
    %153 = arith.mulf %151, %152 : vector<24x128xf32>
    %154 = vector.broadcast %135 : vector<1x128xf32> to vector<24x128xf32>
    %155 = arith.addf %153, %154 : vector<24x128xf32>
    %156 = arith.truncf %155 : vector<24x128xf32> to vector<24x128xbf16>
    %c0_59 = arith.constant 0 : index
    %c0_60 = arith.constant 0 : index
    %c0_61 = arith.constant 0 : index
    %157 = vector.load %arg15[%c0_59, %c0_60, %c0_61] : memref<1x128x512xbf16, #tpu.memory_space<vmem>>, vector<1x128x512xbf16>
    %158 = vector.shape_cast %157 : vector<1x128x512xbf16> to vector<128x512xbf16>
    %cst_62 = arith.constant dense<0.000000e+00> : vector<24x512xf32>
    %159 = tpu.matmul %156, %158, %cst_62 {dimension_numbers = #tpu.dot_dimension_numbers<[1], [0], [0], [1], [0, 0, 1, 1], [], []>} : vector<24x128xbf16>, vector<128x512xbf16>, vector<24x512xf32> -> vector<24x512xf32>
    %c0_63 = arith.constant 0 : index
    %c0_64 = arith.constant 0 : index
    %c0_65 = arith.constant 0 : index
    %160 = vector.load %arg16[%c0_63, %c0_64, %c0_65] : memref<1x1x512xf32, #tpu.memory_space<vmem>>, vector<1x1x512xf32>
    %161 = vector.shape_cast %160 : vector<1x1x512xf32> to vector<1x512xf32>
    %162 = vector.broadcast %161 : vector<1x512xf32> to vector<24x512xf32>
    %163 = arith.addf %159, %162 : vector<24x512xf32>
    %cst_66 = arith.constant 5.000000e-01 : f32
    %164 = vector.broadcast %cst_66 : f32 to vector<24x512xf32>
    %165 = arith.mulf %164, %163 : vector<24x512xf32>
    %cst_67 = arith.constant 4.471500e-02 : f32
    %166 = vector.broadcast %cst_67 : f32 to vector<24x512xf32>
    %167 = arith.mulf %166, %163 : vector<24x512xf32>
    %168 = arith.mulf %167, %163 : vector<24x512xf32>
    %169 = arith.mulf %168, %163 : vector<24x512xf32>
    %170 = arith.addf %163, %169 : vector<24x512xf32>
    %cst_68 = arith.constant 0.797884583 : f32
    %171 = vector.broadcast %cst_68 : f32 to vector<24x512xf32>
    %172 = arith.mulf %171, %170 : vector<24x512xf32>
    %173 = math.tanh %172 : vector<24x512xf32>
    %cst_69 = arith.constant 1.000000e+00 : f32
    %174 = vector.broadcast %cst_69 : f32 to vector<24x512xf32>
    %175 = arith.addf %174, %173 : vector<24x512xf32>
    %176 = arith.mulf %165, %175 : vector<24x512xf32>
    %177 = arith.truncf %176 : vector<24x512xf32> to vector<24x512xbf16>
    %c0_70 = arith.constant 0 : index
    %c0_71 = arith.constant 0 : index
    %c0_72 = arith.constant 0 : index
    %178 = vector.load %arg17[%c0_70, %c0_71, %c0_72] : memref<1x512x128xbf16, #tpu.memory_space<vmem>>, vector<1x512x128xbf16>
    %179 = vector.shape_cast %178 : vector<1x512x128xbf16> to vector<512x128xbf16>
    %cst_73 = arith.constant dense<0.000000e+00> : vector<24x128xf32>
    %180 = tpu.matmul %177, %179, %cst_73 {dimension_numbers = #tpu.dot_dimension_numbers<[1], [0], [0], [1], [0, 0, 1, 1], [], []>} : vector<24x512xbf16>, vector<512x128xbf16>, vector<24x128xf32> -> vector<24x128xf32>
    %181 = arith.addf %131, %180 : vector<24x128xf32>
    %c0_74 = arith.constant 0 : index
    %c0_75 = arith.constant 0 : index
    %c0_76 = arith.constant 0 : index
    %182 = vector.load %arg18[%c0_74, %c0_75, %c0_76] : memref<1x1x128xf32, #tpu.memory_space<vmem>>, vector<1x1x128xf32>
    %183 = vector.shape_cast %182 : vector<1x1x128xf32> to vector<1x128xf32>
    %184 = vector.broadcast %183 : vector<1x128xf32> to vector<24x128xf32>
    %185 = arith.addf %181, %184 : vector<24x128xf32>
    %c0_77 = arith.constant 0 : index
    %c0_78 = arith.constant 0 : index
    %186 = vector.load %arg26[%c0_77, %c0_78] : memref<24x128xf32, #tpu.memory_space<vmem>>, vector<24x128xf32>
    tpu.vector_store %arg26[%c0_77, %c0_78], %185 {strides = array<i32>} : memref<24x128xf32, #tpu.memory_space<vmem>>, vector<24x128xf32>,
    %c1_i32 = arith.constant 1 : i32
    %187 = arith.cmpi eq, %arg1, %c1_i32 : i32
    %188 = arith.extui %187 : i1 to i32
    %c0_i32_79 = arith.constant 0 : i32
    %189 = arith.cmpi ne, %188, %c0_i32_79 : i32
    scf.if %189 {
      %190 = vector.extract_strided_slice %185 {offsets = [0, 0], sizes = [16, 128], strides = [1, 1]} : vector<24x128xf32> to vector<16x128xf32>
      %c0_80 = arith.constant 0 : index
      %c0_81 = arith.constant 0 : index
      %191 = vector.load %arg19[%c0_80, %c0_81] : memref<1x128xf32, #tpu.memory_space<vmem>>, vector<1x128xf32>
      %c0_82 = arith.constant 0 : index
      %c0_83 = arith.constant 0 : index
      %192 = vector.load %arg20[%c0_82, %c0_83] : memref<1x128xf32, #tpu.memory_space<vmem>>, vector<1x128xf32>
      %cst_84 = arith.constant dense<0.000000e+00> : vector<16xf32>
      %193 = vector.multi_reduction <add>, %190, %cst_84 [1] : vector<16x128xf32> to vector<16xf32>
      %194 = vector.shape_cast %193 : vector<16xf32> to vector<16x1xf32>
      %cst_85 = arith.constant 1.280000e+02 : f32
      %195 = vector.broadcast %cst_85 : f32 to vector<16x1xf32>
      %196 = arith.divf %194, %195 : vector<16x1xf32>
      %197 = vector.broadcast %196 : vector<16x1xf32> to vector<16x128xf32>
      %198 = arith.subf %190, %197 : vector<16x128xf32>
      %199 = arith.mulf %198, %198 : vector<16x128xf32>
      %cst_86 = arith.constant dense<0.000000e+00> : vector<16xf32>
      %200 = vector.multi_reduction <add>, %199, %cst_86 [1] : vector<16x128xf32> to vector<16xf32>
      %201 = vector.shape_cast %200 : vector<16xf32> to vector<16x1xf32>
      %cst_87 = arith.constant 1.280000e+02 : f32
      %202 = vector.broadcast %cst_87 : f32 to vector<16x1xf32>
      %203 = arith.divf %201, %202 : vector<16x1xf32>
      %cst_88 = arith.constant 9.99999974E-6 : f32
      %204 = vector.broadcast %cst_88 : f32 to vector<16x1xf32>
      %205 = arith.addf %203, %204 : vector<16x1xf32>
      %206 = math.rsqrt %205 : vector<16x1xf32>
      %207 = vector.broadcast %206 : vector<16x1xf32> to vector<16x128xf32>
      %208 = arith.mulf %198, %207 : vector<16x128xf32>
      %209 = vector.broadcast %191 : vector<1x128xf32> to vector<16x128xf32>
      %210 = arith.mulf %208, %209 : vector<16x128xf32>
      %211 = vector.broadcast %192 : vector<1x128xf32> to vector<16x128xf32>
      %212 = arith.addf %210, %211 : vector<16x128xf32>
      %213 = arith.truncf %212 : vector<16x128xf32> to vector<16x128xbf16>
      %c0_89 = arith.constant 0 : index
      %c0_90 = arith.constant 0 : index
      %214 = vector.load %arg21[%c0_89, %c0_90] : memref<128x192xbf16, #tpu.memory_space<vmem>>, vector<128x192xbf16>
      %cst_91 = arith.constant dense<0.000000e+00> : vector<16x192xf32>
      %215 = tpu.matmul %213, %214, %cst_91 {dimension_numbers = #tpu.dot_dimension_numbers<[1], [0], [0], [1], [0, 0, 1, 1], [], []>} : vector<16x128xbf16>, vector<128x192xbf16>, vector<16x192xf32> -> vector<16x192xf32>
      %c0_92 = arith.constant 0 : index
      %c0_93 = arith.constant 0 : index
      %216 = vector.load %arg22[%c0_92, %c0_93] : memref<1x192xf32, #tpu.memory_space<vmem>>, vector<1x192xf32>
      %217 = vector.broadcast %216 : vector<1x192xf32> to vector<16x192xf32>
      %218 = arith.addf %215, %217 : vector<16x192xf32>
      %219 = arith.truncf %218 : vector<16x192xf32> to vector<16x192xbf16>
      %c0_94 = arith.constant 0 : index
      %c0_95 = arith.constant 0 : index
      %220 = vector.load %arg23[%c0_94, %c0_95] : memref<192x1024xbf16, #tpu.memory_space<vmem>>, vector<192x1024xbf16>
      %cst_96 = arith.constant dense<0.000000e+00> : vector<16x1024xf32>
      %221 = tpu.matmul %219, %220, %cst_96 {dimension_numbers = #tpu.dot_dimension_numbers<[1], [0], [0], [1], [0, 0, 1, 1], [], []>} : vector<16x192xbf16>, vector<192x1024xbf16>, vector<16x1024xf32> -> vector<16x1024xf32>
      %c0_97 = arith.constant 0 : index
      %c0_98 = arith.constant 0 : index
      %222 = vector.load %arg24[%c0_97, %c0_98] : memref<1x1024xf32, #tpu.memory_space<vmem>>, vector<1x1024xf32>
      %223 = vector.broadcast %222 : vector<1x1024xf32> to vector<16x1024xf32>
      %224 = arith.addf %221, %223 : vector<16x1024xf32>
      %c0_99 = arith.constant 0 : index
      %c0_100 = arith.constant 0 : index
      %c0_101 = arith.constant 0 : index
      %225 = vector.load %arg25[%c0_99, %c0_100, %c0_101] : memref<1x16x1024xf32, #tpu.memory_space<vmem>>, vector<1x16x1024xf32>
      %226 = vector.shape_cast %225 : vector<1x16x1024xf32> to vector<16x1024xf32>
      %227 = vector.shape_cast %224 : vector<16x1024xf32> to vector<1x16x1024xf32>
      tpu.vector_store %arg25[%c0_99, %c0_100, %c0_101], %227 {strides = array<i32>} : memref<1x16x1024xf32, #tpu.memory_space<vmem>>, vector<1x16x1024xf32>,
    } else {
    }
    return
  }
  func.func @transform_0(%arg0: i32, %arg1: i32) -> (i32, i32, i32) {
    %c0_i32 = arith.constant 0 : i32
    %c0_i32_0 = arith.constant 0 : i32
    %c0_i32_1 = arith.constant 0 : i32
    return %arg0, %c0_i32, %c0_i32_0 : i32, i32, i32
  }
  func.func @transform_1(%arg0: i32, %arg1: i32) -> (i32, i32) {
    %c0_i32 = arith.constant 0 : i32
    %c0_i32_0 = arith.constant 0 : i32
    %c0_i32_1 = arith.constant 0 : i32
    return %c0_i32, %c0_i32_0 : i32, i32
  }
  func.func @transform_2(%arg0: i32, %arg1: i32) -> (i32, i32) {
    %c0_i32 = arith.constant 0 : i32
    %c0_i32_0 = arith.constant 0 : i32
    %c0_i32_1 = arith.constant 0 : i32
    return %c0_i32, %c0_i32_0 : i32, i32
  }
  func.func @transform_3(%arg0: i32, %arg1: i32) -> (i32, i32) {
    %c0_i32 = arith.constant 0 : i32
    %c0_i32_0 = arith.constant 0 : i32
    %c0_i32_1 = arith.constant 0 : i32
    return %c0_i32, %c0_i32_0 : i32, i32
  }
  func.func @transform_4(%arg0: i32, %arg1: i32) -> (i32, i32) {
    %c0_i32 = arith.constant 0 : i32
    %c0_i32_0 = arith.constant 0 : i32
    %c0_i32_1 = arith.constant 0 : i32
    return %c0_i32, %c0_i32_0 : i32, i32
  }
  func.func @transform_5(%arg0: i32, %arg1: i32) -> (i32, i32, i32) {
    %c0_i32 = arith.constant 0 : i32
    %c0_i32_0 = arith.constant 0 : i32
    %c0_i32_1 = arith.constant 0 : i32
    return %arg1, %c0_i32, %c0_i32_0 : i32, i32, i32
  }
  func.func @transform_6(%arg0: i32, %arg1: i32) -> (i32, i32, i32) {
    %c0_i32 = arith.constant 0 : i32
    %c0_i32_0 = arith.constant 0 : i32
    %c0_i32_1 = arith.constant 0 : i32
    return %arg1, %c0_i32, %c0_i32_0 : i32, i32, i32
  }
  func.func @transform_7(%arg0: i32, %arg1: i32) -> (i32, i32, i32) {
    %c0_i32 = arith.constant 0 : i32
    %c0_i32_0 = arith.constant 0 : i32
    %c0_i32_1 = arith.constant 0 : i32
    return %arg1, %c0_i32, %c0_i32_0 : i32, i32, i32
  }
  func.func @transform_8(%arg0: i32, %arg1: i32) -> (i32, i32, i32) {
    %c0_i32 = arith.constant 0 : i32
    %c0_i32_0 = arith.constant 0 : i32
    %c0_i32_1 = arith.constant 0 : i32
    return %arg1, %c0_i32, %c0_i32_0 : i32, i32, i32
  }
  func.func @transform_9(%arg0: i32, %arg1: i32) -> (i32, i32, i32) {
    %c0_i32 = arith.constant 0 : i32
    %c0_i32_0 = arith.constant 0 : i32
    %c0_i32_1 = arith.constant 0 : i32
    return %arg1, %c0_i32, %c0_i32_0 : i32, i32, i32
  }
  func.func @transform_10(%arg0: i32, %arg1: i32) -> (i32, i32, i32) {
    %c0_i32 = arith.constant 0 : i32
    %c0_i32_0 = arith.constant 0 : i32
    %c0_i32_1 = arith.constant 0 : i32
    return %arg1, %c0_i32, %c0_i32_0 : i32, i32, i32
  }
  func.func @transform_11(%arg0: i32, %arg1: i32) -> (i32, i32, i32) {
    %c0_i32 = arith.constant 0 : i32
    %c0_i32_0 = arith.constant 0 : i32
    %c0_i32_1 = arith.constant 0 : i32
    return %arg1, %c0_i32, %c0_i32_0 : i32, i32, i32
  }
  func.func @transform_12(%arg0: i32, %arg1: i32) -> (i32, i32, i32) {
    %c0_i32 = arith.constant 0 : i32
    %c0_i32_0 = arith.constant 0 : i32
    %c0_i32_1 = arith.constant 0 : i32
    return %arg1, %c0_i32, %c0_i32_0 : i32, i32, i32
  }
  func.func @transform_13(%arg0: i32, %arg1: i32) -> (i32, i32, i32) {
    %c0_i32 = arith.constant 0 : i32
    %c0_i32_0 = arith.constant 0 : i32
    %c0_i32_1 = arith.constant 0 : i32
    return %arg1, %c0_i32, %c0_i32_0 : i32, i32, i32
  }
  func.func @transform_14(%arg0: i32, %arg1: i32) -> (i32, i32, i32) {
    %c0_i32 = arith.constant 0 : i32
    %c0_i32_0 = arith.constant 0 : i32
    %c0_i32_1 = arith.constant 0 : i32
    return %arg1, %c0_i32, %c0_i32_0 : i32, i32, i32
  }
  func.func @transform_15(%arg0: i32, %arg1: i32) -> (i32, i32, i32) {
    %c0_i32 = arith.constant 0 : i32
    %c0_i32_0 = arith.constant 0 : i32
    %c0_i32_1 = arith.constant 0 : i32
    return %arg1, %c0_i32, %c0_i32_0 : i32, i32, i32
  }
  func.func @transform_16(%arg0: i32, %arg1: i32) -> (i32, i32, i32) {
    %c0_i32 = arith.constant 0 : i32
    %c0_i32_0 = arith.constant 0 : i32
    %c0_i32_1 = arith.constant 0 : i32
    return %arg1, %c0_i32, %c0_i32_0 : i32, i32, i32
  }
  func.func @transform_17(%arg0: i32, %arg1: i32) -> (i32, i32) {
    %c0_i32 = arith.constant 0 : i32
    %c0_i32_0 = arith.constant 0 : i32
    %c0_i32_1 = arith.constant 0 : i32
    return %c0_i32, %c0_i32_0 : i32, i32
  }
  func.func @transform_18(%arg0: i32, %arg1: i32) -> (i32, i32) {
    %c0_i32 = arith.constant 0 : i32
    %c0_i32_0 = arith.constant 0 : i32
    %c0_i32_1 = arith.constant 0 : i32
    return %c0_i32, %c0_i32_0 : i32, i32
  }
  func.func @transform_19(%arg0: i32, %arg1: i32) -> (i32, i32) {
    %c0_i32 = arith.constant 0 : i32
    %c0_i32_0 = arith.constant 0 : i32
    %c0_i32_1 = arith.constant 0 : i32
    return %c0_i32, %c0_i32_0 : i32, i32
  }
  func.func @transform_20(%arg0: i32, %arg1: i32) -> (i32, i32) {
    %c0_i32 = arith.constant 0 : i32
    %c0_i32_0 = arith.constant 0 : i32
    %c0_i32_1 = arith.constant 0 : i32
    return %c0_i32, %c0_i32_0 : i32, i32
  }
  func.func @transform_21(%arg0: i32, %arg1: i32) -> (i32, i32) {
    %c0_i32 = arith.constant 0 : i32
    %c0_i32_0 = arith.constant 0 : i32
    %c0_i32_1 = arith.constant 0 : i32
    return %c0_i32, %c0_i32_0 : i32, i32
  }
  func.func @transform_22(%arg0: i32, %arg1: i32) -> (i32, i32) {
    %c0_i32 = arith.constant 0 : i32
    %c0_i32_0 = arith.constant 0 : i32
    %c0_i32_1 = arith.constant 0 : i32
    return %c0_i32, %c0_i32_0 : i32, i32
  }
  func.func @transform_23(%arg0: i32, %arg1: i32) -> (i32, i32, i32) {
    %c0_i32 = arith.constant 0 : i32
    %c0_i32_0 = arith.constant 0 : i32
    %c0_i32_1 = arith.constant 0 : i32
    return %arg0, %c0_i32, %c0_i32_0 : i32, i32, i32
  }
}

</mosaic_0001>

<llo_original>
// kernel: mae_forward.1
$region0: #{mae_forward.1}
  #allocation0 [shape = 'u32[]', space=smem, size = 0x4, offset = 0x4, fixed_abs, tag = 'smem constant byte address 0x4 - core index']
  #allocation1 [shape = 'u32[144,128]{1,0:T(1,128)}', space=vmem, size = 0x12000, scoped, tag = 'internal scratch']
  #allocation2 [shape = 'f32[24,128]{1,0:T(8,128)}', space=vmem, size = 0x3000, scoped, tag = 'scratch operand']
  %s0 = inlined_call_operand.vmem [shape: f32[2,16,1280], index: 0, kind: input, shape index: {}]
  %s1 = inlined_call_operand.vmem [shape: bf16[1280,128], index: 1, kind: input, shape index: {}]
  %s2 = inlined_call_operand.vmem [shape: f32[1,128], index: 2, kind: input, shape index: {}]
  %s3 = inlined_call_operand.vmem [shape: f32[16,128], index: 3, kind: input, shape index: {}]
  %s4 = inlined_call_operand.vmem [shape: f32[1,128], index: 4, kind: input, shape index: {}]
  %s5 = inlined_call_operand.vmem [shape: f32[2,1,128], index: 5, kind: input, shape index: {}]
  %s6 = inlined_call_operand.vmem [shape: f32[2,1,128], index: 6, kind: input, shape index: {}]
  %s7 = inlined_call_operand.vmem [shape: bf16[2,128,384], index: 7, kind: input, shape index: {}]
  %s8 = inlined_call_operand.vmem [shape: f32[2,1,384], index: 8, kind: input, shape index: {}]
  %s9 = inlined_call_operand.vmem [shape: bf16[2,128,128], index: 9, kind: input, shape index: {}]
  %s10 = inlined_call_operand.vmem [shape: f32[2,1,128], index: 10, kind: input, shape index: {}]
  %s11 = inlined_call_operand.vmem [shape: f32[2,1,128], index: 11, kind: input, shape index: {}]
  %s12 = inlined_call_operand.vmem [shape: f32[2,1,128], index: 12, kind: input, shape index: {}]
  %s13 = inlined_call_operand.vmem [shape: bf16[2,128,512], index: 13, kind: input, shape index: {}]
  %s14 = inlined_call_operand.vmem [shape: f32[2,1,512], index: 14, kind: input, shape index: {}]
  %s15 = inlined_call_operand.vmem [shape: bf16[2,512,128], index: 15, kind: input, shape index: {}]
  %s16 = inlined_call_operand.vmem [shape: f32[2,1,128], index: 16, kind: input, shape index: {}]
  %s17 = inlined_call_operand.vmem [shape: f32[1,128], index: 17, kind: input, shape index: {}]
  %s18 = inlined_call_operand.vmem [shape: f32[1,128], index: 18, kind: input, shape index: {}]
  %s19 = inlined_call_operand.vmem [shape: bf16[128,192], index: 19, kind: input, shape index: {}]
  %s20 = inlined_call_operand.vmem [shape: f32[1,192], index: 20, kind: input, shape index: {}]
  %s21 = inlined_call_operand.vmem [shape: bf16[192,1024], index: 21, kind: input, shape index: {}]
  %s22 = inlined_call_operand.vmem [shape: f32[1,1024], index: 22, kind: input, shape index: {}]
  %s23 = inlined_call_operand.vmem [shape: f32[2,16,1024], index: 23, kind: output, shape index: {}]
  %s24 = sld [smem:[#allocation0]]
  $region133: #{mae_forward.1} parent=0
    _
  %s26 = ssub.s32 1, %s24
  %s27 = scalar_select 0, %s26, %s24
  loop: start=0, step=1, limit=6
  $region2: #{mae_forward.1} parent=0 // loop_pre_header
    _
  $region3: #{mae_forward.1} parent=0 // loop_header
    %s29 = sphi 0, %s33
    %p30 = scmp.ge.s32.totalorder %s29, 6
    %s36 = sphi 0, %s48
    %s37 = sphi 0, %s44
    %s38 = sphi 0, %s36
    %s39 = sphi 0, %s37
    %s40 = sphi 0, %s38
    %s41 = sphi 0, %s39
    %s51 = sphi 0, %s53
    %s54 = sphi 0, %s51
    %s55 = sphi 0, %s54
    %s71 = sphi 0, %s55
    %s75 = sphi 0, %s75
    %s77 = sphi 0, %s75
    %s78 = sphi 0, %s77
    %s92 = sphi 0, %s78
    %s96 = sphi 0, %s96
    %s98 = sphi 0, %s96
    %s99 = sphi 0, %s98
    %s113 = sphi 0, %s99
    %s117 = sphi 0, %s117
    %s119 = sphi 0, %s117
    %s120 = sphi 0, %s119
    %s134 = sphi 0, %s120
    %s138 = sphi 0, %s138
    %s140 = sphi 0, %s138
    %s141 = sphi 0, %s140
    %s155 = sphi 0, %s141
    %s161 = sphi 0, %s163
    %s164 = sphi 0, %s161
    %s165 = sphi 0, %s164
    %s181 = sphi 0, %s165
    %s187 = sphi 0, %s189
    %s190 = sphi 0, %s187
    %s191 = sphi 0, %s190
    %s207 = sphi 0, %s191
    %s213 = sphi 0, %s215
    %s216 = sphi 0, %s213
    %s217 = sphi 0, %s216
    %s233 = sphi 0, %s217
    %s239 = sphi 0, %s241
    %s242 = sphi 0, %s239
    %s243 = sphi 0, %s242
    %s259 = sphi 0, %s243
    %s265 = sphi 0, %s267
    %s268 = sphi 0, %s265
    %s269 = sphi 0, %s268
    %s285 = sphi 0, %s269
    %s291 = sphi 0, %s293
    %s294 = sphi 0, %s291
    %s295 = sphi 0, %s294
    %s311 = sphi 0, %s295
    %s317 = sphi 0, %s319
    %s320 = sphi 0, %s317
    %s321 = sphi 0, %s320
    %s337 = sphi 0, %s321
    %s343 = sphi 0, %s345
    %s346 = sphi 0, %s343
    %s347 = sphi 0, %s346
    %s363 = sphi 0, %s347
    %s369 = sphi 0, %s371
    %s372 = sphi 0, %s369
    %s373 = sphi 0, %s372
    %s389 = sphi 0, %s373
    %s395 = sphi 0, %s397
    %s398 = sphi 0, %s395
    %s399 = sphi 0, %s398
    %s415 = sphi 0, %s399
    %s421 = sphi 0, %s423
    %s424 = sphi 0, %s421
    %s425 = sphi 0, %s424
    %s441 = sphi 0, %s425
    %s447 = sphi 0, %s449
    %s450 = sphi 0, %s447
    %s451 = sphi 0, %s450
    %s467 = sphi 0, %s451
    %s471 = sphi 0, %s471
    %s473 = sphi 0, %s471
    %s474 = sphi 0, %s473
    %s488 = sphi 0, %s474
    %s492 = sphi 0, %s492
    %s494 = sphi 0, %s492
    %s495 = sphi 0, %s494
    %s509 = sphi 0, %s495
    %s513 = sphi 0, %s513
    %s515 = sphi 0, %s513
    %s516 = sphi 0, %s515
    %s530 = sphi 0, %s516
    %s534 = sphi 0, %s534
    %s536 = sphi 0, %s534
    %s537 = sphi 0, %s536
    %s551 = sphi 0, %s537
    %s555 = sphi 0, %s555
    %s557 = sphi 0, %s555
    %s558 = sphi 0, %s557
    %s572 = sphi 0, %s558
    %s576 = sphi 0, %s576
    %s578 = sphi 0, %s576
    %s579 = sphi 0, %s578
    %s593 = sphi 0, %s579
    %s599 = sphi 0, %s601
    %s602 = sphi 0, %s599
    %s603 = sphi 0, %s602
    %s619 = sphi 0, %s603
  $region4: #{mae_forward.1} parent=0 // loop_header_branch
    %32 = sbr.rel (%p30) target = $region8
  $region5: #{mae_forward.1} parent=0 // loop_body
    %s34 = ssub.s32 %s29, 1
    %s35 = ssub.s32 %s29, 2
    %s42 = sadd.s32 1, %s37
    %p43 = scmp.ge.s32.totalorder %s42, 2
    %s44 = scalar_select %p43, 0, %s42
    %s45 = sadd.s32 1, %s36
    %s46 = scalar_select %p43, %s45, %s36
    %p47 = scmp.ge.s32.totalorder %s46, 2
    %s48 = scalar_select %p47, 0, %s46
    %s49 = ssub.s32 %s36, %s48
    %p50 = scmp.eq.s32.totalorder %s49, 0
    %s52 = sadd.s32 %s51, 1
    %s53 = scalar_select %p50, %s51, %s52
    %p56 = pneg %p50
    %p57 = scmp.eq.s32.totalorder %s29, 3
    %p58 = por %p56, %p57
    %p59 = scmp.ne.s32.totalorder %s51, %s54
    %p60 = scmp.eq.s32.totalorder %s29, 0
    %p61 = por %p59, %p60
    %p62 = scmp.ne.s32.totalorder %s51, %s54
    %p63 = scmp.eq.s32.totalorder %s34, 3
    %p64 = por %p62, %p63
    %p65 = scmp.ne.s32.totalorder %s54, %s55
    %p66 = scmp.eq.s32.totalorder %s34, 0
    %p67 = por %p65, %p66
    %p68 = scmp.ne.s32.totalorder %s54, %s55
    %p69 = scmp.eq.s32.totalorder %s35, 3
    %p70 = por %p68, %p69
    %p72 = scmp.ne.s32.totalorder %s55, %s71
    %p73 = scmp.eq.s32.totalorder %s35, 0
    %p74 = por %p72, %p73
    %s76 = sadd.s32 %s75, 1
    %p79 = scmp.eq.s32.totalorder %s29, 3
    %p80 = scmp.ne.s32.totalorder %s75, %s77
    %p81 = scmp.eq.s32.totalorder %s29, 0
    %p82 = por %p80, %p81
    %p83 = scmp.ne.s32.totalorder %s75, %s77
    %p84 = scmp.eq.s32.totalorder %s34, 3
    %p85 = por %p83, %p84
    %p86 = scmp.ne.s32.totalorder %s77, %s78
    %p87 = scmp.eq.s32.totalorder %s34, 0
    %p88 = por %p86, %p87
    %p89 = scmp.ne.s32.totalorder %s77, %s78
    %p90 = scmp.eq.s32.totalorder %s35, 3
    %p91 = por %p89, %p90
    %p93 = scmp.ne.s32.totalorder %s78, %s92
    %p94 = scmp.eq.s32.totalorder %s35, 0
    %p95 = por %p93, %p94
    %s97 = sadd.s32 %s96, 1
    %p100 = scmp.eq.s32.totalorder %s29, 3
    %p101 = scmp.ne.s32.totalorder %s96, %s98
    %p102 = scmp.eq.s32.totalorder %s29, 0
    %p103 = por %p101, %p102
    %p104 = scmp.ne.s32.totalorder %s96, %s98
    %p105 = scmp.eq.s32.totalorder %s34, 3
    %p106 = por %p104, %p105
    %p107 = scmp.ne.s32.totalorder %s98, %s99
    %p108 = scmp.eq.s32.totalorder %s34, 0
    %p109 = por %p107, %p108
    %p110 = scmp.ne.s32.totalorder %s98, %s99
    %p111 = scmp.eq.s32.totalorder %s35, 3
    %p112 = por %p110, %p111
    %p114 = scmp.ne.s32.totalorder %s99, %s113
    %p115 = scmp.eq.s32.totalorder %s35, 0
    %p116 = por %p114, %p115
    %s118 = sadd.s32 %s117, 1
    %p121 = scmp.eq.s32.totalorder %s29, 3
    %p122 = scmp.ne.s32.totalorder %s117, %s119
    %p123 = scmp.eq.s32.totalorder %s29, 0
    %p124 = por %p122, %p123
    %p125 = scmp.ne.s32.totalorder %s117, %s119
    %p126 = scmp.eq.s32.totalorder %s34, 3
    %p127 = por %p125, %p126
    %p128 = scmp.ne.s32.totalorder %s119, %s120
    %p129 = scmp.eq.s32.totalorder %s34, 0
    %p130 = por %p128, %p129
    %p131 = scmp.ne.s32.totalorder %s119, %s120
    %p132 = scmp.eq.s32.totalorder %s35, 3
    %p133 = por %p131, %p132
    %p135 = scmp.ne.s32.totalorder %s120, %s134
    %p136 = scmp.eq.s32.totalorder %s35, 0
    %p137 = por %p135, %p136
    %s139 = sadd.s32 %s138, 1
    %p142 = scmp.eq.s32.totalorder %s29, 3
    %p143 = scmp.ne.s32.totalorder %s138, %s140
    %p144 = scmp.eq.s32.totalorder %s29, 0
    %p145 = por %p143, %p144
    %p146 = scmp.ne.s32.totalorder %s138, %s140
    %p147 = scmp.eq.s32.totalorder %s34, 3
    %p148 = por %p146, %p147
    %p149 = scmp.ne.s32.totalorder %s140, %s141
    %p150 = scmp.eq.s32.totalorder %s34, 0
    %p151 = por %p149, %p150
    %p152 = scmp.ne.s32.totalorder %s140, %s141
    %p153 = scmp.eq.s32.totalorder %s35, 3
    %p154 = por %p152, %p153
    %p156 = scmp.ne.s32.totalorder %s141, %s155
    %p157 = scmp.eq.s32.totalorder %s35, 0
    %p158 = por %p156, %p157
    %s159 = ssub.s32 %s37, %s44
    %p160 = scmp.eq.s32.totalorder %s159, 0
    %s162 = sadd.s32 %s161, 1
    %s163 = scalar_select %p160, %s161, %s162
    %p166 = pneg %p160
    %p167 = scmp.eq.s32.totalorder %s29, 3
    %p168 = por %p166, %p167
    %p169 = scmp.ne.s32.totalorder %s161, %s164
    %p170 = scmp.eq.s32.totalorder %s29, 0
    %p171 = por %p169, %p170
    %p172 = scmp.ne.s32.totalorder %s161, %s164
    %p173 = scmp.eq.s32.totalorder %s34, 3
    %p174 = por %p172, %p173
    %p175 = scmp.ne.s32.totalorder %s164, %s165
    %p176 = scmp.eq.s32.totalorder %s34, 0
    %p177 = por %p175, %p176
    %p178 = scmp.ne.s32.totalorder %s164, %s165
    %p179 = scmp.eq.s32.totalorder %s35, 3
    %p180 = por %p178, %p179
    %p182 = scmp.ne.s32.totalorder %s165, %s181
    %p183 = scmp.eq.s32.totalorder %s35, 0
    %p184 = por %p182, %p183
    %s185 = ssub.s32 %s37, %s44
    %p186 = scmp.eq.s32.totalorder %s185, 0
    %s188 = sadd.s32 %s187, 1
    %s189 = scalar_select %p186, %s187, %s188
    %p192 = pneg %p186
    %p193 = scmp.eq.s32.totalorder %s29, 3
    %p194 = por %p192, %p193
    %p195 = scmp.ne.s32.totalorder %s187, %s190
    %p196 = scmp.eq.s32.totalorder %s29, 0
    %p197 = por %p195, %p196
    %p198 = scmp.ne.s32.totalorder %s187, %s190
    %p199 = scmp.eq.s32.totalorder %s34, 3
    %p200 = por %p198, %p199
    %p201 = scmp.ne.s32.totalorder %s190, %s191
    %p202 = scmp.eq.s32.totalorder %s34, 0
    %p203 = por %p201, %p202
    %p204 = scmp.ne.s32.totalorder %s190, %s191
    %p205 = scmp.eq.s32.totalorder %s35, 3
    %p206 = por %p204, %p205
    %p208 = scmp.ne.s32.totalorder %s191, %s207
    %p209 = scmp.eq.s32.totalorder %s35, 0
    %p210 = por %p208, %p209
    %s211 = ssub.s32 %s37, %s44
    %p212 = scmp.eq.s32.totalorder %s211, 0
    %s214 = sadd.s32 %s213, 1
    %s215 = scalar_select %p212, %s213, %s214
    %p218 = pneg %p212
    %p219 = scmp.eq.s32.totalorder %s29, 3
    %p220 = por %p218, %p219
    %p221 = scmp.ne.s32.totalorder %s213, %s216
    %p222 = scmp.eq.s32.totalorder %s29, 0
    %p223 = por %p221, %p222
    %p224 = scmp.ne.s32.totalorder %s213, %s216
    %p225 = scmp.eq.s32.totalorder %s34, 3
    %p226 = por %p224, %p225
    %p227 = scmp.ne.s32.totalorder %s216, %s217
    %p228 = scmp.eq.s32.totalorder %s34, 0
    %p229 = por %p227, %p228
    %p230 = scmp.ne.s32.totalorder %s216, %s217
    %p231 = scmp.eq.s32.totalorder %s35, 3
    %p232 = por %p230, %p231
    %p234 = scmp.ne.s32.totalorder %s217, %s233
    %p235 = scmp.eq.s32.totalorder %s35, 0
    %p236 = por %p234, %p235
    %s237 = ssub.s32 %s37, %s44
    %p238 = scmp.eq.s32.totalorder %s237, 0
    %s240 = sadd.s32 %s239, 1
    %s241 = scalar_select %p238, %s239, %s240
    %p244 = pneg %p238
    %p245 = scmp.eq.s32.totalorder %s29, 3
    %p246 = por %p244, %p245
    %p247 = scmp.ne.s32.totalorder %s239, %s242
    %p248 = scmp.eq.s32.totalorder %s29, 0
    %p249 = por %p247, %p248
    %p250 = scmp.ne.s32.totalorder %s239, %s242
    %p251 = scmp.eq.s32.totalorder %s34, 3
    %p252 = por %p250, %p251
    %p253 = scmp.ne.s32.totalorder %s242, %s243
    %p254 = scmp.eq.s32.totalorder %s34, 0
    %p255 = por %p253, %p254
    %p256 = scmp.ne.s32.totalorder %s242, %s243
    %p257 = scmp.eq.s32.totalorder %s35, 3
    %p258 = por %p256, %p257
    %p260 = scmp.ne.s32.totalorder %s243, %s259
    %p261 = scmp.eq.s32.totalorder %s35, 0
    %p262 = por %p260, %p261
    %s263 = ssub.s32 %s37, %s44
    %p264 = scmp.eq.s32.totalorder %s263, 0
    %s266 = sadd.s32 %s265, 1
    %s267 = scalar_select %p264, %s265, %s266
    %p270 = pneg %p264
    %p271 = scmp.eq.s32.totalorder %s29, 3
    %p272 = por %p270, %p271
    %p273 = scmp.ne.s32.totalorder %s265, %s268
    %p274 = scmp.eq.s32.totalorder %s29, 0
    %p275 = por %p273, %p274
    %p276 = scmp.ne.s32.totalorder %s265, %s268
    %p277 = scmp.eq.s32.totalorder %s34, 3
    %p278 = por %p276, %p277
    %p279 = scmp.ne.s32.totalorder %s268, %s269
    %p280 = scmp.eq.s32.totalorder %s34, 0
    %p281 = por %p279, %p280
    %p282 = scmp.ne.s32.totalorder %s268, %s269
    %p283 = scmp.eq.s32.totalorder %s35, 3
    %p284 = por %p282, %p283
    %p286 = scmp.ne.s32.totalorder %s269, %s285
    %p287 = scmp.eq.s32.totalorder %s35, 0
    %p288 = por %p286, %p287
    %s289 = ssub.s32 %s37, %s44
    %p290 = scmp.eq.s32.totalorder %s289, 0
    %s292 = sadd.s32 %s291, 1
    %s293 = scalar_select %p290, %s291, %s292
    %p296 = pneg %p290
    %p297 = scmp.eq.s32.totalorder %s29, 3
    %p298 = por %p296, %p297
    %p299 = scmp.ne.s32.totalorder %s291, %s294
    %p300 = scmp.eq.s32.totalorder %s29, 0
    %p301 = por %p299, %p300
    %p302 = scmp.ne.s32.totalorder %s291, %s294
    %p303 = scmp.eq.s32.totalorder %s34, 3
    %p304 = por %p302, %p303
    %p305 = scmp.ne.s32.totalorder %s294, %s295
    %p306 = scmp.eq.s32.totalorder %s34, 0
    %p307 = por %p305, %p306
    %p308 = scmp.ne.s32.totalorder %s294, %s295
    %p309 = scmp.eq.s32.totalorder %s35, 3
    %p310 = por %p308, %p309
    %p312 = scmp.ne.s32.totalorder %s295, %s311
    %p313 = scmp.eq.s32.totalorder %s35, 0
    %p314 = por %p312, %p313
    %s315 = ssub.s32 %s37, %s44
    %p316 = scmp.eq.s32.totalorder %s315, 0
    %s318 = sadd.s32 %s317, 1
    %s319 = scalar_select %p316, %s317, %s318
    %p322 = pneg %p316
    %p323 = scmp.eq.s32.totalorder %s29, 3
    %p324 = por %p322, %p323
    %p325 = scmp.ne.s32.totalorder %s317, %s320
    %p326 = scmp.eq.s32.totalorder %s29, 0
    %p327 = por %p325, %p326
    %p328 = scmp.ne.s32.totalorder %s317, %s320
    %p329 = scmp.eq.s32.totalorder %s34, 3
    %p330 = por %p328, %p329
    %p331 = scmp.ne.s32.totalorder %s320, %s321
    %p332 = scmp.eq.s32.totalorder %s34, 0
    %p333 = por %p331, %p332
    %p334 = scmp.ne.s32.totalorder %s320, %s321
    %p335 = scmp.eq.s32.totalorder %s35, 3
    %p336 = por %p334, %p335
    %p338 = scmp.ne.s32.totalorder %s321, %s337
    %p339 = scmp.eq.s32.totalorder %s35, 0
    %p340 = por %p338, %p339
    %s341 = ssub.s32 %s37, %s44
    %p342 = scmp.eq.s32.totalorder %s341, 0
    %s344 = sadd.s32 %s343, 1
    %s345 = scalar_select %p342, %s343, %s344
    %p348 = pneg %p342
    %p349 = scmp.eq.s32.totalorder %s29, 3
    %p350 = por %p348, %p349
    %p351 = scmp.ne.s32.totalorder %s343, %s346
    %p352 = scmp.eq.s32.totalorder %s29, 0
    %p353 = por %p351, %p352
    %p354 = scmp.ne.s32.totalorder %s343, %s346
    %p355 = scmp.eq.s32.totalorder %s34, 3
    %p356 = por %p354, %p355
    %p357 = scmp.ne.s32.totalorder %s346, %s347
    %p358 = scmp.eq.s32.totalorder %s34, 0
    %p359 = por %p357, %p358
    %p360 = scmp.ne.s32.totalorder %s346, %s347
    %p361 = scmp.eq.s32.totalorder %s35, 3
    %p362 = por %p360, %p361
    %p364 = scmp.ne.s32.totalorder %s347, %s363
    %p365 = scmp.eq.s32.totalorder %s35, 0
    %p366 = por %p364, %p365
    %s367 = ssub.s32 %s37, %s44
    %p368 = scmp.eq.s32.totalorder %s367, 0
    %s370 = sadd.s32 %s369, 1
    %s371 = scalar_select %p368, %s369, %s370
    %p374 = pneg %p368
    %p375 = scmp.eq.s32.totalorder %s29, 3
    %p376 = por %p374, %p375
    %p377 = scmp.ne.s32.totalorder %s369, %s372
    %p378 = scmp.eq.s32.totalorder %s29, 0
    %p379 = por %p377, %p378
    %p380 = scmp.ne.s32.totalorder %s369, %s372
    %p381 = scmp.eq.s32.totalorder %s34, 3
    %p382 = por %p380, %p381
    %p383 = scmp.ne.s32.totalorder %s372, %s373
    %p384 = scmp.eq.s32.totalorder %s34, 0
    %p385 = por %p383, %p384
    %p386 = scmp.ne.s32.totalorder %s372, %s373
    %p387 = scmp.eq.s32.totalorder %s35, 3
    %p388 = por %p386, %p387
    %p390 = scmp.ne.s32.totalorder %s373, %s389
    %p391 = scmp.eq.s32.totalorder %s35, 0
    %p392 = por %p390, %p391
    %s393 = ssub.s32 %s37, %s44
    %p394 = scmp.eq.s32.totalorder %s393, 0
    %s396 = sadd.s32 %s395, 1
    %s397 = scalar_select %p394, %s395, %s396
    %p400 = pneg %p394
    %p401 = scmp.eq.s32.totalorder %s29, 3
    %p402 = por %p400, %p401
    %p403 = scmp.ne.s32.totalorder %s395, %s398
    %p404 = scmp.eq.s32.totalorder %s29, 0
    %p405 = por %p403, %p404
    %p406 = scmp.ne.s32.totalorder %s395, %s398
    %p407 = scmp.eq.s32.totalorder %s34, 3
    %p408 = por %p406, %p407
    %p409 = scmp.ne.s32.totalorder %s398, %s399
    %p410 = scmp.eq.s32.totalorder %s34, 0
    %p411 = por %p409, %p410
    %p412 = scmp.ne.s32.totalorder %s398, %s399
    %p413 = scmp.eq.s32.totalorder %s35, 3
    %p414 = por %p412, %p413
    %p416 = scmp.ne.s32.totalorder %s399, %s415
    %p417 = scmp.eq.s32.totalorder %s35, 0
    %p418 = por %p416, %p417
    %s419 = ssub.s32 %s37, %s44
    %p420 = scmp.eq.s32.totalorder %s419, 0
    %s422 = sadd.s32 %s421, 1
    %s423 = scalar_select %p420, %s421, %s422
    %p426 = pneg %p420
    %p427 = scmp.eq.s32.totalorder %s29, 3
    %p428 = por %p426, %p427
    %p429 = scmp.ne.s32.totalorder %s421, %s424
    %p430 = scmp.eq.s32.totalorder %s29, 0
    %p431 = por %p429, %p430
    %p432 = scmp.ne.s32.totalorder %s421, %s424
    %p433 = scmp.eq.s32.totalorder %s34, 3
    %p434 = por %p432, %p433
    %p435 = scmp.ne.s32.totalorder %s424, %s425
    %p436 = scmp.eq.s32.totalorder %s34, 0
    %p437 = por %p435, %p436
    %p438 = scmp.ne.s32.totalorder %s424, %s425
    %p439 = scmp.eq.s32.totalorder %s35, 3
    %p440 = por %p438, %p439
    %p442 = scmp.ne.s32.totalorder %s425, %s441
    %p443 = scmp.eq.s32.totalorder %s35, 0
    %p444 = por %p442, %p443
    %s445 = ssub.s32 %s37, %s44
    %p446 = scmp.eq.s32.totalorder %s445, 0
    %s448 = sadd.s32 %s447, 1
    %s449 = scalar_select %p446, %s447, %s448
    %p452 = pneg %p446
    %p453 = scmp.eq.s32.totalorder %s29, 3
    %p454 = por %p452, %p453
    %p455 = scmp.ne.s32.totalorder %s447, %s450
    %p456 = scmp.eq.s32.totalorder %s29, 0
    %p457 = por %p455, %p456
    %p458 = scmp.ne.s32.totalorder %s447, %s450
    %p459 = scmp.eq.s32.totalorder %s34, 3
    %p460 = por %p458, %p459
    %p461 = scmp.ne.s32.totalorder %s450, %s451
    %p462 = scmp.eq.s32.totalorder %s34, 0
    %p463 = por %p461, %p462
    %p464 = scmp.ne.s32.totalorder %s450, %s451
    %p465 = scmp.eq.s32.totalorder %s35, 3
    %p466 = por %p464, %p465
    %p468 = scmp.ne.s32.totalorder %s451, %s467
    %p469 = scmp.eq.s32.totalorder %s35, 0
    %p470 = por %p468, %p469
    %s472 = sadd.s32 %s471, 1
    %p475 = scmp.eq.s32.totalorder %s29, 3
    %p476 = scmp.ne.s32.totalorder %s471, %s473
    %p477 = scmp.eq.s32.totalorder %s29, 0
    %p478 = por %p476, %p477
    %p479 = scmp.ne.s32.totalorder %s471, %s473
    %p480 = scmp.eq.s32.totalorder %s34, 3
    %p481 = por %p479, %p480
    %p482 = scmp.ne.s32.totalorder %s473, %s474
    %p483 = scmp.eq.s32.totalorder %s34, 0
    %p484 = por %p482, %p483
    %p485 = scmp.ne.s32.totalorder %s473, %s474
    %p486 = scmp.eq.s32.totalorder %s35, 3
    %p487 = por %p485, %p486
    %p489 = scmp.ne.s32.totalorder %s474, %s488
    %p490 = scmp.eq.s32.totalorder %s35, 0
    %p491 = por %p489, %p490
    %s493 = sadd.s32 %s492, 1
    %p496 = scmp.eq.s32.totalorder %s29, 3
    %p497 = scmp.ne.s32.totalorder %s492, %s494
    %p498 = scmp.eq.s32.totalorder %s29, 0
    %p499 = por %p497, %p498
    %p500 = scmp.ne.s32.totalorder %s492, %s494
    %p501 = scmp.eq.s32.totalorder %s34, 3
    %p502 = por %p500, %p501
    %p503 = scmp.ne.s32.totalorder %s494, %s495
    %p504 = scmp.eq.s32.totalorder %s34, 0
    %p505 = por %p503, %p504
    %p506 = scmp.ne.s32.totalorder %s494, %s495
    %p507 = scmp.eq.s32.totalorder %s35, 3
    %p508 = por %p506, %p507
    %p510 = scmp.ne.s32.totalorder %s495, %s509
    %p511 = scmp.eq.s32.totalorder %s35, 0
    %p512 = por %p510, %p511
    %s514 = sadd.s32 %s513, 1
    %p517 = scmp.eq.s32.totalorder %s29, 3
    %p518 = scmp.ne.s32.totalorder %s513, %s515
    %p519 = scmp.eq.s32.totalorder %s29, 0
    %p520 = por %p518, %p519
    %p521 = scmp.ne.s32.totalorder %s513, %s515
    %p522 = scmp.eq.s32.totalorder %s34, 3
    %p523 = por %p521, %p522
    %p524 = scmp.ne.s32.totalorder %s515, %s516
    %p525 = scmp.eq.s32.totalorder %s34, 0
    %p526 = por %p524, %p525
    %p527 = scmp.ne.s32.totalorder %s515, %s516
    %p528 = scmp.eq.s32.totalorder %s35, 3
    %p529 = por %p527, %p528
    %p531 = scmp.ne.s32.totalorder %s516, %s530
    %p532 = scmp.eq.s32.totalorder %s35, 0
    %p533 = por %p531, %p532
    %s535 = sadd.s32 %s534, 1
    %p538 = scmp.eq.s32.totalorder %s29, 3
    %p539 = scmp.ne.s32.totalorder %s534, %s536
    %p540 = scmp.eq.s32.totalorder %s29, 0
    %p541 = por %p539, %p540
    %p542 = scmp.ne.s32.totalorder %s534, %s536
    %p543 = scmp.eq.s32.totalorder %s34, 3
    %p544 = por %p542, %p543
    %p545 = scmp.ne.s32.totalorder %s536, %s537
    %p546 = scmp.eq.s32.totalorder %s34, 0
    %p547 = por %p545, %p546
    %p548 = scmp.ne.s32.totalorder %s536, %s537
    %p549 = scmp.eq.s32.totalorder %s35, 3
    %p550 = por %p548, %p549
    %p552 = scmp.ne.s32.totalorder %s537, %s551
    %p553 = scmp.eq.s32.totalorder %s35, 0
    %p554 = por %p552, %p553
    %s556 = sadd.s32 %s555, 1
    %p559 = scmp.eq.s32.totalorder %s29, 3
    %p560 = scmp.ne.s32.totalorder %s555, %s557
    %p561 = scmp.eq.s32.totalorder %s29, 0
    %p562 = por %p560, %p561
    %p563 = scmp.ne.s32.totalorder %s555, %s557
    %p564 = scmp.eq.s32.totalorder %s34, 3
    %p565 = por %p563, %p564
    %p566 = scmp.ne.s32.totalorder %s557, %s558
    %p567 = scmp.eq.s32.totalorder %s34, 0
    %p568 = por %p566, %p567
    %p569 = scmp.ne.s32.totalorder %s557, %s558
    %p570 = scmp.eq.s32.totalorder %s35, 3
    %p571 = por %p569, %p570
    %p573 = scmp.ne.s32.totalorder %s558, %s572
    %p574 = scmp.eq.s32.totalorder %s35, 0
    %p575 = por %p573, %p574
    %s577 = sadd.s32 %s576, 1
    %p580 = scmp.eq.s32.totalorder %s29, 3
    %p581 = scmp.ne.s32.totalorder %s576, %s578
    %p582 = scmp.eq.s32.totalorder %s29, 0
    %p583 = por %p581, %p582
    %p584 = scmp.ne.s32.totalorder %s576, %s578
    %p585 = scmp.eq.s32.totalorder %s34, 3
    %p586 = por %p584, %p585
    %p587 = scmp.ne.s32.totalorder %s578, %s579
    %p588 = scmp.eq.s32.totalorder %s34, 0
    %p589 = por %p587, %p588
    %p590 = scmp.ne.s32.totalorder %s578, %s579
    %p591 = scmp.eq.s32.totalorder %s35, 3
    %p592 = por %p590, %p591
    %p594 = scmp.ne.s32.totalorder %s579, %s593
    %p595 = scmp.eq.s32.totalorder %s35, 0
    %p596 = por %p594, %p595
    %s597 = ssub.s32 %s36, %s48
    %p598 = scmp.eq.s32.totalorder %s597, 0
    %s600 = sadd.s32 %s599, 1
    %s601 = scalar_select %p598, %s599, %s600
    %p604 = pneg %p598
    %p605 = scmp.eq.s32.totalorder %s29, 3
    %p606 = por %p604, %p605
    %p607 = scmp.ne.s32.totalorder %s599, %s602
    %p608 = scmp.eq.s32.totalorder %s29, 0
    %p609 = por %p607, %p608
    %p610 = scmp.ne.s32.totalorder %s599, %s602
    %p611 = scmp.eq.s32.totalorder %s34, 3
    %p612 = por %p610, %p611
    %p613 = scmp.ne.s32.totalorder %s602, %s603
    %p614 = scmp.eq.s32.totalorder %s34, 0
    %p615 = por %p613, %p614
    %p616 = scmp.ne.s32.totalorder %s602, %s603
    %p617 = scmp.eq.s32.totalorder %s35, 3
    %p618 = por %p616, %p617
    %p620 = scmp.ne.s32.totalorder %s603, %s619
    %p621 = scmp.eq.s32.totalorder %s35, 0
    %p622 = por %p620, %p621
    %p623 = scmp.le.s32.totalorder 1, %s29
    %p624 = scmp.lt.s32.totalorder %s29, 5
    %p625 = pnand %p623, %p624
    %p626 = pneg %p625
    // Predicated region
    $region9: #{mae_forward.1} parent=5 // pred_check
      _
    $region10: #{mae_forward.1} parent=5 // pred_check_branch
      %628 = sbr.rel (%p625) target = $region12
    $region11: #{mae_forward.1} parent=5 // pred_region
      %s629 = ssub.s32 %s29, 1
      // Predicated region
      $region13: #{mae_forward.1} parent=11 // pred_check
        %p630 = pneg %p88
      $region14: #{mae_forward.1} parent=11 // pred_check_branch
        %632 = sbr.rel (%p630) target = $region16
      $region15: #{mae_forward.1} parent=11 // pred_region
        _
      $region16: #{mae_forward.1} parent=11 // pred_fallthru
        _
      // Predicated region
      $region17: #{mae_forward.1} parent=11 // pred_check
        %p633 = pneg %p109
      $region18: #{mae_forward.1} parent=11 // pred_check_branch
        %635 = sbr.rel (%p633) target = $region20
      $region19: #{mae_forward.1} parent=11 // pred_region
        _
      $region20: #{mae_forward.1} parent=11 // pred_fallthru
        _
      // Predicated region
      $region21: #{mae_forward.1} parent=11 // pred_check
        %p636 = pneg %p130
      $region22: #{mae_forward.1} parent=11 // pred_check_branch
        %638 = sbr.rel (%p636) target = $region24
      $region23: #{mae_forward.1} parent=11 // pred_region
        _
      $region24: #{mae_forward.1} parent=11 // pred_fallthru
        _
      // Predicated region
      $region25: #{mae_forward.1} parent=11 // pred_check
        %p639 = pneg %p151
      $region26: #{mae_forward.1} parent=11 // pred_check_branch
        %641 = sbr.rel (%p639) target = $region28
      $region27: #{mae_forward.1} parent=11 // pred_region
        _
      $region28: #{mae_forward.1} parent=11 // pred_fallthru
        _
      // Predicated region
      $region29: #{mae_forward.1} parent=11 // pred_check
        %p642 = pneg %p484
      $region30: #{mae_forward.1} parent=11 // pred_check_branch
        %644 = sbr.rel (%p642) target = $region32
      $region31: #{mae_forward.1} parent=11 // pred_region
        _
      $region32: #{mae_forward.1} parent=11 // pred_fallthru
        _
      // Predicated region
      $region33: #{mae_forward.1} parent=11 // pred_check
        %p645 = pneg %p505
      $region34: #{mae_forward.1} parent=11 // pred_check_branch
        %647 = sbr.rel (%p645) target = $region36
      $region35: #{mae_forward.1} parent=11 // pred_region
        _
      $region36: #{mae_forward.1} parent=11 // pred_fallthru
        _
      // Predicated region
      $region37: #{mae_forward.1} parent=11 // pred_check
        %p648 = pneg %p526
      $region38: #{mae_forward.1} parent=11 // pred_check_branch
        %650 = sbr.rel (%p648) target = $region40
      $region39: #{mae_forward.1} parent=11 // pred_region
        _
      $region40: #{mae_forward.1} parent=11 // pred_fallthru
        _
      // Predicated region
      $region41: #{mae_forward.1} parent=11 // pred_check
        %p651 = pneg %p547
      $region42: #{mae_forward.1} parent=11 // pred_check_branch
        %653 = sbr.rel (%p651) target = $region44
      $region43: #{mae_forward.1} parent=11 // pred_region
        _
      $region44: #{mae_forward.1} parent=11 // pred_fallthru
        _
      // Predicated region
      $region45: #{mae_forward.1} parent=11 // pred_check
        %p654 = pneg %p568
      $region46: #{mae_forward.1} parent=11 // pred_check_branch
        %656 = sbr.rel (%p654) target = $region48
      $region47: #{mae_forward.1} parent=11 // pred_region
        _
      $region48: #{mae_forward.1} parent=11 // pred_fallthru
        _
      // Predicated region
      $region49: #{mae_forward.1} parent=11 // pred_check
        %p657 = pneg %p589
      $region50: #{mae_forward.1} parent=11 // pred_check_branch
        %659 = sbr.rel (%p657) target = $region52
      $region51: #{mae_forward.1} parent=11 // pred_region
        _
      $region52: #{mae_forward.1} parent=11 // pred_fallthru
        _
    $region12: #{mae_forward.1} parent=5 // pred_fallthru
      _
    %p660 = scmp.lt.s32.totalorder %s29, 4
    // Predicated region
    $region53: #{mae_forward.1} parent=5 // pred_check
      %p661 = pneg %p660
    $region54: #{mae_forward.1} parent=5 // pred_check_branch
      %663 = sbr.rel (%p661) target = $region56
    $region55: #{mae_forward.1} parent=5 // pred_region
      // Predicated region
      $region57: #{mae_forward.1} parent=55 // pred_check
        %p664 = pneg %p61
      $region58: #{mae_forward.1} parent=55 // pred_check_branch
        %666 = sbr.rel (%p664) target = $region60
      $region59: #{mae_forward.1} parent=55 // pred_region
        %p667 = scmp.lt.s32.totalorder %s36, 1
        %s668 = scalar_select %p667, %s36, 1
        %s669 = smul.addr %s668, 20
        %s670 = smul.addr %s669, 8
        %s671 = scalar_lea.vmem %s0, %s670
      $region60: #{mae_forward.1} parent=55 // pred_fallthru
        _
      // Predicated region
      $region61: #{mae_forward.1} parent=55 // pred_check
        %p672 = pneg %p171
      $region62: #{mae_forward.1} parent=55 // pred_check_branch
        %674 = sbr.rel (%p672) target = $region64
      $region63: #{mae_forward.1} parent=55 // pred_region
        %p675 = scmp.lt.s32.totalorder %s37, 1
        %s676 = scalar_select %p675, %s37, 1
        %s677 = scalar_lea.vmem %s5, %s676
      $region64: #{mae_forward.1} parent=55 // pred_fallthru
        _
      // Predicated region
      $region65: #{mae_forward.1} parent=55 // pred_check
        %p678 = pneg %p197
      $region66: #{mae_forward.1} parent=55 // pred_check_branch
        %680 = sbr.rel (%p678) target = $region68
      $region67: #{mae_forward.1} parent=55 // pred_region
        %p681 = scmp.lt.s32.totalorder %s37, 1
        %s682 = scalar_select %p681, %s37, 1
        %s683 = scalar_lea.vmem %s6, %s682
      $region68: #{mae_forward.1} parent=55 // pred_fallthru
        _
      // Predicated region
      $region69: #{mae_forward.1} parent=55 // pred_check
        %p684 = pneg %p223
      $region70: #{mae_forward.1} parent=55 // pred_check_branch
        %686 = sbr.rel (%p684) target = $region72
      $region71: #{mae_forward.1} parent=55 // pred_region
        %p687 = scmp.lt.s32.totalorder %s37, 1
        %s688 = scalar_select %p687, %s37, 1
        %s689 = smul.addr %s688, 48
        %s690 = smul.addr %s689, 4
        %s691 = scalar_lea.vmem %s7, %s690
      $region72: #{mae_forward.1} parent=55 // pred_fallthru
        _
      // Predicated region
      $region73: #{mae_forward.1} parent=55 // pred_check
        %p692 = pneg %p249
      $region74: #{mae_forward.1} parent=55 // pred_check_branch
        %694 = sbr.rel (%p692) target = $region76
      $region75: #{mae_forward.1} parent=55 // pred_region
        %p695 = scmp.lt.s32.totalorder %s37, 1
        %s696 = scalar_select %p695, %s37, 1
        %s697 = smul.addr %s696, 3
        %s698 = scalar_lea.vmem %s8, %s697
      $region76: #{mae_forward.1} parent=55 // pred_fallthru
        _
      // Predicated region
      $region77: #{mae_forward.1} parent=55 // pred_check
        %p699 = pneg %p275
      $region78: #{mae_forward.1} parent=55 // pred_check_branch
        %701 = sbr.rel (%p699) target = $region80
      $region79: #{mae_forward.1} parent=55 // pred_region
        %p702 = scmp.lt.s32.totalorder %s37, 1
        %s703 = scalar_select %p702, %s37, 1
        %s704 = smul.addr %s703, 16
        %s705 = smul.addr %s704, 4
        %s706 = scalar_lea.vmem %s9, %s705
      $region80: #{mae_forward.1} parent=55 // pred_fallthru
        _
      // Predicated region
      $region81: #{mae_forward.1} parent=55 // pred_check
        %p707 = pneg %p301
      $region82: #{mae_forward.1} parent=55 // pred_check_branch
        %709 = sbr.rel (%p707) target = $region84
      $region83: #{mae_forward.1} parent=55 // pred_region
        %p710 = scmp.lt.s32.totalorder %s37, 1
        %s711 = scalar_select %p710, %s37, 1
        %s712 = scalar_lea.vmem %s10, %s711
      $region84: #{mae_forward.1} parent=55 // pred_fallthru
        _
      // Predicated region
      $region85: #{mae_forward.1} parent=55 // pred_check
        %p713 = pneg %p327
      $region86: #{mae_forward.1} parent=55 // pred_check_branch
        %715 = sbr.rel (%p713) target = $region88
      $region87: #{mae_forward.1} parent=55 // pred_region
        %p716 = scmp.lt.s32.totalorder %s37, 1
        %s717 = scalar_select %p716, %s37, 1
        %s718 = scalar_lea.vmem %s11, %s717
      $region88: #{mae_forward.1} parent=55 // pred_fallthru
        _
      // Predicated region
      $region89: #{mae_forward.1} parent=55 // pred_check
        %p719 = pneg %p353
      $region90: #{mae_forward.1} parent=55 // pred_check_branch
        %721 = sbr.rel (%p719) target = $region92
      $region91: #{mae_forward.1} parent=55 // pred_region
        %p722 = scmp.lt.s32.totalorder %s37, 1
        %s723 = scalar_select %p722, %s37, 1
        %s724 = scalar_lea.vmem %s12, %s723
      $region92: #{mae_forward.1} parent=55 // pred_fallthru
        _
      // Predicated region
      $region93: #{mae_forward.1} parent=55 // pred_check
        %p725 = pneg %p379
      $region94: #{mae_forward.1} parent=55 // pred_check_branch
        %727 = sbr.rel (%p725) target = $region96
      $region95: #{mae_forward.1} parent=55 // pred_region
        %p728 = scmp.lt.s32.totalorder %s37, 1
        %s729 = scalar_select %p728, %s37, 1
        %s730 = smul.addr %s729, 64
        %s731 = smul.addr %s730, 4
        %s732 = scalar_lea.vmem %s13, %s731
      $region96: #{mae_forward.1} parent=55 // pred_fallthru
        _
      // Predicated region
      $region97: #{mae_forward.1} parent=55 // pred_check
        %p733 = pneg %p405
      $region98: #{mae_forward.1} parent=55 // pred_check_branch
        %735 = sbr.rel (%p733) target = $region100
      $region99: #{mae_forward.1} parent=55 // pred_region
        %p736 = scmp.lt.s32.totalorder %s37, 1
        %s737 = scalar_select %p736, %s37, 1
        %s738 = smul.addr %s737, 4
        %s739 = scalar_lea.vmem %s14, %s738
      $region100: #{mae_forward.1} parent=55 // pred_fallthru
        _
      // Predicated region
      $region101: #{mae_forward.1} parent=55 // pred_check
        %p740 = pneg %p431
      $region102: #{mae_forward.1} parent=55 // pred_check_branch
        %742 = sbr.rel (%p740) target = $region104
      $region103: #{mae_forward.1} parent=55 // pred_region
        %p743 = scmp.lt.s32.totalorder %s37, 1
        %s744 = scalar_select %p743, %s37, 1
        %s745 = smul.addr %s744, 64
        %s746 = smul.addr %s745, 4
        %s747 = scalar_lea.vmem %s15, %s746
      $region104: #{mae_forward.1} parent=55 // pred_fallthru
        _
      // Predicated region
      $region105: #{mae_forward.1} parent=55 // pred_check
        %p748 = pneg %p457
      $region106: #{mae_forward.1} parent=55 // pred_check_branch
        %750 = sbr.rel (%p748) target = $region108
      $region107: #{mae_forward.1} parent=55 // pred_region
        %p751 = scmp.lt.s32.totalorder %s37, 1
        %s752 = scalar_select %p751, %s37, 1
        %s753 = scalar_lea.vmem %s16, %s752
      $region108: #{mae_forward.1} parent=55 // pred_fallthru
        _
    $region56: #{mae_forward.1} parent=5 // pred_fallthru
      _
    %p754 = scmp.le.s32.totalorder 1, %s29
    %p755 = scmp.lt.s32.totalorder %s29, 5
    %p756 = pnand %p754, %p755
    %p757 = pneg %p756
    // Predicated region
    $region109: #{mae_forward.1} parent=5 // pred_check
      _
    $region110: #{mae_forward.1} parent=5 // pred_check_branch
      %759 = sbr.rel (%p756) target = $region112
    $region111: #{mae_forward.1} parent=5 // pred_region
      %s760 = ssub.s32 %s29, 1
      %p761 = scmp.lt.s32.totalorder %s38, 1
      %s762 = scalar_select %p761, %s38, 1
      %s763 = smul.addr %s762, 20
      %s764 = smul.addr %s763, 8
      %s765 = scalar_lea.vmem %s0, %s764
      %p766 = pneg %p67
      %p767 = pneg %p64
      %p768 = pneg %p88
      %p769 = pneg %p85
      %p770 = pneg %p109
      %p771 = pneg %p106
      %p772 = pneg %p130
      %p773 = pneg %p127
      %p774 = pneg %p151
      %p775 = pneg %p148
      %p776 = scmp.lt.s32.totalorder %s39, 1
      %s777 = scalar_select %p776, %s39, 1
      %s778 = scalar_lea.vmem %s5, %s777
      %p779 = pneg %p177
      %p780 = pneg %p174
      %p781 = scmp.lt.s32.totalorder %s39, 1
      %s782 = scalar_select %p781, %s39, 1
      %s783 = scalar_lea.vmem %s6, %s782
      %p784 = pneg %p203
      %p785 = pneg %p200
      %p786 = scmp.lt.s32.totalorder %s39, 1
      %s787 = scalar_select %p786, %s39, 1
      %s788 = smul.addr %s787, 48
      %s789 = smul.addr %s788, 4
      %s790 = scalar_lea.vmem %s7, %s789
      %p791 = pneg %p229
      %p792 = pneg %p226
      %p793 = scmp.lt.s32.totalorder %s39, 1
      %s794 = scalar_select %p793, %s39, 1
      %s795 = smul.addr %s794, 3
      %s796 = scalar_lea.vmem %s8, %s795
      %p797 = pneg %p255
      %p798 = pneg %p252
      %p799 = scmp.lt.s32.totalorder %s39, 1
      %s800 = scalar_select %p799, %s39, 1
      %s801 = smul.addr %s800, 16
      %s802 = smul.addr %s801, 4
      %s803 = scalar_lea.vmem %s9, %s802
      %p804 = pneg %p281
      %p805 = pneg %p278
      %p806 = scmp.lt.s32.totalorder %s39, 1
      %s807 = scalar_select %p806, %s39, 1
      %s808 = scalar_lea.vmem %s10, %s807
      %p809 = pneg %p307
      %p810 = pneg %p304
      %p811 = scmp.lt.s32.totalorder %s39, 1
      %s812 = scalar_select %p811, %s39, 1
      %s813 = scalar_lea.vmem %s11, %s812
      %p814 = pneg %p333
      %p815 = pneg %p330
      %p816 = scmp.lt.s32.totalorder %s39, 1
      %s817 = scalar_select %p816, %s39, 1
      %s818 = scalar_lea.vmem %s12, %s817
      %p819 = pneg %p359
      %p820 = pneg %p356
      %p821 = scmp.lt.s32.totalorder %s39, 1
      %s822 = scalar_select %p821, %s39, 1
      %s823 = smul.addr %s822, 64
      %s824 = smul.addr %s823, 4
      %s825 = scalar_lea.vmem %s13, %s824
      %p826 = pneg %p385
      %p827 = pneg %p382
      %p828 = scmp.lt.s32.totalorder %s39, 1
      %s829 = scalar_select %p828, %s39, 1
      %s830 = smul.addr %s829, 4
      %s831 = scalar_lea.vmem %s14, %s830
      %p832 = pneg %p411
      %p833 = pneg %p408
      %p834 = scmp.lt.s32.totalorder %s39, 1
      %s835 = scalar_select %p834, %s39, 1
      %s836 = smul.addr %s835, 64
      %s837 = smul.addr %s836, 4
      %s838 = scalar_lea.vmem %s15, %s837
      %p839 = pneg %p437
      %p840 = pneg %p434
      %p841 = scmp.lt.s32.totalorder %s39, 1
      %s842 = scalar_select %p841, %s39, 1
      %s843 = scalar_lea.vmem %s16, %s842
      %p844 = pneg %p463
      %p845 = pneg %p460
      %p846 = pneg %p484
      %p847 = pneg %p481
      %p848 = pneg %p505
      %p849 = pneg %p502
      %p850 = pneg %p526
      %p851 = pneg %p523
      %p852 = pneg %p547
      %p853 = pneg %p544
      %p854 = pneg %p568
      %p855 = pneg %p565
      %p856 = pneg %p589
      %p857 = pneg %p586
      %p858 = pneg %p615
      %p859 = pneg %p612
      %p860 = scmp.lt.s32.totalorder %s38, 1
      %s861 = scalar_select %p860, %s38, 1
      %s862 = smul.addr %s861, 16
      %s863 = smul.addr %s862, 8
      %s864 = scalar_lea.vmem %s23, %s863
      %p865 = scmp.lt.s32.totalorder %s38, 1
      %s866 = scalar_select %p865, %s38, 1
      %s867 = smul.addr %s866, 20
      %s868 = smul.addr %s867, 8
      %s869 = scalar_lea.vmem %s0, %s868
      %p870 = scmp.lt.s32.totalorder %s39, 1
      %s871 = scalar_select %p870, %s39, 1
      %s872 = scalar_lea.vmem %s5, %s871
      %p873 = scmp.lt.s32.totalorder %s39, 1
      %s874 = scalar_select %p873, %s39, 1
      %s875 = scalar_lea.vmem %s6, %s874
      %p876 = scmp.lt.s32.totalorder %s39, 1
      %s877 = scalar_select %p876, %s39, 1
      %s878 = smul.addr %s877, 48
      %s879 = smul.addr %s878, 4
      %s880 = scalar_lea.vmem %s7, %s879
      %p881 = scmp.lt.s32.totalorder %s39, 1
      %s882 = scalar_select %p881, %s39, 1
      %s883 = smul.addr %s882, 3
      %s884 = scalar_lea.vmem %s8, %s883
      %p885 = scmp.lt.s32.totalorder %s39, 1
      %s886 = scalar_select %p885, %s39, 1
      %s887 = smul.addr %s886, 16
      %s888 = smul.addr %s887, 4
      %s889 = scalar_lea.vmem %s9, %s888
      %p890 = scmp.lt.s32.totalorder %s39, 1
      %s891 = scalar_select %p890, %s39, 1
      %s892 = scalar_lea.vmem %s10, %s891
      %p893 = scmp.lt.s32.totalorder %s39, 1
      %s894 = scalar_select %p893, %s39, 1
      %s895 = scalar_lea.vmem %s11, %s894
      %p896 = scmp.lt.s32.totalorder %s39, 1
      %s897 = scalar_select %p896, %s39, 1
      %s898 = scalar_lea.vmem %s12, %s897
      %p899 = scmp.lt.s32.totalorder %s39, 1
      %s900 = scalar_select %p899, %s39, 1
      %s901 = smul.addr %s900, 64
      %s902 = smul.addr %s901, 4
      %s903 = scalar_lea.vmem %s13, %s902
      %p904 = scmp.lt.s32.totalorder %s39, 1
      %s905 = scalar_select %p904, %s39, 1
      %s906 = smul.addr %s905, 4
      %s907 = scalar_lea.vmem %s14, %s906
      %p908 = scmp.lt.s32.totalorder %s39, 1
      %s909 = scalar_select %p908, %s39, 1
      %s910 = smul.addr %s909, 64
      %s911 = smul.addr %s910, 4
      %s912 = scalar_lea.vmem %s15, %s911
      %p913 = scmp.lt.s32.totalorder %s39, 1
      %s914 = scalar_select %p913, %s39, 1
      %s915 = scalar_lea.vmem %s16, %s914
      %p916 = scmp.lt.s32.totalorder %s38, 1
      %s917 = scalar_select %p916, %s38, 1
      %s918 = smul.addr %s917, 16
      %s919 = smul.addr %s918, 8
      %s920 = scalar_lea.vmem %s23, %s919
      %p922 = scmp.eq.s32.totalorder %s39, 0
      // Predicated region
      $region113: #{mae_forward.1} parent=111 // pred_check
        %p923 = pneg %p922
      $region114: #{mae_forward.1} parent=111 // pred_check_branch
        %925 = sbr.rel (%p923) target = $region116
      $region115: #{mae_forward.1} parent=111 // pred_region
        %v926 = vld [vmem:[%s869] sm:$0xff]
        %v927 = vld [vmem:[%s869 + $0x8] sm:$0xff]
        %v928 = vld [vmem:[%s869 + $0x10] sm:$0xff]
        %v929 = vld [vmem:[%s869 + $0x18] sm:$0xff]
        %v930 = vld [vmem:[%s869 + $0x20] sm:$0xff]
        %v931 = vld [vmem:[%s869 + $0x28] sm:$0xff]
        %v932 = vld [vmem:[%s869 + $0x30] sm:$0xff]
        %v933 = vld [vmem:[%s869 + $0x38] sm:$0xff]
        %v934 = vld [vmem:[%s869 + $0x40] sm:$0xff]
        %v935 = vld [vmem:[%s869 + $0x48] sm:$0xff]
        %v936 = vld [vmem:[%s869 + $0x50] sm:$0xff]
        %v937 = vld [vmem:[%s869 + $0x58] sm:$0xff]
        %v938 = vld [vmem:[%s869 + $0x60] sm:$0xff]
        %v939 = vld [vmem:[%s869 + $0x68] sm:$0xff]
        %v940 = vld [vmem:[%s869 + $0x70] sm:$0xff]
        %v941 = vld [vmem:[%s869 + $0x78] sm:$0xff]
        %v942 = vld [vmem:[%s869 + $0x80] sm:$0xff]
        %v943 = vld [vmem:[%s869 + $0x88] sm:$0xff]
        %v944 = vld [vmem:[%s869 + $0x90] sm:$0xff]
        %v945 = vld [vmem:[%s869 + $0x98] sm:$0xff]
        %v946 = vpack.c.bf16 %v936, %v926
        %v947 = vpack.c.bf16 %v937, %v927
        %v948 = vpack.c.bf16 %v938, %v928
        %v949 = vpack.c.bf16 %v939, %v929
        %v950 = vpack.c.bf16 %v940, %v930
        %v951 = vpack.c.bf16 %v941, %v931
        %v952 = vpack.c.bf16 %v942, %v932
        %v953 = vpack.c.bf16 %v943, %v933
        %v954 = vpack.c.bf16 %v944, %v934
        %v955 = vpack.c.bf16 %v945, %v935
        %v956 = vld [vmem:[%s1] sm:$0xf]
        %v957 = vld [vmem:[%s1 + $0x4] sm:$0xf]
        %v958 = vld [vmem:[%s1 + $0x8] sm:$0xf]
        %v959 = vld [vmem:[%s1 + $0xc] sm:$0xf]
        %v960 = vld [vmem:[%s1 + $0x10] sm:$0xf]
        %v961 = vld [vmem:[%s1 + $0x14] sm:$0xf]
        %v962 = vld [vmem:[%s1 + $0x18] sm:$0xf]
        %v963 = vld [vmem:[%s1 + $0x1c] sm:$0xf]
        %v964 = vld [vmem:[%s1 + $0x20] sm:$0xf]
        %v965 = vld [vmem:[%s1 + $0x24] sm:$0xf]
        %v966 = vld [vmem:[%s1 + $0x28] sm:$0xf]
        %v967 = vld [vmem:[%s1 + $0x2c] sm:$0xf]
        %v968 = vld [vmem:[%s1 + $0x30] sm:$0xf]
        %v969 = vld [vmem:[%s1 + $0x34] sm:$0xf]
        %v970 = vld [vmem:[%s1 + $0x38] sm:$0xf]
        %v971 = vld [vmem:[%s1 + $0x3c] sm:$0xf]
        %v972 = vld [vmem:[%s1 + $0x40] sm:$0xf]
        %v973 = vld [vmem:[%s1 + $0x44] sm:$0xf]
        %v974 = vld [vmem:[%s1 + $0x48] sm:$0xf]
        %v975 = vld [vmem:[%s1 + $0x4c] sm:$0xf]
        %v976 = vld [vmem:[%s1 + $0x50] sm:$0xf]
        %v977 = vld [vmem:[%s1 + $0x54] sm:$0xf]
        %v978 = vld [vmem:[%s1 + $0x58] sm:$0xf]
        %v979 = vld [vmem:[%s1 + $0x5c] sm:$0xf]
        %v980 = vld [vmem:[%s1 + $0x60] sm:$0xf]
        %v981 = vld [vmem:[%s1 + $0x64] sm:$0xf]
        %v982 = vld [vmem:[%s1 + $0x68] sm:$0xf]
        %v983 = vld [vmem:[%s1 + $0x6c] sm:$0xf]
        %v984 = vld [vmem:[%s1 + $0x70] sm:$0xf]
        %v985 = vld [vmem:[%s1 + $0x74] sm:$0xf]
        %v986 = vld [vmem:[%s1 + $0x78] sm:$0xf]
        %v987 = vld [vmem:[%s1 + $0x7c] sm:$0xf]
        %v988 = vld [vmem:[%s1 + $0x80] sm:$0xf]
        %v989 = vld [vmem:[%s1 + $0x84] sm:$0xf]
        %v990 = vld [vmem:[%s1 + $0x88] sm:$0xf]
        %v991 = vld [vmem:[%s1 + $0x8c] sm:$0xf]
        %v992 = vld [vmem:[%s1 + $0x90] sm:$0xf]
        %v993 = vld [vmem:[%s1 + $0x94] sm:$0xf]
        %v994 = vld [vmem:[%s1 + $0x98] sm:$0xf]
        %v995 = vld [vmem:[%s1 + $0x9c] sm:$0xf]
        %v996 = vld [vmem:[%s1 + $0xa0] sm:$0xf]
        %v997 = vld [vmem:[%s1 + $0xa4] sm:$0xf]
        %v998 = vld [vmem:[%s1 + $0xa8] sm:$0xf]
        %v999 = vld [vmem:[%s1 + $0xac] sm:$0xf]
        %v1000 = vld [vmem:[%s1 + $0xb0] sm:$0xf]
        %v1001 = vld [vmem:[%s1 + $0xb4] sm:$0xf]
        %v1002 = vld [vmem:[%s1 + $0xb8] sm:$0xf]
        %v1003 = vld [vmem:[%s1 + $0xbc] sm:$0xf]
        %v1004 = vld [vmem:[%s1 + $0xc0] sm:$0xf]
        %v1005 = vld [vmem:[%s1 + $0xc4] sm:$0xf]
        %v1006 = vld [vmem:[%s1 + $0xc8] sm:$0xf]
        %v1007 = vld [vmem:[%s1 + $0xcc] sm:$0xf]
        %v1008 = vld [vmem:[%s1 + $0xd0] sm:$0xf]
        %v1009 = vld [vmem:[%s1 + $0xd4] sm:$0xf]
        %v1010 = vld [vmem:[%s1 + $0xd8] sm:$0xf]
        %v1011 = vld [vmem:[%s1 + $0xdc] sm:$0xf]
        %v1012 = vld [vmem:[%s1 + $0xe0] sm:$0xf]
        %v1013 = vld [vmem:[%s1 + $0xe4] sm:$0xf]
        %v1014 = vld [vmem:[%s1 + $0xe8] sm:$0xf]
        %v1015 = vld [vmem:[%s1 + $0xec] sm:$0xf]
        %v1016 = vld [vmem:[%s1 + $0xf0] sm:$0xf]
        %v1017 = vld [vmem:[%s1 + $0xf4] sm:$0xf]
        %v1018 = vld [vmem:[%s1 + $0xf8] sm:$0xf]
        %v1019 = vld [vmem:[%s1 + $0xfc] sm:$0xf]
        %v1020 = vld [vmem:[%s1 + $0x100] sm:$0xf]
        %v1021 = vld [vmem:[%s1 + $0x104] sm:$0xf]
        %v1022 = vld [vmem:[%s1 + $0x108] sm:$0xf]
        %v1023 = vld [vmem:[%s1 + $0x10c] sm:$0xf]
        %v1024 = vld [vmem:[%s1 + $0x110] sm:$0xf]
        %v1025 = vld [vmem:[%s1 + $0x114] sm:$0xf]
        %v1026 = vld [vmem:[%s1 + $0x118] sm:$0xf]
        %v1027 = vld [vmem:[%s1 + $0x11c] sm:$0xf]
        %v1028 = vld [vmem:[%s1 + $0x120] sm:$0xf]
        %v1029 = vld [vmem:[%s1 + $0x124] sm:$0xf]
        %v1030 = vld [vmem:[%s1 + $0x128] sm:$0xf]
        %v1031 = vld [vmem:[%s1 + $0x12c] sm:$0xf]
        %v1032 = vld [vmem:[%s1 + $0x130] sm:$0xf]
        %v1033 = vld [vmem:[%s1 + $0x134] sm:$0xf]
        %v1034 = vld [vmem:[%s1 + $0x138] sm:$0xf]
        %v1035 = vld [vmem:[%s1 + $0x13c] sm:$0xf]
        %v1036 = vld [vmem:[%s1 + $0x140] sm:$0xf]
        %v1037 = vld [vmem:[%s1 + $0x144] sm:$0xf]
        %v1038 = vld [vmem:[%s1 + $0x148] sm:$0xf]
        %v1039 = vld [vmem:[%s1 + $0x14c] sm:$0xf]
        %v1040 = vld [vmem:[%s1 + $0x150] sm:$0xf]
        %v1041 = vld [vmem:[%s1 + $0x154] sm:$0xf]
        %v1042 = vld [vmem:[%s1 + $0x158] sm:$0xf]
        %v1043 = vld [vmem:[%s1 + $0x15c] sm:$0xf]
        %v1044 = vld [vmem:[%s1 + $0x160] sm:$0xf]
        %v1045 = vld [vmem:[%s1 + $0x164] sm:$0xf]
        %v1046 = vld [vmem:[%s1 + $0x168] sm:$0xf]
        %v1047 = vld [vmem:[%s1 + $0x16c] sm:$0xf]
        %v1048 = vld [vmem:[%s1 + $0x170] sm:$0xf]
        %v1049 = vld [vmem:[%s1 + $0x174] sm:$0xf]
        %v1050 = vld [vmem:[%s1 + $0x178] sm:$0xf]
        %v1051 = vld [vmem:[%s1 + $0x17c] sm:$0xf]
        %v1052 = vld [vmem:[%s1 + $0x180] sm:$0xf]
        %v1053 = vld [vmem:[%s1 + $0x184] sm:$0xf]
        %v1054 = vld [vmem:[%s1 + $0x188] sm:$0xf]
        %v1055 = vld [vmem:[%s1 + $0x18c] sm:$0xf]
        %v1056 = vld [vmem:[%s1 + $0x190] sm:$0xf]
        %v1057 = vld [vmem:[%s1 + $0x194] sm:$0xf]
        %v1058 = vld [vmem:[%s1 + $0x198] sm:$0xf]
        %v1059 = vld [vmem:[%s1 + $0x19c] sm:$0xf]
        %v1060 = vld [vmem:[%s1 + $0x1a0] sm:$0xf]
        %v1061 = vld [vmem:[%s1 + $0x1a4] sm:$0xf]
        %v1062 = vld [vmem:[%s1 + $0x1a8] sm:$0xf]
        %v1063 = vld [vmem:[%s1 + $0x1ac] sm:$0xf]
        %v1064 = vld [vmem:[%s1 + $0x1b0] sm:$0xf]
        %v1065 = vld [vmem:[%s1 + $0x1b4] sm:$0xf]
        %v1066 = vld [vmem:[%s1 + $0x1b8] sm:$0xf]
        %v1067 = vld [vmem:[%s1 + $0x1bc] sm:$0xf]
        %v1068 = vld [vmem:[%s1 + $0x1c0] sm:$0xf]
        %v1069 = vld [vmem:[%s1 + $0x1c4] sm:$0xf]
        %v1070 = vld [vmem:[%s1 + $0x1c8] sm:$0xf]
        %v1071 = vld [vmem:[%s1 + $0x1cc] sm:$0xf]
        %v1072 = vld [vmem:[%s1 + $0x1d0] sm:$0xf]
        %v1073 = vld [vmem:[%s1 + $0x1d4] sm:$0xf]
        %v1074 = vld [vmem:[%s1 + $0x1d8] sm:$0xf]
        %v1075 = vld [vmem:[%s1 + $0x1dc] sm:$0xf]
        %v1076 = vld [vmem:[%s1 + $0x1e0] sm:$0xf]
        %v1077 = vld [vmem:[%s1 + $0x1e4] sm:$0xf]
        %v1078 = vld [vmem:[%s1 + $0x1e8] sm:$0xf]
        %v1079 = vld [vmem:[%s1 + $0x1ec] sm:$0xf]
        %v1080 = vld [vmem:[%s1 + $0x1f0] sm:$0xf]
        %v1081 = vld [vmem:[%s1 + $0x1f4] sm:$0xf]
        %v1082 = vld [vmem:[%s1 + $0x1f8] sm:$0xf]
        %v1083 = vld [vmem:[%s1 + $0x1fc] sm:$0xf]
        %v1084 = vld [vmem:[%s1 + $0x200] sm:$0xf]
        %v1085 = vld [vmem:[%s1 + $0x204] sm:$0xf]
        %v1086 = vld [vmem:[%s1 + $0x208] sm:$0xf]
        %v1087 = vld [vmem:[%s1 + $0x20c] sm:$0xf]
        %v1088 = vld [vmem:[%s1 + $0x210] sm:$0xf]
        %v1089 = vld [vmem:[%s1 + $0x214] sm:$0xf]
        %v1090 = vld [vmem:[%s1 + $0x218] sm:$0xf]
        %v1091 = vld [vmem:[%s1 + $0x21c] sm:$0xf]
        %v1092 = vld [vmem:[%s1 + $0x220] sm:$0xf]
        %v1093 = vld [vmem:[%s1 + $0x224] sm:$0xf]
        %v1094 = vld [vmem:[%s1 + $0x228] sm:$0xf]
        %v1095 = vld [vmem:[%s1 + $0x22c] sm:$0xf]
        %v1096 = vld [vmem:[%s1 + $0x230] sm:$0xf]
        %v1097 = vld [vmem:[%s1 + $0x234] sm:$0xf]
        %v1098 = vld [vmem:[%s1 + $0x238] sm:$0xf]
        %v1099 = vld [vmem:[%s1 + $0x23c] sm:$0xf]
        %v1100 = vld [vmem:[%s1 + $0x240] sm:$0xf]
        %v1101 = vld [vmem:[%s1 + $0x244] sm:$0xf]
        %v1102 = vld [vmem:[%s1 + $0x248] sm:$0xf]
        %v1103 = vld [vmem:[%s1 + $0x24c] sm:$0xf]
        %v1104 = vld [vmem:[%s1 + $0x250] sm:$0xf]
        %v1105 = vld [vmem:[%s1 + $0x254] sm:$0xf]
        %v1106 = vld [vmem:[%s1 + $0x258] sm:$0xf]
        %v1107 = vld [vmem:[%s1 + $0x25c] sm:$0xf]
        %v1108 = vld [vmem:[%s1 + $0x260] sm:$0xf]
        %v1109 = vld [vmem:[%s1 + $0x264] sm:$0xf]
        %v1110 = vld [vmem:[%s1 + $0x268] sm:$0xf]
        %v1111 = vld [vmem:[%s1 + $0x26c] sm:$0xf]
        %v1112 = vld [vmem:[%s1 + $0x270] sm:$0xf]
        %v1113 = vld [vmem:[%s1 + $0x274] sm:$0xf]
        %v1114 = vld [vmem:[%s1 + $0x278] sm:$0xf]
        %v1115 = vld [vmem:[%s1 + $0x27c] sm:$0xf]
        %v1116 = vld [vmem:[%s2] sm:$0x1]
        %v1118 = vlaneseq
        %v1119 = vshrl.u32 %v1118, 7
        %v1120 = vsub.s32 0, %v1119
        %v1121 = vrot.slane %v1116, %v1120
        %v1283 = vunpack.c.l.b16 %v956
        %v1284 = vunpack.c.l.b16 %v957
        %v1285 = vunpack.c.l.b16 %v958
        %v1286 = vunpack.c.l.b16 %v959
        %v1287 = vunpack.c.l.b16 %v960
        %v1288 = vunpack.c.l.b16 %v961
        %v1289 = vunpack.c.l.b16 %v962
        %v1290 = vunpack.c.l.b16 %v963
        %v1291 = vunpack.c.l.b16 %v964
        %v1292 = vunpack.c.l.b16 %v965
        %v1293 = vunpack.c.l.b16 %v966
        %v1294 = vunpack.c.l.b16 %v967
        %v1295 = vunpack.c.l.b16 %v968
        %v1296 = vunpack.c.l.b16 %v969
        %v1297 = vunpack.c.l.b16 %v970
        %v1298 = vunpack.c.l.b16 %v971
        %v1299 = vunpack.c.l.b16 %v972
        %v1300 = vunpack.c.l.b16 %v973
        %v1301 = vunpack.c.l.b16 %v974
        %v1302 = vunpack.c.l.b16 %v975
        %v1303 = vunpack.c.l.b16 %v976
        %v1304 = vunpack.c.l.b16 %v977
        %v1305 = vunpack.c.l.b16 %v978
        %v1306 = vunpack.c.l.b16 %v979
        %v1307 = vunpack.c.l.b16 %v980
        %v1308 = vunpack.c.l.b16 %v981
        %v1309 = vunpack.c.l.b16 %v982
        %v1310 = vunpack.c.l.b16 %v983
        %v1311 = vunpack.c.l.b16 %v984
        %v1312 = vunpack.c.l.b16 %v985
        %v1313 = vunpack.c.l.b16 %v986
        %v1314 = vunpack.c.l.b16 %v987
        %v1315 = vunpack.c.l.b16 %v988
        %v1316 = vunpack.c.l.b16 %v989
        %v1317 = vunpack.c.l.b16 %v990
        %v1318 = vunpack.c.l.b16 %v991
        %v1319 = vunpack.c.l.b16 %v992
        %v1320 = vunpack.c.l.b16 %v993
        %v1321 = vunpack.c.l.b16 %v994
        %v1322 = vunpack.c.l.b16 %v995
        %v1323 = vunpack.c.l.b16 %v996
        %v1324 = vunpack.c.l.b16 %v997
        %v1325 = vunpack.c.l.b16 %v998
        %v1326 = vunpack.c.l.b16 %v999
        %v1327 = vunpack.c.l.b16 %v1000
        %v1328 = vunpack.c.l.b16 %v1001
        %v1329 = vunpack.c.l.b16 %v1002
        %v1330 = vunpack.c.l.b16 %v1003
        %v1331 = vunpack.c.l.b16 %v1004
        %v1332 = vunpack.c.l.b16 %v1005
        %v1333 = vunpack.c.l.b16 %v1006
        %v1334 = vunpack.c.l.b16 %v1007
        %v1335 = vunpack.c.l.b16 %v1008
        %v1336 = vunpack.c.l.b16 %v1009
        %v1337 = vunpack.c.l.b16 %v1010
        %v1338 = vunpack.c.l.b16 %v1011
        %v1339 = vunpack.c.l.b16 %v1012
        %v1340 = vunpack.c.l.b16 %v1013
        %v1341 = vunpack.c.l.b16 %v1014
        %v1342 = vunpack.c.l.b16 %v1015
        %v1343 = vunpack.c.l.b16 %v1016
        %v1344 = vunpack.c.l.b16 %v1017
        %v1345 = vunpack.c.l.b16 %v1018
        %v1346 = vunpack.c.l.b16 %v1019
        %v1347 = vunpack.c.l.b16 %v1020
        %v1348 = vunpack.c.l.b16 %v1021
        %v1349 = vunpack.c.l.b16 %v1022
        %v1350 = vunpack.c.l.b16 %v1023
        %v1351 = vunpack.c.l.b16 %v1024
        %v1352 = vunpack.c.l.b16 %v1025
        %v1353 = vunpack.c.l.b16 %v1026
        %v1354 = vunpack.c.l.b16 %v1027
        %v1355 = vunpack.c.l.b16 %v1028
        %v1356 = vunpack.c.l.b16 %v1029
        %v1357 = vunpack.c.l.b16 %v1030
        %v1358 = vunpack.c.l.b16 %v1031
        %v1359 = vunpack.c.l.b16 %v1032
        %v1360 = vunpack.c.l.b16 %v1033
        %v1361 = vunpack.c.l.b16 %v1034
        %v1362 = vunpack.c.l.b16 %v1035
        %v1363 = vunpack.c.l.b16 %v1036
        %v1364 = vunpack.c.l.b16 %v1037
        %v1365 = vunpack.c.l.b16 %v1038
        %v1366 = vunpack.c.l.b16 %v1039
        %v1367 = vunpack.c.l.b16 %v1040
        %v1368 = vunpack.c.l.b16 %v1041
        %v1369 = vunpack.c.l.b16 %v1042
        %v1370 = vunpack.c.l.b16 %v1043
        %v1371 = vunpack.c.l.b16 %v1044
        %v1372 = vunpack.c.l.b16 %v1045
        %v1373 = vunpack.c.l.b16 %v1046
        %v1374 = vunpack.c.l.b16 %v1047
        %v1375 = vunpack.c.l.b16 %v1048
        %v1376 = vunpack.c.l.b16 %v1049
        %v1377 = vunpack.c.l.b16 %v1050
        %v1378 = vunpack.c.l.b16 %v1051
        %v1379 = vunpack.c.l.b16 %v1052
        %v1380 = vunpack.c.l.b16 %v1053
        %v1381 = vunpack.c.l.b16 %v1054
        %v1382 = vunpack.c.l.b16 %v1055
        %v1383 = vunpack.c.l.b16 %v1056
        %v1384 = vunpack.c.l.b16 %v1057
        %v1385 = vunpack.c.l.b16 %v1058
        %v1386 = vunpack.c.l.b16 %v1059
        %v1387 = vunpack.c.l.b16 %v1060
        %v1388 = vunpack.c.l.b16 %v1061
        %v1389 = vunpack.c.l.b16 %v1062
        %v1390 = vunpack.c.l.b16 %v1063
        %v1391 = vunpack.c.l.b16 %v1064
        %v1392 = vunpack.c.l.b16 %v1065
        %v1393 = vunpack.c.l.b16 %v1066
        %v1394 = vunpack.c.l.b16 %v1067
        %v1395 = vunpack.c.l.b16 %v1068
        %v1396 = vunpack.c.l.b16 %v1069
        %v1397 = vunpack.c.l.b16 %v1070
        %v1398 = vunpack.c.l.b16 %v1071
        %v1399 = vunpack.c.l.b16 %v1072
        %v1400 = vunpack.c.l.b16 %v1073
        %v1401 = vunpack.c.l.b16 %v1074
        %v1402 = vunpack.c.l.b16 %v1075
        %v1403 = vunpack.c.l.b16 %v1076
        %v1404 = vunpack.c.l.b16 %v1077
        %v1405 = vunpack.c.l.b16 %v1078
        %v1406 = vunpack.c.l.b16 %v1079
        %v1407 = vunpack.c.l.b16 %v1080
        %v1408 = vunpack.c.l.b16 %v1081
        %v1409 = vunpack.c.l.b16 %v1082
        %v1410 = vunpack.c.l.b16 %v1083
        %v1411 = vunpack.c.l.b16 %v1084
        %v1412 = vunpack.c.l.b16 %v1085
        %v1413 = vunpack.c.l.b16 %v1086
        %v1414 = vunpack.c.l.b16 %v1087
        %v1415 = vunpack.c.l.b16 %v1088
        %v1416 = vunpack.c.l.b16 %v1089
        %v1417 = vunpack.c.l.b16 %v1090
        %v1418 = vunpack.c.l.b16 %v1091
        %v1419 = vunpack.c.l.b16 %v1092
        %v1420 = vunpack.c.l.b16 %v1093
        %v1421 = vunpack.c.l.b16 %v1094
        %v1422 = vunpack.c.l.b16 %v1095
        %v1423 = vunpack.c.l.b16 %v1096
        %v1424 = vunpack.c.l.b16 %v1097
        %v1425 = vunpack.c.l.b16 %v1098
        %v1426 = vunpack.c.l.b16 %v1099
        %v1427 = vunpack.c.l.b16 %v1100
        %v1428 = vunpack.c.l.b16 %v1101
        %v1429 = vunpack.c.l.b16 %v1102
        %v1430 = vunpack.c.l.b16 %v1103
        %v1431 = vunpack.c.l.b16 %v1104
        %v1432 = vunpack.c.l.b16 %v1105
        %v1433 = vunpack.c.l.b16 %v1106
        %v1434 = vunpack.c.l.b16 %v1107
        %v1435 = vunpack.c.l.b16 %v1108
        %v1436 = vunpack.c.l.b16 %v1109
        %v1437 = vunpack.c.l.b16 %v1110
        %v1438 = vunpack.c.l.b16 %v1111
        %v1439 = vunpack.c.l.b16 %v1112
        %v1440 = vunpack.c.l.b16 %v1113
        %v1441 = vunpack.c.l.b16 %v1114
        %v1442 = vunpack.c.l.b16 %v1115
        %v1443 = vpack.c.b16 %v1284, %v1283
        %v1444 = vpack.c.b16 %v1286, %v1285
        %v1445 = vpack.c.b16 %v1288, %v1287
        %v1446 = vpack.c.b16 %v1290, %v1289
        %v1447 = vpack.c.b16 %v1292, %v1291
        %v1448 = vpack.c.b16 %v1294, %v1293
        %v1449 = vpack.c.b16 %v1296, %v1295
        %v1450 = vpack.c.b16 %v1298, %v1297
        %v1451 = vpack.c.b16 %v1300, %v1299
        %v1452 = vpack.c.b16 %v1302, %v1301
        %v1453 = vpack.c.b16 %v1304, %v1303
        %v1454 = vpack.c.b16 %v1306, %v1305
        %v1455 = vpack.c.b16 %v1308, %v1307
        %v1456 = vpack.c.b16 %v1310, %v1309
        %v1457 = vpack.c.b16 %v1312, %v1311
        %v1458 = vpack.c.b16 %v1314, %v1313
        %v1459 = vpack.c.b16 %v1316, %v1315
        %v1460 = vpack.c.b16 %v1318, %v1317
        %v1461 = vpack.c.b16 %v1320, %v1319
        %v1462 = vpack.c.b16 %v1322, %v1321
        %v1463 = vpack.c.b16 %v1324, %v1323
        %v1464 = vpack.c.b16 %v1326, %v1325
        %v1465 = vpack.c.b16 %v1328, %v1327
        %v1466 = vpack.c.b16 %v1330, %v1329
        %v1467 = vpack.c.b16 %v1332, %v1331
        %v1468 = vpack.c.b16 %v1334, %v1333
        %v1469 = vpack.c.b16 %v1336, %v1335
        %v1470 = vpack.c.b16 %v1338, %v1337
        %v1471 = vpack.c.b16 %v1340, %v1339
        %v1472 = vpack.c.b16 %v1342, %v1341
        %v1473 = vpack.c.b16 %v1344, %v1343
        %v1474 = vpack.c.b16 %v1346, %v1345
        %v1475 = vpack.c.b16 %v1348, %v1347
        %v1476 = vpack.c.b16 %v1350, %v1349
        %v1477 = vpack.c.b16 %v1352, %v1351
        %v1478 = vpack.c.b16 %v1354, %v1353
        %v1479 = vpack.c.b16 %v1356, %v1355
        %v1480 = vpack.c.b16 %v1358, %v1357
        %v1481 = vpack.c.b16 %v1360, %v1359
        %v1482 = vpack.c.b16 %v1362, %v1361
        %v1483 = vpack.c.b16 %v1364, %v1363
        %v1484 = vpack.c.b16 %v1366, %v1365
        %v1485 = vpack.c.b16 %v1368, %v1367
        %v1486 = vpack.c.b16 %v1370, %v1369
        %v1487 = vpack.c.b16 %v1372, %v1371
        %v1488 = vpack.c.b16 %v1374, %v1373
        %v1489 = vpack.c.b16 %v1376, %v1375
        %v1490 = vpack.c.b16 %v1378, %v1377
        %v1491 = vpack.c.b16 %v1380, %v1379
        %v1492 = vpack.c.b16 %v1382, %v1381
        %v1493 = vpack.c.b16 %v1384, %v1383
        %v1494 = vpack.c.b16 %v1386, %v1385
        %v1495 = vpack.c.b16 %v1388, %v1387
        %v1496 = vpack.c.b16 %v1390, %v1389
        %v1497 = vpack.c.b16 %v1392, %v1391
        %v1498 = vpack.c.b16 %v1394, %v1393
        %v1499 = vpack.c.b16 %v1396, %v1395
        %v1500 = vpack.c.b16 %v1398, %v1397
        %v1501 = vpack.c.b16 %v1400, %v1399
        %v1502 = vpack.c.b16 %v1402, %v1401
        %v1503 = vpack.c.b16 %v1404, %v1403
        %v1504 = vpack.c.b16 %v1406, %v1405
        %v1505 = vpack.c.b16 %v1408, %v1407
        %v1506 = vpack.c.b16 %v1410, %v1409
        %v1507 = vpack.c.b16 %v1412, %v1411
        %v1508 = vpack.c.b16 %v1414, %v1413
        %v1509 = vpack.c.b16 %v1416, %v1415
        %v1510 = vpack.c.b16 %v1418, %v1417
        %v1511 = vpack.c.b16 %v1420, %v1419
        %v1512 = vpack.c.b16 %v1422, %v1421
        %v1513 = vpack.c.b16 %v1424, %v1423
        %v1514 = vpack.c.b16 %v1426, %v1425
        %v1515 = vpack.c.b16 %v1428, %v1427
        %v1516 = vpack.c.b16 %v1430, %v1429
        %v1517 = vpack.c.b16 %v1432, %v1431
        %v1518 = vpack.c.b16 %v1434, %v1433
        %v1519 = vpack.c.b16 %v1436, %v1435
        %v1520 = vpack.c.b16 %v1438, %v1437
        %v1521 = vpack.c.b16 %v1440, %v1439
        %v1522 = vpack.c.b16 %v1442, %v1441
        %1603 = vmatprep.subr.bf16.mxu0 0
        %1604 = vmatpush1.bf16.msra.mxu0 %v1443
        %1605 = vmatprep.subr.bf16.mxu0 0
        %1606 = vmatpush1.bf16.msra.mxu0 %v1444
        %1607 = vmatprep.subr.bf16.mxu0 0
        %1608 = vmatpush1.bf16.msra.mxu0 %v1445
        %1609 = vmatprep.subr.bf16.mxu0 0
        %1610 = vmatpush1.bf16.msra.mxu0 %v1446
        %1611 = vmatprep.subr.bf16.mxu0 0
        %1612 = vmatpush1.bf16.msra.mxu0 %v1447
        %1613 = vmatprep.subr.bf16.mxu0 0
        %1614 = vmatpush1.bf16.msra.mxu0 %v1448
        %1615 = vmatprep.subr.bf16.mxu0 0
        %1616 = vmatpush1.bf16.msra.mxu0 %v1449
        %1617 = vmatprep.subr.bf16.mxu0 0
        %1618 = vmatpush1.bf16.msra.mxu0 %v1450
        %1619 = vmatprep.subr.bf16.mxu0 0
        %1620 = vmatpush1.bf16.msra.mxu0 %v1451
        %1621 = vmatprep.subr.bf16.mxu0 0
        %1622 = vmatpush1.bf16.msra.mxu0 %v1452
        %1623 = vmatprep.subr.bf16.mxu0 0
        %1624 = vmatpush1.bf16.msra.mxu0 %v1453
        %1625 = vmatprep.subr.bf16.mxu0 0
        %1626 = vmatpush1.bf16.msra.mxu0 %v1454
        %1627 = vmatprep.subr.bf16.mxu0 0
        %1628 = vmatpush1.bf16.msra.mxu0 %v1455
        %1629 = vmatprep.subr.bf16.mxu0 0
        %1630 = vmatpush1.bf16.msra.mxu0 %v1456
        %1631 = vmatprep.subr.bf16.mxu0 0
        %1632 = vmatpush1.bf16.msra.mxu0 %v1457
        %1633 = vmatprep.subr.bf16.mxu0 0
        %1634 = vmatpush1.bf16.msra.mxu0 %v1458
        %1635 = vmatprep.mubr.bf16.mxu0 %v947
        %1636 = vmatmul.mubr.bf16.gmra.mrb[0].mxu0 %v946
        %v1637 = vpop.f32.mrb[0].mxu0
        %v1638 = vadd.f32 %v1121, %v1637
        %v1639 = vpop.f32.mrb[0].mxu0
        %v1640 = vpop.f32.mrb[0].mxu0
        %v1641 = vadd.f32 %v1121, %v1640
        %v1642 = vpop.f32.mrb[0].mxu0
        %1643 = vdwg.mxu0
        %1644 = vmatprep.subr.bf16.mxu0 0
        %1645 = vmatpush1.bf16.msra.mxu0 %v1459
        %1646 = vmatprep.subr.bf16.mxu0 0
        %1647 = vmatpush1.bf16.msra.mxu0 %v1460
        %1648 = vmatprep.subr.bf16.mxu0 0
        %1649 = vmatpush1.bf16.msra.mxu0 %v1461
        %1650 = vmatprep.subr.bf16.mxu0 0
        %1651 = vmatpush1.bf16.msra.mxu0 %v1462
        %1652 = vmatprep.subr.bf16.mxu0 0
        %1653 = vmatpush1.bf16.msra.mxu0 %v1463
        %1654 = vmatprep.subr.bf16.mxu0 0
        %1655 = vmatpush1.bf16.msra.mxu0 %v1464
        %1656 = vmatprep.subr.bf16.mxu0 0
        %1657 = vmatpush1.bf16.msra.mxu0 %v1465
        %1658 = vmatprep.subr.bf16.mxu0 0
        %1659 = vmatpush1.bf16.msra.mxu0 %v1466
        %1660 = vmatprep.subr.bf16.mxu0 0
        %1661 = vmatpush1.bf16.msra.mxu0 %v1467
        %1662 = vmatprep.subr.bf16.mxu0 0
        %1663 = vmatpush1.bf16.msra.mxu0 %v1468
        %1664 = vmatprep.subr.bf16.mxu0 0
        %1665 = vmatpush1.bf16.msra.mxu0 %v1469
        %1666 = vmatprep.subr.bf16.mxu0 0
        %1667 = vmatpush1.bf16.msra.mxu0 %v1470
        %1668 = vmatprep.subr.bf16.mxu0 0
        %1669 = vmatpush1.bf16.msra.mxu0 %v1471
        %1670 = vmatprep.subr.bf16.mxu0 0
        %1671 = vmatpush1.bf16.msra.mxu0 %v1472
        %1672 = vmatprep.subr.bf16.mxu0 0
        %1673 = vmatpush1.bf16.msra.mxu0 %v1473
        %1674 = vmatprep.subr.bf16.mxu0 0
        %1675 = vmatpush1.bf16.msra.mxu0 %v1474
        %1676 = vmatprep.mubr.bf16.mxu0 %v949
        %1677 = vmatmul.mubr.bf16.gmra.mrb[0].mxu0 %v948
        %v1678 = vpop.f32.mrb[0].mxu0
        %v1679 = vadd.f32 %v1638, %v1678
        %v1680 = vpop.f32.mrb[0].mxu0
        %v1681 = vpop.f32.mrb[0].mxu0
        %v1682 = vadd.f32 %v1641, %v1681
        %v1683 = vpop.f32.mrb[0].mxu0
        %1684 = vdwg.mxu0
        %1685 = vmatprep.subr.bf16.mxu0 0
        %1686 = vmatpush1.bf16.msra.mxu0 %v1475
        %1687 = vmatprep.subr.bf16.mxu0 0
        %1688 = vmatpush1.bf16.msra.mxu0 %v1476
        %1689 = vmatprep.subr.bf16.mxu0 0
        %1690 = vmatpush1.bf16.msra.mxu0 %v1477
        %1691 = vmatprep.subr.bf16.mxu0 0
        %1692 = vmatpush1.bf16.msra.mxu0 %v1478
        %1693 = vmatprep.subr.bf16.mxu0 0
        %1694 = vmatpush1.bf16.msra.mxu0 %v1479
        %1695 = vmatprep.subr.bf16.mxu0 0
        %1696 = vmatpush1.bf16.msra.mxu0 %v1480
        %1697 = vmatprep.subr.bf16.mxu0 0
        %1698 = vmatpush1.bf16.msra.mxu0 %v1481
        %1699 = vmatprep.subr.bf16.mxu0 0
        %1700 = vmatpush1.bf16.msra.mxu0 %v1482
        %1701 = vmatprep.subr.bf16.mxu0 0
        %1702 = vmatpush1.bf16.msra.mxu0 %v1483
        %1703 = vmatprep.subr.bf16.mxu0 0
        %1704 = vmatpush1.bf16.msra.mxu0 %v1484
        %1705 = vmatprep.subr.bf16.mxu0 0
        %1706 = vmatpush1.bf16.msra.mxu0 %v1485
        %1707 = vmatprep.subr.bf16.mxu0 0
        %1708 = vmatpush1.bf16.msra.mxu0 %v1486
        %1709 = vmatprep.subr.bf16.mxu0 0
        %1710 = vmatpush1.bf16.msra.mxu0 %v1487
        %1711 = vmatprep.subr.bf16.mxu0 0
        %1712 = vmatpush1.bf16.msra.mxu0 %v1488
        %1713 = vmatprep.subr.bf16.mxu0 0
        %1714 = vmatpush1.bf16.msra.mxu0 %v1489
        %1715 = vmatprep.subr.bf16.mxu0 0
        %1716 = vmatpush1.bf16.msra.mxu0 %v1490
        %1717 = vmatprep.mubr.bf16.mxu0 %v951
        %1718 = vmatmul.mubr.bf16.gmra.mrb[0].mxu0 %v950
        %v1719 = vpop.f32.mrb[0].mxu0
        %v1720 = vadd.f32 %v1679, %v1719
        %v1721 = vpop.f32.mrb[0].mxu0
        %v1722 = vpop.f32.mrb[0].mxu0
        %v1723 = vadd.f32 %v1682, %v1722
        %v1724 = vpop.f32.mrb[0].mxu0
        %1725 = vdwg.mxu0
        %1726 = vmatprep.subr.bf16.mxu0 0
        %1727 = vmatpush1.bf16.msra.mxu0 %v1491
        %1728 = vmatprep.subr.bf16.mxu0 0
        %1729 = vmatpush1.bf16.msra.mxu0 %v1492
        %1730 = vmatprep.subr.bf16.mxu0 0
        %1731 = vmatpush1.bf16.msra.mxu0 %v1493
        %1732 = vmatprep.subr.bf16.mxu0 0
        %1733 = vmatpush1.bf16.msra.mxu0 %v1494
        %1734 = vmatprep.subr.bf16.mxu0 0
        %1735 = vmatpush1.bf16.msra.mxu0 %v1495
        %1736 = vmatprep.subr.bf16.mxu0 0
        %1737 = vmatpush1.bf16.msra.mxu0 %v1496
        %1738 = vmatprep.subr.bf16.mxu0 0
        %1739 = vmatpush1.bf16.msra.mxu0 %v1497
        %1740 = vmatprep.subr.bf16.mxu0 0
        %1741 = vmatpush1.bf16.msra.mxu0 %v1498
        %1742 = vmatprep.subr.bf16.mxu0 0
        %1743 = vmatpush1.bf16.msra.mxu0 %v1499
        %1744 = vmatprep.subr.bf16.mxu0 0
        %1745 = vmatpush1.bf16.msra.mxu0 %v1500
        %1746 = vmatprep.subr.bf16.mxu0 0
        %1747 = vmatpush1.bf16.msra.mxu0 %v1501
        %1748 = vmatprep.subr.bf16.mxu0 0
        %1749 = vmatpush1.bf16.msra.mxu0 %v1502
        %1750 = vmatprep.subr.bf16.mxu0 0
        %1751 = vmatpush1.bf16.msra.mxu0 %v1503
        %1752 = vmatprep.subr.bf16.mxu0 0
        %1753 = vmatpush1.bf16.msra.mxu0 %v1504
        %1754 = vmatprep.subr.bf16.mxu0 0
        %1755 = vmatpush1.bf16.msra.mxu0 %v1505
        %1756 = vmatprep.subr.bf16.mxu0 0
        %1757 = vmatpush1.bf16.msra.mxu0 %v1506
        %1758 = vmatprep.mubr.bf16.mxu0 %v953
        %1759 = vmatmul.mubr.bf16.gmra.mrb[0].mxu0 %v952
        %v1760 = vpop.f32.mrb[0].mxu0
        %v1761 = vadd.f32 %v1720, %v1760
        %v1762 = vpop.f32.mrb[0].mxu0
        %v1763 = vpop.f32.mrb[0].mxu0
        %v1764 = vadd.f32 %v1723, %v1763
        %v1765 = vpop.f32.mrb[0].mxu0
        %1766 = vdwg.mxu0
        %1767 = vmatprep.subr.bf16.mxu0 0
        %1768 = vmatpush1.bf16.msra.mxu0 %v1507
        %1769 = vmatprep.subr.bf16.mxu0 0
        %1770 = vmatpush1.bf16.msra.mxu0 %v1508
        %1771 = vmatprep.subr.bf16.mxu0 0
        %1772 = vmatpush1.bf16.msra.mxu0 %v1509
        %1773 = vmatprep.subr.bf16.mxu0 0
        %1774 = vmatpush1.bf16.msra.mxu0 %v1510
        %1775 = vmatprep.subr.bf16.mxu0 0
        %1776 = vmatpush1.bf16.msra.mxu0 %v1511
        %1777 = vmatprep.subr.bf16.mxu0 0
        %1778 = vmatpush1.bf16.msra.mxu0 %v1512
        %1779 = vmatprep.subr.bf16.mxu0 0
        %1780 = vmatpush1.bf16.msra.mxu0 %v1513
        %1781 = vmatprep.subr.bf16.mxu0 0
        %1782 = vmatpush1.bf16.msra.mxu0 %v1514
        %1783 = vmatprep.subr.bf16.mxu0 0
        %1784 = vmatpush1.bf16.msra.mxu0 %v1515
        %1785 = vmatprep.subr.bf16.mxu0 0
        %1786 = vmatpush1.bf16.msra.mxu0 %v1516
        %1787 = vmatprep.subr.bf16.mxu0 0
        %1788 = vmatpush1.bf16.msra.mxu0 %v1517
        %1789 = vmatprep.subr.bf16.mxu0 0
        %1790 = vmatpush1.bf16.msra.mxu0 %v1518
        %1791 = vmatprep.subr.bf16.mxu0 0
        %1792 = vmatpush1.bf16.msra.mxu0 %v1519
        %1793 = vmatprep.subr.bf16.mxu0 0
        %1794 = vmatpush1.bf16.msra.mxu0 %v1520
        %1795 = vmatprep.subr.bf16.mxu0 0
        %1796 = vmatpush1.bf16.msra.mxu0 %v1521
        %1797 = vmatprep.subr.bf16.mxu0 0
        %1798 = vmatpush1.bf16.msra.mxu0 %v1522
        %1799 = vmatprep.mubr.bf16.mxu0 %v955
        %1800 = vmatmul.mubr.bf16.gmra.mrb[0].mxu0 %v954
        %v1801 = vpop.f32.mrb[0].mxu0
        %v1802 = vadd.f32 %v1761, %v1801
        %v1803 = vpop.f32.mrb[0].mxu0
        %v1804 = vpop.f32.mrb[0].mxu0
        %v1805 = vadd.f32 %v1764, %v1804
        %v1806 = vpop.f32.mrb[0].mxu0
        %1807 = vdwg.mxu0
        %v1808 = vld [vmem:[%s3] sm:$0xff]
        %v1809 = vld [vmem:[%s3 + $0x8] sm:$0xff]
        %v1810 = vadd.f32 %v1802, %v1808
        %v1811 = vadd.f32 %v1805, %v1809
        %v1812 = vld [vmem:[%s4] sm:$0x1]
        %vm1813 = vcmask 1040384
        %v1814 = vsel %vm1813, %v1812, 0.0
        %1815 = vst [vmem:[#allocation2] sm:$0xff] %v1810
        %1816 = vst [vmem:[#allocation2 + $0x8] sm:$0xff] %v1811
        %1817 = vst [vmem:[#allocation2 + $0x10] sm:$0xff] %v1814
      $region116: #{mae_forward.1} parent=111 // pred_fallthru
        _
      %v1818 = vld [vmem:[#allocation2] sm:$0xff]
      %v1819 = vld [vmem:[#allocation2 + $0x8] sm:$0xff]
      %v1820 = vld [vmem:[#allocation2 + $0x10] sm:$0xff]
      %v1821 = vld [vmem:[%s872] sm:$0x1]
      %v1822 = vld [vmem:[%s875] sm:$0x1]
      %1823 = vadd.xlane.f32.xlu0 %v1818
      %v1824 = vpop.xlane.xlu0 %1823
      %1825 = vadd.xlane.f32.xlu0 %v1819
      %v1826 = vpop.xlane.xlu0 %1825
      %1827 = vadd.xlane.f32.xlu0 %v1820
      %v1828 = vpop.xlane.xlu0 %1827
      %v1829 = vrcp.pop 128.0
      %v1830 = vmul.f32 %v1824, %v1829
      %v1831 = vmul.f32 %v1826, %v1829
      %v1832 = vmul.f32 %v1828, %v1829
      %v1833 = vsub.f32 %v1818, %v1830
      %v1834 = vsub.f32 %v1819, %v1831
      %v1835 = vsub.f32 %v1820, %v1832
      %v1836 = vmul.f32 %v1833, %v1833
      %v1837 = vmul.f32 %v1834, %v1834
      %v1838 = vmul.f32 %v1835, %v1835
      %1839 = vadd.xlane.f32.xlu0 %v1836
      %v1840 = vpop.xlane.xlu0 %1839
      %1841 = vadd.xlane.f32.xlu0 %v1837
      %v1842 = vpop.xlane.xlu0 %1841
      %1843 = vadd.xlane.f32.xlu0 %v1838
      %v1844 = vpop.xlane.xlu0 %1843
      %v1845 = vmul.f32 %v1840, %v1829
      %v1846 = vmul.f32 %v1842, %v1829
      %v1847 = vmul.f32 %v1844, %v1829
      %v1848 = vadd.f32 %v1845, 1e-05
      %v1849 = vadd.f32 %v1846, 1e-05
      %v1850 = vadd.f32 %v1847, 1e-05
      %v1851 = vrsqrt.pop %v1848
      %v1852 = vrsqrt.pop %v1849
      %v1853 = vrsqrt.pop %v1850
      %v1854 = vmul.f32 %v1833, %v1851
      %v1855 = vmul.f32 %v1834, %v1852
      %v1856 = vmul.f32 %v1835, %v1853
      %v1858 = vlaneseq
      %v1859 = vshrl.u32 %v1858, 7
      %v1860 = vsub.s32 0, %v1859
      %v1861 = vrot.slane %v1821, %v1860
      %v1863 = vmul.f32 %v1854, %v1861
      %v1864 = vmul.f32 %v1855, %v1861
      %v1865 = vmul.f32 %v1856, %v1861
      %v1867 = vlaneseq
      %v1868 = vshrl.u32 %v1867, 7
      %v1869 = vsub.s32 0, %v1868
      %v1870 = vrot.slane %v1822, %v1869
      %v1872 = vadd.f32 %v1863, %v1870
      %v1873 = vadd.f32 %v1864, %v1870
      %v1874 = vadd.f32 %v1865, %v1870
      %v1875 = vpack.c.bf16 %v1873, %v1872
      %v1876 = vpack.c.bf16 %v1874, %v1874
      %v1877 = vld [vmem:[%s880] sm:$0xff]
      %v1878 = vld [vmem:[%s880 + $0x8] sm:$0xf]
      %v1879 = vld [vmem:[%s880 + $0xc] sm:$0xff]
      %v1880 = vld [vmem:[%s880 + $0x14] sm:$0xf]
      %v1881 = vld [vmem:[%s880 + $0x18] sm:$0xff]
      %v1882 = vld [vmem:[%s880 + $0x20] sm:$0xf]
      %v1883 = vld [vmem:[%s880 + $0x24] sm:$0xff]
      %v1884 = vld [vmem:[%s880 + $0x2c] sm:$0xf]
      %v1885 = vld [vmem:[%s880 + $0x30] sm:$0xff]
      %v1886 = vld [vmem:[%s880 + $0x38] sm:$0xf]
      %v1887 = vld [vmem:[%s880 + $0x3c] sm:$0xff]
      %v1888 = vld [vmem:[%s880 + $0x44] sm:$0xf]
      %v1889 = vld [vmem:[%s880 + $0x48] sm:$0xff]
      %v1890 = vld [vmem:[%s880 + $0x50] sm:$0xf]
      %v1891 = vld [vmem:[%s880 + $0x54] sm:$0xff]
      %v1892 = vld [vmem:[%s880 + $0x5c] sm:$0xf]
      %v1893 = vld [vmem:[%s880 + $0x60] sm:$0xff]
      %v1894 = vld [vmem:[%s880 + $0x68] sm:$0xf]
      %v1895 = vld [vmem:[%s880 + $0x6c] sm:$0xff]
      %v1896 = vld [vmem:[%s880 + $0x74] sm:$0xf]
      %v1897 = vld [vmem:[%s880 + $0x78] sm:$0xff]
      %v1898 = vld [vmem:[%s880 + $0x80] sm:$0xf]
      %v1899 = vld [vmem:[%s880 + $0x84] sm:$0xff]
      %v1900 = vld [vmem:[%s880 + $0x8c] sm:$0xf]
      %v1901 = vld [vmem:[%s880 + $0x90] sm:$0xff]
      %v1902 = vld [vmem:[%s880 + $0x98] sm:$0xf]
      %v1903 = vld [vmem:[%s880 + $0x9c] sm:$0xff]
      %v1904 = vld [vmem:[%s880 + $0xa4] sm:$0xf]
      %v1905 = vld [vmem:[%s880 + $0xa8] sm:$0xff]
      %v1906 = vld [vmem:[%s880 + $0xb0] sm:$0xf]
      %v1907 = vld [vmem:[%s880 + $0xb4] sm:$0xff]
      %v1908 = vld [vmem:[%s880 + $0xbc] sm:$0xf]
      %v1909 = vld [vmem:[%s884] sm:$0x7]
      %v1911 = vlaneseq
      %v1912 = vshrl.u32 %v1911, 7
      %v1913 = vsub.s32 0, %v1912
      %v1914 = vrot.slane %v1909, %v1913
      %v1915 = vlaneseq
      %v1916 = vshrl.u32 %v1915, 7
      %v1917 = vsub.s32 1, %v1916
      %v1918 = vrot.slane %v1909, %v1917
      %v1919 = vlaneseq
      %v1920 = vshrl.u32 %v1919, 7
      %v1921 = vsub.s32 2, %v1920
      %v1922 = vrot.slane %v1909, %v1921
      %v1958 = vunpack.c.l.b16 %v1877
      %v1959 = vunpack.c.h.b16 %v1877
      %v1960 = vunpack.c.l.b16 %v1878
      %v1961 = vunpack.c.l.b16 %v1879
      %v1962 = vunpack.c.h.b16 %v1879
      %v1963 = vunpack.c.l.b16 %v1880
      %v1964 = vunpack.c.l.b16 %v1881
      %v1965 = vunpack.c.h.b16 %v1881
      %v1966 = vunpack.c.l.b16 %v1882
      %v1967 = vunpack.c.l.b16 %v1883
      %v1968 = vunpack.c.h.b16 %v1883
      %v1969 = vunpack.c.l.b16 %v1884
      %v1970 = vunpack.c.l.b16 %v1885
      %v1971 = vunpack.c.h.b16 %v1885
      %v1972 = vunpack.c.l.b16 %v1886
      %v1973 = vunpack.c.l.b16 %v1887
      %v1974 = vunpack.c.h.b16 %v1887
      %v1975 = vunpack.c.l.b16 %v1888
      %v1976 = vunpack.c.l.b16 %v1889
      %v1977 = vunpack.c.h.b16 %v1889
      %v1978 = vunpack.c.l.b16 %v1890
      %v1979 = vunpack.c.l.b16 %v1891
      %v1980 = vunpack.c.h.b16 %v1891
      %v1981 = vunpack.c.l.b16 %v1892
      %v1982 = vunpack.c.l.b16 %v1893
      %v1983 = vunpack.c.h.b16 %v1893
      %v1984 = vunpack.c.l.b16 %v1894
      %v1985 = vunpack.c.l.b16 %v1895
      %v1986 = vunpack.c.h.b16 %v1895
      %v1987 = vunpack.c.l.b16 %v1896
      %v1988 = vunpack.c.l.b16 %v1897
      %v1989 = vunpack.c.h.b16 %v1897
      %v1990 = vunpack.c.l.b16 %v1898
      %v1991 = vunpack.c.l.b16 %v1899
      %v1992 = vunpack.c.h.b16 %v1899
      %v1993 = vunpack.c.l.b16 %v1900
      %v1994 = vunpack.c.l.b16 %v1901
      %v1995 = vunpack.c.h.b16 %v1901
      %v1996 = vunpack.c.l.b16 %v1902
      %v1997 = vunpack.c.l.b16 %v1903
      %v1998 = vunpack.c.h.b16 %v1903
      %v1999 = vunpack.c.l.b16 %v1904
      %v2000 = vunpack.c.l.b16 %v1905
      %v2001 = vunpack.c.h.b16 %v1905
      %v2002 = vunpack.c.l.b16 %v1906
      %v2003 = vunpack.c.l.b16 %v1907
      %v2004 = vunpack.c.h.b16 %v1907
      %v2005 = vunpack.c.l.b16 %v1908
      %v2006 = vpack.c.b16 %v1961, %v1958
      %v2007 = vpack.c.b16 %v1962, %v1959
      %v2008 = vpack.c.b16 %v1963, %v1960
      %v2009 = vpack.c.b16 %v1967, %v1964
      %v2010 = vpack.c.b16 %v1968, %v1965
      %v2011 = vpack.c.b16 %v1969, %v1966
      %v2012 = vpack.c.b16 %v1973, %v1970
      %v2013 = vpack.c.b16 %v1974, %v1971
      %v2014 = vpack.c.b16 %v1975, %v1972
      %v2015 = vpack.c.b16 %v1979, %v1976
      %v2016 = vpack.c.b16 %v1980, %v1977
      %v2017 = vpack.c.b16 %v1981, %v1978
      %v2018 = vpack.c.b16 %v1985, %v1982
      %v2019 = vpack.c.b16 %v1986, %v1983
      %v2020 = vpack.c.b16 %v1987, %v1984
      %v2021 = vpack.c.b16 %v1991, %v1988
      %v2022 = vpack.c.b16 %v1992, %v1989
      %v2023 = vpack.c.b16 %v1993, %v1990
      %v2024 = vpack.c.b16 %v1997, %v1994
      %v2025 = vpack.c.b16 %v1998, %v1995
      %v2026 = vpack.c.b16 %v1999, %v1996
      %v2027 = vpack.c.b16 %v2003, %v2000
      %v2028 = vpack.c.b16 %v2004, %v2001
      %v2029 = vpack.c.b16 %v2005, %v2002
      %2054 = vmatprep.subr.bf16.mxu0 %v2007
      %2055 = vmatpush1.bf16.msra.mxu0 %v2006
      %2056 = vmatprep.subr.bf16.mxu0 %v2010
      %2057 = vmatpush1.bf16.msra.mxu0 %v2009
      %2058 = vmatprep.subr.bf16.mxu0 %v2013
      %2059 = vmatpush1.bf16.msra.mxu0 %v2012
      %2060 = vmatprep.subr.bf16.mxu0 %v2016
      %2061 = vmatpush1.bf16.msra.mxu0 %v2015
      %2062 = vmatprep.subr.bf16.mxu0 %v2019
      %2063 = vmatpush1.bf16.msra.mxu0 %v2018
      %2064 = vmatprep.subr.bf16.mxu0 %v2022
      %2065 = vmatpush1.bf16.msra.mxu0 %v2021
      %2066 = vmatprep.subr.bf16.mxu0 %v2025
      %2067 = vmatpush1.bf16.msra.mxu0 %v2024
      %2068 = vmatprep.subr.bf16.mxu0 %v2028
      %2069 = vmatpush1.bf16.msra.mxu0 %v2027
      %2070 = vmatprep.subr.bf16.mxu0 0
      %2071 = vmatpush1.bf16.msra.mxu0 0
      %2072 = vmatprep.subr.bf16.mxu0 0
      %2073 = vmatpush1.bf16.msra.mxu0 0
      %2074 = vmatprep.subr.bf16.mxu0 0
      %2075 = vmatpush1.bf16.msra.mxu0 0
      %2076 = vmatprep.subr.bf16.mxu0 0
      %2077 = vmatpush1.bf16.msra.mxu0 0
      %2078 = vmatprep.subr.bf16.mxu0 0
      %2079 = vmatpush1.bf16.msra.mxu0 0
      %2080 = vmatprep.subr.bf16.mxu0 0
      %2081 = vmatpush1.bf16.msra.mxu0 0
      %2082 = vmatprep.subr.bf16.mxu0 0
      %2083 = vmatpush1.bf16.msra.mxu0 0
      %2084 = vmatprep.subr.bf16.mxu0 0
      %2085 = vmatpush1.bf16.msra.mxu0 0
      %2086 = vmatprep.mubr.bf16.mxu0 0
      %2087 = vmatmul.mubr.bf16.gmra.mrb[0].mxu0 %v1875
      %v2088 = vpop.f32.mrb[0].mxu0
      %v2089 = vadd.f32 %v1914, %v2088
      %v2090 = vpop.f32.mrb[0].mxu0
      %v2091 = vadd.f32 %v1918, %v2090
      %v2092 = vpop.f32.mrb[0].mxu0
      %v2093 = vadd.f32 %v1914, %v2092
      %v2094 = vpop.f32.mrb[0].mxu0
      %v2095 = vadd.f32 %v1918, %v2094
      %2096 = vmatprep.mubr.bf16.mxu0 0
      %2097 = vmatmul.mubr.bf16.gmra.mrb[0].mxu0 %v1876
      %v2098 = vpop.f32.mrb[0].mxu0
      %v2099 = vadd.f32 %v1914, %v2098
      %v2100 = vpop.f32.mrb[0].mxu0
      %v2101 = vadd.f32 %v1918, %v2100
      %v2102 = vpop.f32.mrb[0].mxu0
      %v2103 = vpop.f32.mrb[0].mxu0
      %2104 = vdwg.mxu0
      %2105 = vmatprep.subr.bf16.mxu0 0
      %2106 = vmatpush1.bf16.msra.mxu0 %v2008
      %2107 = vmatprep.subr.bf16.mxu0 0
      %2108 = vmatpush1.bf16.msra.mxu0 %v2011
      %2109 = vmatprep.subr.bf16.mxu0 0
      %2110 = vmatpush1.bf16.msra.mxu0 %v2014
      %2111 = vmatprep.subr.bf16.mxu0 0
      %2112 = vmatpush1.bf16.msra.mxu0 %v2017
      %2113 = vmatprep.subr.bf16.mxu0 0
      %2114 = vmatpush1.bf16.msra.mxu0 %v2020
      %2115 = vmatprep.subr.bf16.mxu0 0
      %2116 = vmatpush1.bf16.msra.mxu0 %v2023
      %2117 = vmatprep.subr.bf16.mxu0 0
      %2118 = vmatpush1.bf16.msra.mxu0 %v2026
      %2119 = vmatprep.subr.bf16.mxu0 0
      %2120 = vmatpush1.bf16.msra.mxu0 %v2029
      %2121 = vmatprep.subr.bf16.mxu0 0
      %2122 = vmatpush1.bf16.msra.mxu0 0
      %2123 = vmatprep.subr.bf16.mxu0 0
      %2124 = vmatpush1.bf16.msra.mxu0 0
      %2125 = vmatprep.subr.bf16.mxu0 0
      %2126 = vmatpush1.bf16.msra.mxu0 0
      %2127 = vmatprep.subr.bf16.mxu0 0
      %2128 = vmatpush1.bf16.msra.mxu0 0
      %2129 = vmatprep.subr.bf16.mxu0 0
      %2130 = vmatpush1.bf16.msra.mxu0 0
      %2131 = vmatprep.subr.bf16.mxu0 0
      %2132 = vmatpush1.bf16.msra.mxu0 0
      %2133 = vmatprep.subr.bf16.mxu0 0
      %2134 = vmatpush1.bf16.msra.mxu0 0
      %2135 = vmatprep.subr.bf16.mxu0 0
      %2136 = vmatpush1.bf16.msra.mxu0 0
      %2137 = vmatprep.mubr.bf16.mxu0 0
      %2138 = vmatmul.mubr.bf16.gmra.mrb[0].mxu0 %v1875
      %v2139 = vpop.f32.mrb[0].mxu0
      %v2140 = vadd.f32 %v1922, %v2139
      %v2141 = vpop.f32.mrb[0].mxu0
      %v2142 = vpop.f32.mrb[0].mxu0
      %v2143 = vadd.f32 %v1922, %v2142
      %v2144 = vpop.f32.mrb[0].mxu0
      %2145 = vmatprep.mubr.bf16.mxu0 0
      %2146 = vmatmul.mubr.bf16.gmra.mrb[0].mxu0 %v1876
      %v2147 = vpop.f32.mrb[0].mxu0
      %v2148 = vadd.f32 %v1922, %v2147
      %v2149 = vpop.f32.mrb[0].mxu0
      %v2150 = vpop.f32.mrb[0].mxu0
      %v2151 = vpop.f32.mrb[0].mxu0
      %2152 = vdwg.mxu0
      %v2153 = vlaneseq
      %v2154 = vand.u32 %v2153, 127
      %vm2155 = vcmp.lt.s32.totalorder %v2154, 17
      %v2156 = vsel %vm2155, 0.0, -1e+30
      %vm2157 = vcmask 261120
      %v2159 = vsel %vm2157, %v2089, 0
      %v2162 = vsel %vm2157, %v2093, 0
      %v2165 = vsel %vm2157, %v2099, 0
      %v2168 = vsel %vm2157, %v2091, 0
      %v2171 = vsel %vm2157, %v2095, 0
      %v2174 = vsel %vm2157, %v2101, 0
      %2176 = vmatprep.subr.mxu0 0.0
      %2177 = vmatpush1.xpose.msra.mxu0 %v2168
      %2178 = vmatprep.subr.mxu0 0.0
      %2179 = vmatpush1.xpose.msra.mxu0 %v2171
      %2180 = vmatprep.subr.mxu0 0.0
      %2181 = vmatpush1.xpose.msra.mxu0 %v2174
      %2182 = vmatprep.subr.mxu0 0.0
      %2183 = vmatpush1.xpose.msra.mxu0 0.0
      %2184 = vmatprep.subr.mxu0 0.0
      %2185 = vmatpush1.xpose.msra.mxu0 0.0
      %2186 = vmatprep.subr.mxu0 0.0
      %2187 = vmatpush1.xpose.msra.mxu0 0.0
      %2188 = vmatprep.subr.mxu0 0.0
      %2189 = vmatpush1.xpose.msra.mxu0 0.0
      %2190 = vmatprep.subr.mxu0 0.0
      %2191 = vmatpush1.xpose.msra.mxu0 0.0
      %2192 = vmatprep.subr.mxu0 0.0
      %2193 = vmatpush1.xpose.msra.mxu0 0.0
      %2194 = vmatprep.subr.mxu0 0.0
      %2195 = vmatpush1.xpose.msra.mxu0 0.0
      %2196 = vmatprep.subr.mxu0 0.0
      %2197 = vmatpush1.xpose.msra.mxu0 0.0
      %2198 = vmatprep.subr.mxu0 0.0
      %2199 = vmatpush1.xpose.msra.mxu0 0.0
      %2200 = vmatprep.subr.mxu0 0.0
      %2201 = vmatpush1.xpose.msra.mxu0 0.0
      %2202 = vmatprep.subr.mxu0 0.0
      %2203 = vmatpush1.xpose.msra.mxu0 0.0
      %2204 = vmatprep.subr.mxu0 0.0
      %2205 = vmatpush1.xpose.msra.mxu0 0.0
      %2206 = vmatprep.subr.mxu0 0.0
      %2207 = vmatpush1.xpose.msra.mxu0 0.0
      %2208 = vmatprep.subr.mxu0 0.0
      %2209 = vmatpush1.xpose.msra.mxu0 0.0
      %2210 = vmatprep.subr.mxu0 0.0
      %2211 = vmatpush1.xpose.msra.mxu0 0.0
      %2212 = vmatprep.subr.mxu0 0.0
      %2213 = vmatpush1.xpose.msra.mxu0 0.0
      %2214 = vmatprep.subr.mxu0 0.0
      %2215 = vmatpush1.xpose.msra.mxu0 0.0
      %2216 = vmatprep.subr.mxu0 0.0
      %2217 = vmatpush1.xpose.msra.mxu0 0.0
      %2218 = vmatprep.subr.mxu0 0.0
      %2219 = vmatpush1.xpose.msra.mxu0 0.0
      %2220 = vmatprep.subr.mxu0 0.0
      %2221 = vmatpush1.xpose.msra.mxu0 0.0
      %2222 = vmatprep.subr.mxu0 0.0
      %2223 = vmatpush1.xpose.msra.mxu0 0.0
      %2224 = vmatprep.subr.mxu0 0.0
      %2225 = vmatpush1.xpose.msra.mxu0 0.0
      %2226 = vmatprep.subr.mxu0 0.0
      %2227 = vmatpush1.xpose.msra.mxu0 0.0
      %2228 = vmatprep.subr.mxu0 0.0
      %2229 = vmatpush1.xpose.msra.mxu0 0.0
      %2230 = vmatprep.subr.mxu0 0.0
      %2231 = vmatpush1.xpose.msra.mxu0 0.0
      %2232 = vmatprep.subr.mxu0 0.0
      %2233 = vmatpush1.xpose.msra.mxu0 0.0
      %2234 = vmatprep.subr.mxu0 0.0
      %2235 = vmatpush1.xpose.msra.mxu0 0.0
      %2236 = vmatprep.subr.mxu0 0.0
      %2237 = vmatpush1.xpose.msra.mxu0 0.0
      %2238 = vmatprep.subr.mxu0 0.0
      %2239 = vmatpush1.xpose.msra.mxu0 0.0
      %2240 = vmatprep.mubr.f32.mxu0 0.0
      %2241 = vmatmul.mubr.f32.gmra.mrb[0].mxu0 %v2159
      %v2242 = vpop.f32.mrb[0].mxu0
      %v2243 = vadd.f32 0.0, %v2242
      %v2244 = vpop.f32.mrb[0].mxu0
      %2245 = vmatprep.mubr.f32.mxu0 0.0
      %2246 = vmatmul.mubr.f32.gmra.mrb[0].mxu0 %v2162
      %v2247 = vpop.f32.mrb[0].mxu0
      %v2248 = vadd.f32 0.0, %v2247
      %v2249 = vpop.f32.mrb[0].mxu0
      %2250 = vmatprep.mubr.f32.mxu0 0.0
      %2251 = vmatmul.mubr.f32.gmra.mrb[0].mxu0 %v2165
      %v2252 = vpop.f32.mrb[0].mxu0
      %v2253 = vadd.f32 0.0, %v2252
      %v2254 = vpop.f32.mrb[0].mxu0
      %2255 = vdwg.mxu0
      %v2256 = vmul.f32 %v2243, 0.17677669
      %v2257 = vmul.f32 %v2248, 0.17677669
      %v2258 = vmul.f32 %v2253, 0.17677669
      %v2259 = vadd.f32 %v2256, %v2156
      %v2260 = vadd.f32 %v2257, %v2156
      %v2261 = vadd.f32 %v2258, %v2156
      %vm2262 = vcmask 195584
      %v2263 = vsel %vm2262, %v2259, -inf
      %2264 = vmax.xlane.f32.xlu0 %v2263
      %v2265 = vpop.xlane.xlu0 %2264
      %v2266 = vsel %vm2262, %v2260, -inf
      %2267 = vmax.xlane.f32.xlu0 %v2266
      %v2268 = vpop.xlane.xlu0 %2267
      %v2269 = vsel %vm2262, %v2261, -inf
      %2270 = vmax.xlane.f32.xlu0 %v2269
      %v2271 = vpop.xlane.xlu0 %2270
      %v2272 = vsub.f32 %v2259, %v2265
      %v2273 = vsub.f32 %v2260, %v2268
      %v2274 = vsub.f32 %v2261, %v2271
      %v2275 = vmul.f32 %v2272, 1.442695
      %v2276 = vpow.pop %v2275
      %v2277 = vmul.f32 %v2273, 1.442695
      %v2278 = vpow.pop %v2277
      %v2279 = vmul.f32 %v2274, 1.442695
      %v2280 = vpow.pop %v2279
      %v2281 = vsel %vm2262, %v2276, 0.0
      %2282 = vadd.xlane.f32.xlu0 %v2281
      %v2283 = vpop.xlane.xlu0 %2282
      %v2284 = vsel %vm2262, %v2278, 0.0
      %2285 = vadd.xlane.f32.xlu0 %v2284
      %v2286 = vpop.xlane.xlu0 %2285
      %v2287 = vsel %vm2262, %v2280, 0.0
      %2288 = vadd.xlane.f32.xlu0 %v2287
      %v2289 = vpop.xlane.xlu0 %2288
      %v2290 = vrcp.pop %v2283
      %v2291 = vrcp.pop %v2286
      %v2292 = vrcp.pop %v2289
      %v2293 = vmul.f32 %v2276, %v2290
      %v2294 = vmul.f32 %v2278, %v2291
      %v2295 = vmul.f32 %v2280, %v2292
      %v2296 = vpack.c.bf16 %v2294, %v2293
      %v2297 = vpack.c.bf16 %v2295, %v2295
      %v2298 = vpack.c.bf16 %v2143, %v2140
      %v2299 = vpack.c.bf16 %v2148, %v2148
      %v2301 = vsel %vm2262, %v2296, 0
      %v2304 = vsel %vm2262, %v2297, 0
      %vm2306 = vcmask 1043456
      %v2308 = vsel %vm2306, %v2299, 0
      %2310 = vmatprep.subr.bf16.mxu0 0
      %2311 = vmatpush1.bf16.msra.mxu0 %v2298
      %2312 = vmatprep.subr.bf16.mxu0 0
      %2313 = vmatpush1.bf16.msra.mxu0 %v2308
      %2314 = vmatprep.subr.bf16.mxu0 0
      %2315 = vmatpush1.bf16.msra.mxu0 0
      %2316 = vmatprep.subr.bf16.mxu0 0
      %2317 = vmatpush1.bf16.msra.mxu0 0
      %2318 = vmatprep.subr.bf16.mxu0 0
      %2319 = vmatpush1.bf16.msra.mxu0 0
      %2320 = vmatprep.subr.bf16.mxu0 0
      %2321 = vmatpush1.bf16.msra.mxu0 0
      %2322 = vmatprep.subr.bf16.mxu0 0
      %2323 = vmatpush1.bf16.msra.mxu0 0
      %2324 = vmatprep.subr.bf16.mxu0 0
      %2325 = vmatpush1.bf16.msra.mxu0 0
      %2326 = vmatprep.subr.bf16.mxu0 0
      %2327 = vmatpush1.bf16.msra.mxu0 0
      %2328 = vmatprep.subr.bf16.mxu0 0
      %2329 = vmatpush1.bf16.msra.mxu0 0
      %2330 = vmatprep.subr.bf16.mxu0 0
      %2331 = vmatpush1.bf16.msra.mxu0 0
      %2332 = vmatprep.subr.bf16.mxu0 0
      %2333 = vmatpush1.bf16.msra.mxu0 0
      %2334 = vmatprep.subr.bf16.mxu0 0
      %2335 = vmatpush1.bf16.msra.mxu0 0
      %2336 = vmatprep.subr.bf16.mxu0 0
      %2337 = vmatpush1.bf16.msra.mxu0 0
      %2338 = vmatprep.subr.bf16.mxu0 0
      %2339 = vmatpush1.bf16.msra.mxu0 0
      %2340 = vmatprep.subr.bf16.mxu0 0
      %2341 = vmatpush1.bf16.msra.mxu0 0
      %2342 = vmatprep.mubr.bf16.mxu0 0
      %2343 = vmatmul.mubr.bf16.gmra.mrb[0].mxu0 %v2301
      %v2344 = vpop.f32.mrb[0].mxu0
      %v2345 = vadd.f32 0.0, %v2344
      %v2346 = vpop.f32.mrb[0].mxu0
      %v2347 = vpop.f32.mrb[0].mxu0
      %v2348 = vadd.f32 0.0, %v2347
      %v2349 = vpop.f32.mrb[0].mxu0
      %2350 = vmatprep.mubr.bf16.mxu0 0
      %2351 = vmatmul.mubr.bf16.gmra.mrb[0].mxu0 %v2304
      %v2352 = vpop.f32.mrb[0].mxu0
      %v2353 = vadd.f32 0.0, %v2352
      %v2354 = vpop.f32.mrb[0].mxu0
      %v2355 = vpop.f32.mrb[0].mxu0
      %v2356 = vpop.f32.mrb[0].mxu0
      %2357 = vdwg.mxu0
      %2358 = vrot.lane.b32.xlu0 %v2089, 96
      %v2359 = vpop.permute.xlu0 %2358
      %2360 = vrot.lane.b32.xlu0 %v2093, 96
      %v2361 = vpop.permute.xlu0 %2360
      %2362 = vrot.lane.b32.xlu0 %v2099, 96
      %v2363 = vpop.permute.xlu0 %2362
      %2364 = vrot.lane.b32.xlu0 %v2091, 96
      %v2365 = vpop.permute.xlu0 %2364
      %2366 = vrot.lane.b32.xlu0 %v2095, 96
      %v2367 = vpop.permute.xlu0 %2366
      %2368 = vrot.lane.b32.xlu0 %v2101, 96
      %v2369 = vpop.permute.xlu0 %2368
      %v2370 = vsel %vm2157, %v2359, 0
      %v2372 = vsel %vm2157, %v2361, 0
      %v2374 = vsel %vm2157, %v2363, 0
      %v2376 = vsel %vm2157, %v2365, 0
      %v2378 = vsel %vm2157, %v2367, 0
      %v2380 = vsel %vm2157, %v2369, 0
      %2382 = vmatprep.subr.mxu0 0.0
      %2383 = vmatpush1.xpose.msra.mxu0 %v2376
      %2384 = vmatprep.subr.mxu0 0.0
      %2385 = vmatpush1.xpose.msra.mxu0 %v2378
      %2386 = vmatprep.subr.mxu0 0.0
      %2387 = vmatpush1.xpose.msra.mxu0 %v2380
      %2388 = vmatprep.subr.mxu0 0.0
      %2389 = vmatpush1.xpose.msra.mxu0 0.0
      %2390 = vmatprep.subr.mxu0 0.0
      %2391 = vmatpush1.xpose.msra.mxu0 0.0
      %2392 = vmatprep.subr.mxu0 0.0
      %2393 = vmatpush1.xpose.msra.mxu0 0.0
      %2394 = vmatprep.subr.mxu0 0.0
      %2395 = vmatpush1.xpose.msra.mxu0 0.0
      %2396 = vmatprep.subr.mxu0 0.0
      %2397 = vmatpush1.xpose.msra.mxu0 0.0
      %2398 = vmatprep.subr.mxu0 0.0
      %2399 = vmatpush1.xpose.msra.mxu0 0.0
      %2400 = vmatprep.subr.mxu0 0.0
      %2401 = vmatpush1.xpose.msra.mxu0 0.0
      %2402 = vmatprep.subr.mxu0 0.0
      %2403 = vmatpush1.xpose.msra.mxu0 0.0
      %2404 = vmatprep.subr.mxu0 0.0
      %2405 = vmatpush1.xpose.msra.mxu0 0.0
      %2406 = vmatprep.subr.mxu0 0.0
      %2407 = vmatpush1.xpose.msra.mxu0 0.0
      %2408 = vmatprep.subr.mxu0 0.0
      %2409 = vmatpush1.xpose.msra.mxu0 0.0
      %2410 = vmatprep.subr.mxu0 0.0
      %2411 = vmatpush1.xpose.msra.mxu0 0.0
      %2412 = vmatprep.subr.mxu0 0.0
      %2413 = vmatpush1.xpose.msra.mxu0 0.0
      %2414 = vmatprep.subr.mxu0 0.0
      %2415 = vmatpush1.xpose.msra.mxu0 0.0
      %2416 = vmatprep.subr.mxu0 0.0
      %2417 = vmatpush1.xpose.msra.mxu0 0.0
      %2418 = vmatprep.subr.mxu0 0.0
      %2419 = vmatpush1.xpose.msra.mxu0 0.0
      %2420 = vmatprep.subr.mxu0 0.0
      %2421 = vmatpush1.xpose.msra.mxu0 0.0
      %2422 = vmatprep.subr.mxu0 0.0
      %2423 = vmatpush1.xpose.msra.mxu0 0.0
      %2424 = vmatprep.subr.mxu0 0.0
      %2425 = vmatpush1.xpose.msra.mxu0 0.0
      %2426 = vmatprep.subr.mxu0 0.0
      %2427 = vmatpush1.xpose.msra.mxu0 0.0
      %2428 = vmatprep.subr.mxu0 0.0
      %2429 = vmatpush1.xpose.msra.mxu0 0.0
      %2430 = vmatprep.subr.mxu0 0.0
      %2431 = vmatpush1.xpose.msra.mxu0 0.0
      %2432 = vmatprep.subr.mxu0 0.0
      %2433 = vmatpush1.xpose.msra.mxu0 0.0
      %2434 = vmatprep.subr.mxu0 0.0
      %2435 = vmatpush1.xpose.msra.mxu0 0.0
      %2436 = vmatprep.subr.mxu0 0.0
      %2437 = vmatpush1.xpose.msra.mxu0 0.0
      %2438 = vmatprep.subr.mxu0 0.0
      %2439 = vmatpush1.xpose.msra.mxu0 0.0
      %2440 = vmatprep.subr.mxu0 0.0
      %2441 = vmatpush1.xpose.msra.mxu0 0.0
      %2442 = vmatprep.subr.mxu0 0.0
      %2443 = vmatpush1.xpose.msra.mxu0 0.0
      %2444 = vmatprep.subr.mxu0 0.0
      %2445 = vmatpush1.xpose.msra.mxu0 0.0
      %2446 = vmatprep.mubr.f32.mxu0 0.0
      %2447 = vmatmul.mubr.f32.gmra.mrb[0].mxu0 %v2370
      %v2448 = vpop.f32.mrb[0].mxu0
      %v2449 = vadd.f32 0.0, %v2448
      %v2450 = vpop.f32.mrb[0].mxu0
      %2451 = vmatprep.mubr.f32.mxu0 0.0
      %2452 = vmatmul.mubr.f32.gmra.mrb[0].mxu0 %v2372
      %v2453 = vpop.f32.mrb[0].mxu0
      %v2454 = vadd.f32 0.0, %v2453
      %v2455 = vpop.f32.mrb[0].mxu0
      %2456 = vmatprep.mubr.f32.mxu0 0.0
      %2457 = vmatmul.mubr.f32.gmra.mrb[0].mxu0 %v2374
      %v2458 = vpop.f32.mrb[0].mxu0
      %v2459 = vadd.f32 0.0, %v2458
      %v2460 = vpop.f32.mrb[0].mxu0
      %2461 = vdwg.mxu0
      %v2462 = vmul.f32 %v2449, 0.17677669
      %v2463 = vmul.f32 %v2454, 0.17677669
      %v2464 = vmul.f32 %v2459, 0.17677669
      %v2465 = vadd.f32 %v2462, %v2156
      %v2466 = vadd.f32 %v2463, %v2156
      %v2467 = vadd.f32 %v2464, %v2156
      %v2468 = vsel %vm2262, %v2465, -inf
      %2469 = vmax.xlane.f32.xlu0 %v2468
      %v2470 = vpop.xlane.xlu0 %2469
      %v2471 = vsel %vm2262, %v2466, -inf
      %2472 = vmax.xlane.f32.xlu0 %v2471
      %v2473 = vpop.xlane.xlu0 %2472
      %v2474 = vsel %vm2262, %v2467, -inf
      %2475 = vmax.xlane.f32.xlu0 %v2474
      %v2476 = vpop.xlane.xlu0 %2475
      %v2477 = vsub.f32 %v2465, %v2470
      %v2478 = vsub.f32 %v2466, %v2473
      %v2479 = vsub.f32 %v2467, %v2476
      %v2480 = vmul.f32 %v2477, 1.442695
      %v2481 = vpow.pop %v2480
      %v2482 = vmul.f32 %v2478, 1.442695
      %v2483 = vpow.pop %v2482
      %v2484 = vmul.f32 %v2479, 1.442695
      %v2485 = vpow.pop %v2484
      %v2486 = vsel %vm2262, %v2481, 0.0
      %2487 = vadd.xlane.f32.xlu0 %v2486
      %v2488 = vpop.xlane.xlu0 %2487
      %v2489 = vsel %vm2262, %v2483, 0.0
      %2490 = vadd.xlane.f32.xlu0 %v2489
      %v2491 = vpop.xlane.xlu0 %2490
      %v2492 = vsel %vm2262, %v2485, 0.0
      %2493 = vadd.xlane.f32.xlu0 %v2492
      %v2494 = vpop.xlane.xlu0 %2493
      %v2495 = vrcp.pop %v2488
      %v2496 = vrcp.pop %v2491
      %v2497 = vrcp.pop %v2494
      %v2498 = vmul.f32 %v2481, %v2495
      %v2499 = vmul.f32 %v2483, %v2496
      %v2500 = vmul.f32 %v2485, %v2497
      %v2501 = vpack.c.bf16 %v2499, %v2498
      %v2502 = vpack.c.bf16 %v2500, %v2500
      %2505 = vrot.lane.b32.xlu0 %v2298, 96
      %v2506 = vpop.permute.xlu0 %2505
      %2507 = vrot.lane.b32.xlu0 %v2299, 96
      %v2508 = vpop.permute.xlu0 %2507
      %v2511 = vsel %vm2262, %v2501, 0
      %v2514 = vsel %vm2262, %v2502, 0
      %v2517 = vsel %vm2306, %v2508, 0
      %2519 = vmatprep.subr.bf16.mxu0 0
      %2520 = vmatpush1.bf16.msra.mxu0 %v2506
      %2521 = vmatprep.subr.bf16.mxu0 0
      %2522 = vmatpush1.bf16.msra.mxu0 %v2517
      %2523 = vmatprep.subr.bf16.mxu0 0
      %2524 = vmatpush1.bf16.msra.mxu0 0
      %2525 = vmatprep.subr.bf16.mxu0 0
      %2526 = vmatpush1.bf16.msra.mxu0 0
      %2527 = vmatprep.subr.bf16.mxu0 0
      %2528 = vmatpush1.bf16.msra.mxu0 0
      %2529 = vmatprep.subr.bf16.mxu0 0
      %2530 = vmatpush1.bf16.msra.mxu0 0
      %2531 = vmatprep.subr.bf16.mxu0 0
      %2532 = vmatpush1.bf16.msra.mxu0 0
      %2533 = vmatprep.subr.bf16.mxu0 0
      %2534 = vmatpush1.bf16.msra.mxu0 0
      %2535 = vmatprep.subr.bf16.mxu0 0
      %2536 = vmatpush1.bf16.msra.mxu0 0
      %2537 = vmatprep.subr.bf16.mxu0 0
      %2538 = vmatpush1.bf16.msra.mxu0 0
      %2539 = vmatprep.subr.bf16.mxu0 0
      %2540 = vmatpush1.bf16.msra.mxu0 0
      %2541 = vmatprep.subr.bf16.mxu0 0
      %2542 = vmatpush1.bf16.msra.mxu0 0
      %2543 = vmatprep.subr.bf16.mxu0 0
      %2544 = vmatpush1.bf16.msra.mxu0 0
      %2545 = vmatprep.subr.bf16.mxu0 0
      %2546 = vmatpush1.bf16.msra.mxu0 0
      %2547 = vmatprep.subr.bf16.mxu0 0
      %2548 = vmatpush1.bf16.msra.mxu0 0
      %2549 = vmatprep.subr.bf16.mxu0 0
      %2550 = vmatpush1.bf16.msra.mxu0 0
      %2551 = vmatprep.mubr.bf16.mxu0 0
      %2552 = vmatmul.mubr.bf16.gmra.mrb[0].mxu0 %v2511
      %v2553 = vpop.f32.mrb[0].mxu0
      %v2554 = vadd.f32 0.0, %v2553
      %v2555 = vpop.f32.mrb[0].mxu0
      %v2556 = vpop.f32.mrb[0].mxu0
      %v2557 = vadd.f32 0.0, %v2556
      %v2558 = vpop.f32.mrb[0].mxu0
      %2559 = vmatprep.mubr.bf16.mxu0 0
      %2560 = vmatmul.mubr.bf16.gmra.mrb[0].mxu0 %v2514
      %v2561 = vpop.f32.mrb[0].mxu0
      %v2562 = vadd.f32 0.0, %v2561
      %v2563 = vpop.f32.mrb[0].mxu0
      %v2564 = vpop.f32.mrb[0].mxu0
      %v2565 = vpop.f32.mrb[0].mxu0
      %2566 = vdwg.mxu0
      %2567 = vrot.lane.b32.xlu0 %v2089, 64
      %v2568 = vpop.permute.xlu0 %2567
      %2569 = vrot.lane.b32.xlu0 %v2093, 64
      %v2570 = vpop.permute.xlu0 %2569
      %2571 = vrot.lane.b32.xlu0 %v2099, 64
      %v2572 = vpop.permute.xlu0 %2571
      %2573 = vrot.lane.b32.xlu0 %v2091, 64
      %v2574 = vpop.permute.xlu0 %2573
      %2575 = vrot.lane.b32.xlu0 %v2095, 64
      %v2576 = vpop.permute.xlu0 %2575
      %2577 = vrot.lane.b32.xlu0 %v2101, 64
      %v2578 = vpop.permute.xlu0 %2577
      %v2579 = vsel %vm2157, %v2568, 0
      %v2581 = vsel %vm2157, %v2570, 0
      %v2583 = vsel %vm2157, %v2572, 0
      %v2585 = vsel %vm2157, %v2574, 0
      %v2587 = vsel %vm2157, %v2576, 0
      %v2589 = vsel %vm2157, %v2578, 0
      %2591 = vmatprep.subr.mxu0 0.0
      %2592 = vmatpush1.xpose.msra.mxu0 %v2585
      %2593 = vmatprep.subr.mxu0 0.0
      %2594 = vmatpush1.xpose.msra.mxu0 %v2587
      %2595 = vmatprep.subr.mxu0 0.0
      %2596 = vmatpush1.xpose.msra.mxu0 %v2589
      %2597 = vmatprep.subr.mxu0 0.0
      %2598 = vmatpush1.xpose.msra.mxu0 0.0
      %2599 = vmatprep.subr.mxu0 0.0
      %2600 = vmatpush1.xpose.msra.mxu0 0.0
      %2601 = vmatprep.subr.mxu0 0.0
      %2602 = vmatpush1.xpose.msra.mxu0 0.0
      %2603 = vmatprep.subr.mxu0 0.0
      %2604 = vmatpush1.xpose.msra.mxu0 0.0
      %2605 = vmatprep.subr.mxu0 0.0
      %2606 = vmatpush1.xpose.msra.mxu0 0.0
      %2607 = vmatprep.subr.mxu0 0.0
      %2608 = vmatpush1.xpose.msra.mxu0 0.0
      %2609 = vmatprep.subr.mxu0 0.0
      %2610 = vmatpush1.xpose.msra.mxu0 0.0
      %2611 = vmatprep.subr.mxu0 0.0
      %2612 = vmatpush1.xpose.msra.mxu0 0.0
      %2613 = vmatprep.subr.mxu0 0.0
      %2614 = vmatpush1.xpose.msra.mxu0 0.0
      %2615 = vmatprep.subr.mxu0 0.0
      %2616 = vmatpush1.xpose.msra.mxu0 0.0
      %2617 = vmatprep.subr.mxu0 0.0
      %2618 = vmatpush1.xpose.msra.mxu0 0.0
      %2619 = vmatprep.subr.mxu0 0.0
      %2620 = vmatpush1.xpose.msra.mxu0 0.0
      %2621 = vmatprep.subr.mxu0 0.0
      %2622 = vmatpush1.xpose.msra.mxu0 0.0
      %2623 = vmatprep.subr.mxu0 0.0
      %2624 = vmatpush1.xpose.msra.mxu0 0.0
      %2625 = vmatprep.subr.mxu0 0.0
      %2626 = vmatpush1.xpose.msra.mxu0 0.0
      %2627 = vmatprep.subr.mxu0 0.0
      %2628 = vmatpush1.xpose.msra.mxu0 0.0
      %2629 = vmatprep.subr.mxu0 0.0
      %2630 = vmatpush1.xpose.msra.mxu0 0.0
      %2631 = vmatprep.subr.mxu0 0.0
      %2632 = vmatpush1.xpose.msra.mxu0 0.0
      %2633 = vmatprep.subr.mxu0 0.0
      %2634 = vmatpush1.xpose.msra.mxu0 0.0
      %2635 = vmatprep.subr.mxu0 0.0
      %2636 = vmatpush1.xpose.msra.mxu0 0.0
      %2637 = vmatprep.subr.mxu0 0.0
      %2638 = vmatpush1.xpose.msra.mxu0 0.0
      %2639 = vmatprep.subr.mxu0 0.0
      %2640 = vmatpush1.xpose.msra.mxu0 0.0
      %2641 = vmatprep.subr.mxu0 0.0
      %2642 = vmatpush1.xpose.msra.mxu0 0.0
      %2643 = vmatprep.subr.mxu0 0.0
      %2644 = vmatpush1.xpose.msra.mxu0 0.0
      %2645 = vmatprep.subr.mxu0 0.0
      %2646 = vmatpush1.xpose.msra.mxu0 0.0
      %2647 = vmatprep.subr.mxu0 0.0
      %2648 = vmatpush1.xpose.msra.mxu0 0.0
      %2649 = vmatprep.subr.mxu0 0.0
      %2650 = vmatpush1.xpose.msra.mxu0 0.0
      %2651 = vmatprep.subr.mxu0 0.0
      %2652 = vmatpush1.xpose.msra.mxu0 0.0
      %2653 = vmatprep.subr.mxu0 0.0
      %2654 = vmatpush1.xpose.msra.mxu0 0.0
      %2655 = vmatprep.mubr.f32.mxu0 0.0
      %2656 = vmatmul.mubr.f32.gmra.mrb[0].mxu0 %v2579
      %v2657 = vpop.f32.mrb[0].mxu0
      %v2658 = vadd.f32 0.0, %v2657
      %v2659 = vpop.f32.mrb[0].mxu0
      %2660 = vmatprep.mubr.f32.mxu0 0.0
      %2661 = vmatmul.mubr.f32.gmra.mrb[0].mxu0 %v2581
      %v2662 = vpop.f32.mrb[0].mxu0
      %v2663 = vadd.f32 0.0, %v2662
      %v2664 = vpop.f32.mrb[0].mxu0
      %2665 = vmatprep.mubr.f32.mxu0 0.0
      %2666 = vmatmul.mubr.f32.gmra.mrb[0].mxu0 %v2583
      %v2667 = vpop.f32.mrb[0].mxu0
      %v2668 = vadd.f32 0.0, %v2667
      %v2669 = vpop.f32.mrb[0].mxu0
      %2670 = vdwg.mxu0
      %v2671 = vmul.f32 %v2658, 0.17677669
      %v2672 = vmul.f32 %v2663, 0.17677669
      %v2673 = vmul.f32 %v2668, 0.17677669
      %v2674 = vadd.f32 %v2671, %v2156
      %v2675 = vadd.f32 %v2672, %v2156
      %v2676 = vadd.f32 %v2673, %v2156
      %v2677 = vsel %vm2262, %v2674, -inf
      %2678 = vmax.xlane.f32.xlu0 %v2677
      %v2679 = vpop.xlane.xlu0 %2678
      %v2680 = vsel %vm2262, %v2675, -inf
      %2681 = vmax.xlane.f32.xlu0 %v2680
      %v2682 = vpop.xlane.xlu0 %2681
      %v2683 = vsel %vm2262, %v2676, -inf
      %2684 = vmax.xlane.f32.xlu0 %v2683
      %v2685 = vpop.xlane.xlu0 %2684
      %v2686 = vsub.f32 %v2674, %v2679
      %v2687 = vsub.f32 %v2675, %v2682
      %v2688 = vsub.f32 %v2676, %v2685
      %v2689 = vmul.f32 %v2686, 1.442695
      %v2690 = vpow.pop %v2689
      %v2691 = vmul.f32 %v2687, 1.442695
      %v2692 = vpow.pop %v2691
      %v2693 = vmul.f32 %v2688, 1.442695
      %v2694 = vpow.pop %v2693
      %v2695 = vsel %vm2262, %v2690, 0.0
      %2696 = vadd.xlane.f32.xlu0 %v2695
      %v2697 = vpop.xlane.xlu0 %2696
      %v2698 = vsel %vm2262, %v2692, 0.0
      %2699 = vadd.xlane.f32.xlu0 %v2698
      %v2700 = vpop.xlane.xlu0 %2699
      %v2701 = vsel %vm2262, %v2694, 0.0
      %2702 = vadd.xlane.f32.xlu0 %v2701
      %v2703 = vpop.xlane.xlu0 %2702
      %v2704 = vrcp.pop %v2697
      %v2705 = vrcp.pop %v2700
      %v2706 = vrcp.pop %v2703
      %v2707 = vmul.f32 %v2690, %v2704
      %v2708 = vmul.f32 %v2692, %v2705
      %v2709 = vmul.f32 %v2694, %v2706
      %v2710 = vpack.c.bf16 %v2708, %v2707
      %v2711 = vpack.c.bf16 %v2709, %v2709
      %2712 = vrot.lane.b32.xlu0 %v2298, 64
      %v2713 = vpop.permute.xlu0 %2712
      %2714 = vrot.lane.b32.xlu0 %v2299, 64
      %v2715 = vpop.permute.xlu0 %2714
      %v2718 = vsel %vm2262, %v2710, 0
      %v2721 = vsel %vm2262, %v2711, 0
      %v2724 = vsel %vm2306, %v2715, 0
      %2726 = vmatprep.subr.bf16.mxu0 0
      %2727 = vmatpush1.bf16.msra.mxu0 %v2713
      %2728 = vmatprep.subr.bf16.mxu0 0
      %2729 = vmatpush1.bf16.msra.mxu0 %v2724
      %2730 = vmatprep.subr.bf16.mxu0 0
      %2731 = vmatpush1.bf16.msra.mxu0 0
      %2732 = vmatprep.subr.bf16.mxu0 0
      %2733 = vmatpush1.bf16.msra.mxu0 0
      %2734 = vmatprep.subr.bf16.mxu0 0
      %2735 = vmatpush1.bf16.msra.mxu0 0
      %2736 = vmatprep.subr.bf16.mxu0 0
      %2737 = vmatpush1.bf16.msra.mxu0 0
      %2738 = vmatprep.subr.bf16.mxu0 0
      %2739 = vmatpush1.bf16.msra.mxu0 0
      %2740 = vmatprep.subr.bf16.mxu0 0
      %2741 = vmatpush1.bf16.msra.mxu0 0
      %2742 = vmatprep.subr.bf16.mxu0 0
      %2743 = vmatpush1.bf16.msra.mxu0 0
      %2744 = vmatprep.subr.bf16.mxu0 0
      %2745 = vmatpush1.bf16.msra.mxu0 0
      %2746 = vmatprep.subr.bf16.mxu0 0
      %2747 = vmatpush1.bf16.msra.mxu0 0
      %2748 = vmatprep.subr.bf16.mxu0 0
      %2749 = vmatpush1.bf16.msra.mxu0 0
      %2750 = vmatprep.subr.bf16.mxu0 0
      %2751 = vmatpush1.bf16.msra.mxu0 0
      %2752 = vmatprep.subr.bf16.mxu0 0
      %2753 = vmatpush1.bf16.msra.mxu0 0
      %2754 = vmatprep.subr.bf16.mxu0 0
      %2755 = vmatpush1.bf16.msra.mxu0 0
      %2756 = vmatprep.subr.bf16.mxu0 0
      %2757 = vmatpush1.bf16.msra.mxu0 0
      %2758 = vmatprep.mubr.bf16.mxu0 0
      %2759 = vmatmul.mubr.bf16.gmra.mrb[0].mxu0 %v2718
      %v2760 = vpop.f32.mrb[0].mxu0
      %v2761 = vadd.f32 0.0, %v2760
      %v2762 = vpop.f32.mrb[0].mxu0
      %v2763 = vpop.f32.mrb[0].mxu0
      %v2764 = vadd.f32 0.0, %v2763
      %v2765 = vpop.f32.mrb[0].mxu0
      %2766 = vmatprep.mubr.bf16.mxu0 0
      %2767 = vmatmul.mubr.bf16.gmra.mrb[0].mxu0 %v2721
      %v2768 = vpop.f32.mrb[0].mxu0
      %v2769 = vadd.f32 0.0, %v2768
      %v2770 = vpop.f32.mrb[0].mxu0
      %v2771 = vpop.f32.mrb[0].mxu0
      %v2772 = vpop.f32.mrb[0].mxu0
      %2773 = vdwg.mxu0
      %2774 = vrot.lane.b32.xlu0 %v2089, 32
      %v2775 = vpop.permute.xlu0 %2774
      %2776 = vrot.lane.b32.xlu0 %v2093, 32
      %v2777 = vpop.permute.xlu0 %2776
      %2778 = vrot.lane.b32.xlu0 %v2099, 32
      %v2779 = vpop.permute.xlu0 %2778
      %2780 = vrot.lane.b32.xlu0 %v2091, 32
      %v2781 = vpop.permute.xlu0 %2780
      %2782 = vrot.lane.b32.xlu0 %v2095, 32
      %v2783 = vpop.permute.xlu0 %2782
      %2784 = vrot.lane.b32.xlu0 %v2101, 32
      %v2785 = vpop.permute.xlu0 %2784
      %v2786 = vsel %vm2157, %v2775, 0
      %v2788 = vsel %vm2157, %v2777, 0
      %v2790 = vsel %vm2157, %v2779, 0
      %v2792 = vsel %vm2157, %v2781, 0
      %v2794 = vsel %vm2157, %v2783, 0
      %v2796 = vsel %vm2157, %v2785, 0
      %2798 = vmatprep.subr.mxu0 0.0
      %2799 = vmatpush1.xpose.msra.mxu0 %v2792
      %2800 = vmatprep.subr.mxu0 0.0
      %2801 = vmatpush1.xpose.msra.mxu0 %v2794
      %2802 = vmatprep.subr.mxu0 0.0
      %2803 = vmatpush1.xpose.msra.mxu0 %v2796
      %2804 = vmatprep.subr.mxu0 0.0
      %2805 = vmatpush1.xpose.msra.mxu0 0.0
      %2806 = vmatprep.subr.mxu0 0.0
      %2807 = vmatpush1.xpose.msra.mxu0 0.0
      %2808 = vmatprep.subr.mxu0 0.0
      %2809 = vmatpush1.xpose.msra.mxu0 0.0
      %2810 = vmatprep.subr.mxu0 0.0
      %2811 = vmatpush1.xpose.msra.mxu0 0.0
      %2812 = vmatprep.subr.mxu0 0.0
      %2813 = vmatpush1.xpose.msra.mxu0 0.0
      %2814 = vmatprep.subr.mxu0 0.0
      %2815 = vmatpush1.xpose.msra.mxu0 0.0
      %2816 = vmatprep.subr.mxu0 0.0
      %2817 = vmatpush1.xpose.msra.mxu0 0.0
      %2818 = vmatprep.subr.mxu0 0.0
      %2819 = vmatpush1.xpose.msra.mxu0 0.0
      %2820 = vmatprep.subr.mxu0 0.0
      %2821 = vmatpush1.xpose.msra.mxu0 0.0
      %2822 = vmatprep.subr.mxu0 0.0
      %2823 = vmatpush1.xpose.msra.mxu0 0.0
      %2824 = vmatprep.subr.mxu0 0.0
      %2825 = vmatpush1.xpose.msra.mxu0 0.0
      %2826 = vmatprep.subr.mxu0 0.0
      %2827 = vmatpush1.xpose.msra.mxu0 0.0
      %2828 = vmatprep.subr.mxu0 0.0
      %2829 = vmatpush1.xpose.msra.mxu0 0.0
      %2830 = vmatprep.subr.mxu0 0.0
      %2831 = vmatpush1.xpose.msra.mxu0 0.0
      %2832 = vmatprep.subr.mxu0 0.0
      %2833 = vmatpush1.xpose.msra.mxu0 0.0
      %2834 = vmatprep.subr.mxu0 0.0
      %2835 = vmatpush1.xpose.msra.mxu0 0.0
      %2836 = vmatprep.subr.mxu0 0.0
      %2837 = vmatpush1.xpose.msra.mxu0 0.0
      %2838 = vmatprep.subr.mxu0 0.0
      %2839 = vmatpush1.xpose.msra.mxu0 0.0
      %2840 = vmatprep.subr.mxu0 0.0
      %2841 = vmatpush1.xpose.msra.mxu0 0.0
      %2842 = vmatprep.subr.mxu0 0.0
      %2843 = vmatpush1.xpose.msra.mxu0 0.0
      %2844 = vmatprep.subr.mxu0 0.0
      %2845 = vmatpush1.xpose.msra.mxu0 0.0
      %2846 = vmatprep.subr.mxu0 0.0
      %2847 = vmatpush1.xpose.msra.mxu0 0.0
      %2848 = vmatprep.subr.mxu0 0.0
      %2849 = vmatpush1.xpose.msra.mxu0 0.0
      %2850 = vmatprep.subr.mxu0 0.0
      %2851 = vmatpush1.xpose.msra.mxu0 0.0
      %2852 = vmatprep.subr.mxu0 0.0
      %2853 = vmatpush1.xpose.msra.mxu0 0.0
      %2854 = vmatprep.subr.mxu0 0.0
      %2855 = vmatpush1.xpose.msra.mxu0 0.0
      %2856 = vmatprep.subr.mxu0 0.0
      %2857 = vmatpush1.xpose.msra.mxu0 0.0
      %2858 = vmatprep.subr.mxu0 0.0
      %2859 = vmatpush1.xpose.msra.mxu0 0.0
      %2860 = vmatprep.subr.mxu0 0.0
      %2861 = vmatpush1.xpose.msra.mxu0 0.0
      %2862 = vmatprep.mubr.f32.mxu0 0.0
      %2863 = vmatmul.mubr.f32.gmra.mrb[0].mxu0 %v2786
      %v2864 = vpop.f32.mrb[0].mxu0
      %v2865 = vadd.f32 0.0, %v2864
      %v2866 = vpop.f32.mrb[0].mxu0
      %2867 = vmatprep.mubr.f32.mxu0 0.0
      %2868 = vmatmul.mubr.f32.gmra.mrb[0].mxu0 %v2788
      %v2869 = vpop.f32.mrb[0].mxu0
      %v2870 = vadd.f32 0.0, %v2869
      %v2871 = vpop.f32.mrb[0].mxu0
      %2872 = vmatprep.mubr.f32.mxu0 0.0
      %2873 = vmatmul.mubr.f32.gmra.mrb[0].mxu0 %v2790
      %v2874 = vpop.f32.mrb[0].mxu0
      %v2875 = vadd.f32 0.0, %v2874
      %v2876 = vpop.f32.mrb[0].mxu0
      %2877 = vdwg.mxu0
      %v2878 = vmul.f32 %v2865, 0.17677669
      %v2879 = vmul.f32 %v2870, 0.17677669
      %v2880 = vmul.f32 %v2875, 0.17677669
      %v2881 = vadd.f32 %v2878, %v2156
      %v2882 = vadd.f32 %v2879, %v2156
      %v2883 = vadd.f32 %v2880, %v2156
      %v2884 = vsel %vm2262, %v2881, -inf
      %2885 = vmax.xlane.f32.xlu0 %v2884
      %v2886 = vpop.xlane.xlu0 %2885
      %v2887 = vsel %vm2262, %v2882, -inf
      %2888 = vmax.xlane.f32.xlu0 %v2887
      %v2889 = vpop.xlane.xlu0 %2888
      %v2890 = vsel %vm2262, %v2883, -inf
      %2891 = vmax.xlane.f32.xlu0 %v2890
      %v2892 = vpop.xlane.xlu0 %2891
      %v2893 = vsub.f32 %v2881, %v2886
      %v2894 = vsub.f32 %v2882, %v2889
      %v2895 = vsub.f32 %v2883, %v2892
      %v2896 = vmul.f32 %v2893, 1.442695
      %v2897 = vpow.pop %v2896
      %v2898 = vmul.f32 %v2894, 1.442695
      %v2899 = vpow.pop %v2898
      %v2900 = vmul.f32 %v2895, 1.442695
      %v2901 = vpow.pop %v2900
      %v2902 = vsel %vm2262, %v2897, 0.0
      %2903 = vadd.xlane.f32.xlu0 %v2902
      %v2904 = vpop.xlane.xlu0 %2903
      %v2905 = vsel %vm2262, %v2899, 0.0
      %2906 = vadd.xlane.f32.xlu0 %v2905
      %v2907 = vpop.xlane.xlu0 %2906
      %v2908 = vsel %vm2262, %v2901, 0.0
      %2909 = vadd.xlane.f32.xlu0 %v2908
      %v2910 = vpop.xlane.xlu0 %2909
      %v2911 = vrcp.pop %v2904
      %v2912 = vrcp.pop %v2907
      %v2913 = vrcp.pop %v2910
      %v2914 = vmul.f32 %v2897, %v2911
      %v2915 = vmul.f32 %v2899, %v2912
      %v2916 = vmul.f32 %v2901, %v2913
      %v2917 = vpack.c.bf16 %v2915, %v2914
      %v2918 = vpack.c.bf16 %v2916, %v2916
      %2919 = vrot.lane.b32.xlu0 %v2298, 32
      %v2920 = vpop.permute.xlu0 %2919
      %2921 = vrot.lane.b32.xlu0 %v2299, 32
      %v2922 = vpop.permute.xlu0 %2921
      %v2925 = vsel %vm2262, %v2917, 0
      %v2928 = vsel %vm2262, %v2918, 0
      %v2931 = vsel %vm2306, %v2922, 0
      %2933 = vmatprep.subr.bf16.mxu0 0
      %2934 = vmatpush1.bf16.msra.mxu0 %v2920
      %2935 = vmatprep.subr.bf16.mxu0 0
      %2936 = vmatpush1.bf16.msra.mxu0 %v2931
      %2937 = vmatprep.subr.bf16.mxu0 0
      %2938 = vmatpush1.bf16.msra.mxu0 0
      %2939 = vmatprep.subr.bf16.mxu0 0
      %2940 = vmatpush1.bf16.msra.mxu0 0
      %2941 = vmatprep.subr.bf16.mxu0 0
      %2942 = vmatpush1.bf16.msra.mxu0 0
      %2943 = vmatprep.subr.bf16.mxu0 0
      %2944 = vmatpush1.bf16.msra.mxu0 0
      %2945 = vmatprep.subr.bf16.mxu0 0
      %2946 = vmatpush1.bf16.msra.mxu0 0
      %2947 = vmatprep.subr.bf16.mxu0 0
      %2948 = vmatpush1.bf16.msra.mxu0 0
      %2949 = vmatprep.subr.bf16.mxu0 0
      %2950 = vmatpush1.bf16.msra.mxu0 0
      %2951 = vmatprep.subr.bf16.mxu0 0
      %2952 = vmatpush1.bf16.msra.mxu0 0
      %2953 = vmatprep.subr.bf16.mxu0 0
      %2954 = vmatpush1.bf16.msra.mxu0 0
      %2955 = vmatprep.subr.bf16.mxu0 0
      %2956 = vmatpush1.bf16.msra.mxu0 0
      %2957 = vmatprep.subr.bf16.mxu0 0
      %2958 = vmatpush1.bf16.msra.mxu0 0
      %2959 = vmatprep.subr.bf16.mxu0 0
      %2960 = vmatpush1.bf16.msra.mxu0 0
      %2961 = vmatprep.subr.bf16.mxu0 0
      %2962 = vmatpush1.bf16.msra.mxu0 0
      %2963 = vmatprep.subr.bf16.mxu0 0
      %2964 = vmatpush1.bf16.msra.mxu0 0
      %2965 = vmatprep.mubr.bf16.mxu0 0
      %2966 = vmatmul.mubr.bf16.gmra.mrb[0].mxu0 %v2925
      %v2967 = vpop.f32.mrb[0].mxu0
      %v2968 = vadd.f32 0.0, %v2967
      %v2969 = vpop.f32.mrb[0].mxu0
      %v2970 = vpop.f32.mrb[0].mxu0
      %v2971 = vadd.f32 0.0, %v2970
      %v2972 = vpop.f32.mrb[0].mxu0
      %2973 = vmatprep.mubr.bf16.mxu0 0
      %2974 = vmatmul.mubr.bf16.gmra.mrb[0].mxu0 %v2928
      %v2975 = vpop.f32.mrb[0].mxu0
      %v2976 = vadd.f32 0.0, %v2975
      %v2977 = vpop.f32.mrb[0].mxu0
      %v2978 = vpop.f32.mrb[0].mxu0
      %v2979 = vpop.f32.mrb[0].mxu0
      %2980 = vdwg.mxu0
      %2984 = vrot.lane.b32.xlu0 %v2554, 32
      %v2985 = vpop.permute.xlu0 %2984
      %2986 = vrot.lane.b32.xlu0 %v2557, 32
      %v2987 = vpop.permute.xlu0 %2986
      %2988 = vrot.lane.b32.xlu0 %v2562, 32
      %v2989 = vpop.permute.xlu0 %2988
      %2996 = vrot.lane.b32.xlu0 %v2761, 64
      %v2997 = vpop.permute.xlu0 %2996
      %2998 = vrot.lane.b32.xlu0 %v2764, 64
      %v2999 = vpop.permute.xlu0 %2998
      %3000 = vrot.lane.b32.xlu0 %v2769, 64
      %v3001 = vpop.permute.xlu0 %3000
      %3008 = vrot.lane.b32.xlu0 %v2968, 96
      %v3009 = vpop.permute.xlu0 %3008
      %3010 = vrot.lane.b32.xlu0 %v2971, 96
      %v3011 = vpop.permute.xlu0 %3010
      %3012 = vrot.lane.b32.xlu0 %v2976, 96
      %v3013 = vpop.permute.xlu0 %3012
      %v3017 = vsel %vm2157, %v2345, %v2985
      %v3018 = vsel %vm2157, %v2348, %v2987
      %v3019 = vsel %vm2157, %v2353, %v2989
      %vm3020 = vcmask 523264
      %v3021 = vsel %vm3020, %v3017, %v2997
      %v3022 = vsel %vm3020, %v3018, %v2999
      %v3023 = vsel %vm3020, %v3019, %v3001
      %vm3024 = vcmask 785408
      %v3025 = vsel %vm3024, %v3021, %v3009
      %v3026 = vsel %vm3024, %v3022, %v3011
      %v3027 = vsel %vm3024, %v3023, %v3013
      %v3028 = vpack.c.bf16 %v3026, %v3025
      %v3029 = vpack.c.bf16 %v3027, %v3027
      %v3030 = vld [vmem:[%s889] sm:$0xf]
      %v3031 = vld [vmem:[%s889 + $0x4] sm:$0xf]
      %v3032 = vld [vmem:[%s889 + $0x8] sm:$0xf]
      %v3033 = vld [vmem:[%s889 + $0xc] sm:$0xf]
      %v3034 = vld [vmem:[%s889 + $0x10] sm:$0xf]
      %v3035 = vld [vmem:[%s889 + $0x14] sm:$0xf]
      %v3036 = vld [vmem:[%s889 + $0x18] sm:$0xf]
      %v3037 = vld [vmem:[%s889 + $0x1c] sm:$0xf]
      %v3038 = vld [vmem:[%s889 + $0x20] sm:$0xf]
      %v3039 = vld [vmem:[%s889 + $0x24] sm:$0xf]
      %v3040 = vld [vmem:[%s889 + $0x28] sm:$0xf]
      %v3041 = vld [vmem:[%s889 + $0x2c] sm:$0xf]
      %v3042 = vld [vmem:[%s889 + $0x30] sm:$0xf]
      %v3043 = vld [vmem:[%s889 + $0x34] sm:$0xf]
      %v3044 = vld [vmem:[%s889 + $0x38] sm:$0xf]
      %v3045 = vld [vmem:[%s889 + $0x3c] sm:$0xf]
      %v3062 = vunpack.c.l.b16 %v3030
      %v3063 = vunpack.c.l.b16 %v3031
      %v3064 = vunpack.c.l.b16 %v3032
      %v3065 = vunpack.c.l.b16 %v3033
      %v3066 = vunpack.c.l.b16 %v3034
      %v3067 = vunpack.c.l.b16 %v3035
      %v3068 = vunpack.c.l.b16 %v3036
      %v3069 = vunpack.c.l.b16 %v3037
      %v3070 = vunpack.c.l.b16 %v3038
      %v3071 = vunpack.c.l.b16 %v3039
      %v3072 = vunpack.c.l.b16 %v3040
      %v3073 = vunpack.c.l.b16 %v3041
      %v3074 = vunpack.c.l.b16 %v3042
      %v3075 = vunpack.c.l.b16 %v3043
      %v3076 = vunpack.c.l.b16 %v3044
      %v3077 = vunpack.c.l.b16 %v3045
      %v3078 = vpack.c.b16 %v3063, %v3062
      %v3079 = vpack.c.b16 %v3065, %v3064
      %v3080 = vpack.c.b16 %v3067, %v3066
      %v3081 = vpack.c.b16 %v3069, %v3068
      %v3082 = vpack.c.b16 %v3071, %v3070
      %v3083 = vpack.c.b16 %v3073, %v3072
      %v3084 = vpack.c.b16 %v3075, %v3074
      %v3085 = vpack.c.b16 %v3077, %v3076
      %3094 = vmatprep.subr.bf16.mxu0 0
      %3095 = vmatpush1.bf16.msra.mxu0 %v3078
      %3096 = vmatprep.subr.bf16.mxu0 0
      %3097 = vmatpush1.bf16.msra.mxu0 %v3079
      %3098 = vmatprep.subr.bf16.mxu0 0
      %3099 = vmatpush1.bf16.msra.mxu0 %v3080
      %3100 = vmatprep.subr.bf16.mxu0 0
      %3101 = vmatpush1.bf16.msra.mxu0 %v3081
      %3102 = vmatprep.subr.bf16.mxu0 0
      %3103 = vmatpush1.bf16.msra.mxu0 %v3082
      %3104 = vmatprep.subr.bf16.mxu0 0
      %3105 = vmatpush1.bf16.msra.mxu0 %v3083
      %3106 = vmatprep.subr.bf16.mxu0 0
      %3107 = vmatpush1.bf16.msra.mxu0 %v3084
      %3108 = vmatprep.subr.bf16.mxu0 0
      %3109 = vmatpush1.bf16.msra.mxu0 %v3085
      %3110 = vmatprep.subr.bf16.mxu0 0
      %3111 = vmatpush1.bf16.msra.mxu0 0
      %3112 = vmatprep.subr.bf16.mxu0 0
      %3113 = vmatpush1.bf16.msra.mxu0 0
      %3114 = vmatprep.subr.bf16.mxu0 0
      %3115 = vmatpush1.bf16.msra.mxu0 0
      %3116 = vmatprep.subr.bf16.mxu0 0
      %3117 = vmatpush1.bf16.msra.mxu0 0
      %3118 = vmatprep.subr.bf16.mxu0 0
      %3119 = vmatpush1.bf16.msra.mxu0 0
      %3120 = vmatprep.subr.bf16.mxu0 0
      %3121 = vmatpush1.bf16.msra.mxu0 0
      %3122 = vmatprep.subr.bf16.mxu0 0
      %3123 = vmatpush1.bf16.msra.mxu0 0
      %3124 = vmatprep.subr.bf16.mxu0 0
      %3125 = vmatpush1.bf16.msra.mxu0 0
      %3126 = vmatprep.mubr.bf16.mxu0 0
      %3127 = vmatmul.mubr.bf16.gmra.mrb[0].mxu0 %v3028
      %v3128 = vpop.f32.mrb[0].mxu0
      %v3129 = vadd.f32 0.0, %v3128
      %v3130 = vpop.f32.mrb[0].mxu0
      %v3131 = vpop.f32.mrb[0].mxu0
      %v3132 = vadd.f32 0.0, %v3131
      %v3133 = vpop.f32.mrb[0].mxu0
      %3134 = vmatprep.mubr.bf16.mxu0 0
      %3135 = vmatmul.mubr.bf16.gmra.mrb[0].mxu0 %v3029
      %v3136 = vpop.f32.mrb[0].mxu0
      %v3137 = vadd.f32 0.0, %v3136
      %v3138 = vpop.f32.mrb[0].mxu0
      %v3139 = vpop.f32.mrb[0].mxu0
      %v3140 = vpop.f32.mrb[0].mxu0
      %3141 = vdwg.mxu0
      %v3142 = vadd.f32 %v1818, %v3129
      %v3143 = vadd.f32 %v1819, %v3132
      %v3144 = vadd.f32 %v1820, %v3137
      %v3145 = vld [vmem:[%s892] sm:$0x1]
      %v3147 = vlaneseq
      %v3148 = vshrl.u32 %v3147, 7
      %v3149 = vsub.s32 0, %v3148
      %v3150 = vrot.slane %v3145, %v3149
      %v3152 = vadd.f32 %v3142, %v3150
      %v3153 = vadd.f32 %v3143, %v3150
      %v3154 = vadd.f32 %v3144, %v3150
      %v3155 = vld [vmem:[%s895] sm:$0x1]
      %v3156 = vld [vmem:[%s898] sm:$0x1]
      %3157 = vadd.xlane.f32.xlu0 %v3152
      %v3158 = vpop.xlane.xlu0 %3157
      %3159 = vadd.xlane.f32.xlu0 %v3153
      %v3160 = vpop.xlane.xlu0 %3159
      %3161 = vadd.xlane.f32.xlu0 %v3154
      %v3162 = vpop.xlane.xlu0 %3161
      %v3163 = vmul.f32 %v3158, %v1829
      %v3164 = vmul.f32 %v3160, %v1829
      %v3165 = vmul.f32 %v3162, %v1829
      %v3166 = vsub.f32 %v3152, %v3163
      %v3167 = vsub.f32 %v3153, %v3164
      %v3168 = vsub.f32 %v3154, %v3165
      %v3169 = vmul.f32 %v3166, %v3166
      %v3170 = vmul.f32 %v3167, %v3167
      %v3171 = vmul.f32 %v3168, %v3168
      %3172 = vadd.xlane.f32.xlu0 %v3169
      %v3173 = vpop.xlane.xlu0 %3172
      %3174 = vadd.xlane.f32.xlu0 %v3170
      %v3175 = vpop.xlane.xlu0 %3174
      %3176 = vadd.xlane.f32.xlu0 %v3171
      %v3177 = vpop.xlane.xlu0 %3176
      %v3178 = vmul.f32 %v3173, %v1829
      %v3179 = vmul.f32 %v3175, %v1829
      %v3180 = vmul.f32 %v3177, %v1829
      %v3181 = vadd.f32 %v3178, 1e-05
      %v3182 = vadd.f32 %v3179, 1e-05
      %v3183 = vadd.f32 %v3180, 1e-05
      %v3184 = vrsqrt.pop %v3181
      %v3185 = vrsqrt.pop %v3182
      %v3186 = vrsqrt.pop %v3183
      %v3187 = vmul.f32 %v3166, %v3184
      %v3188 = vmul.f32 %v3167, %v3185
      %v3189 = vmul.f32 %v3168, %v3186
      %v3191 = vlaneseq
      %v3192 = vshrl.u32 %v3191, 7
      %v3193 = vsub.s32 0, %v3192
      %v3194 = vrot.slane %v3155, %v3193
      %v3196 = vmul.f32 %v3187, %v3194
      %v3197 = vmul.f32 %v3188, %v3194
      %v3198 = vmul.f32 %v3189, %v3194
      %v3200 = vlaneseq
      %v3201 = vshrl.u32 %v3200, 7
      %v3202 = vsub.s32 0, %v3201
      %v3203 = vrot.slane %v3156, %v3202
      %v3205 = vadd.f32 %v3196, %v3203
      %v3206 = vadd.f32 %v3197, %v3203
      %v3207 = vadd.f32 %v3198, %v3203
      %v3208 = vpack.c.bf16 %v3206, %v3205
      %v3209 = vpack.c.bf16 %v3207, %v3207
      %v3210 = vld [vmem:[%s903] sm:$0xff]
      %v3211 = vld [vmem:[%s903 + $0x8] sm:$0xff]
      %v3212 = vld [vmem:[%s903 + $0x10] sm:$0xff]
      %v3213 = vld [vmem:[%s903 + $0x18] sm:$0xff]
      %v3214 = vld [vmem:[%s903 + $0x20] sm:$0xff]
      %v3215 = vld [vmem:[%s903 + $0x28] sm:$0xff]
      %v3216 = vld [vmem:[%s903 + $0x30] sm:$0xff]
      %v3217 = vld [vmem:[%s903 + $0x38] sm:$0xff]
      %v3218 = vld [vmem:[%s903 + $0x40] sm:$0xff]
      %v3219 = vld [vmem:[%s903 + $0x48] sm:$0xff]
      %v3220 = vld [vmem:[%s903 + $0x50] sm:$0xff]
      %v3221 = vld [vmem:[%s903 + $0x58] sm:$0xff]
      %v3222 = vld [vmem:[%s903 + $0x60] sm:$0xff]
      %v3223 = vld [vmem:[%s903 + $0x68] sm:$0xff]
      %v3224 = vld [vmem:[%s903 + $0x70] sm:$0xff]
      %v3225 = vld [vmem:[%s903 + $0x78] sm:$0xff]
      %v3226 = vld [vmem:[%s903 + $0x80] sm:$0xff]
      %v3227 = vld [vmem:[%s903 + $0x88] sm:$0xff]
      %v3228 = vld [vmem:[%s903 + $0x90] sm:$0xff]
      %v3229 = vld [vmem:[%s903 + $0x98] sm:$0xff]
      %v3230 = vld [vmem:[%s903 + $0xa0] sm:$0xff]
      %v3231 = vld [vmem:[%s903 + $0xa8] sm:$0xff]
      %v3232 = vld [vmem:[%s903 + $0xb0] sm:$0xff]
      %v3233 = vld [vmem:[%s903 + $0xb8] sm:$0xff]
      %v3234 = vld [vmem:[%s903 + $0xc0] sm:$0xff]
      %v3235 = vld [vmem:[%s903 + $0xc8] sm:$0xff]
      %v3236 = vld [vmem:[%s903 + $0xd0] sm:$0xff]
      %v3237 = vld [vmem:[%s903 + $0xd8] sm:$0xff]
      %v3238 = vld [vmem:[%s903 + $0xe0] sm:$0xff]
      %v3239 = vld [vmem:[%s903 + $0xe8] sm:$0xff]
      %v3240 = vld [vmem:[%s903 + $0xf0] sm:$0xff]
      %v3241 = vld [vmem:[%s903 + $0xf8] sm:$0xff]
      %v3242 = vld [vmem:[%s907] sm:$0xf]
      %v3244 = vlaneseq
      %v3245 = vshrl.u32 %v3244, 7
      %v3246 = vsub.s32 0, %v3245
      %v3247 = vrot.slane %v3242, %v3246
      %v3248 = vlaneseq
      %v3249 = vshrl.u32 %v3248, 7
      %v3250 = vsub.s32 1, %v3249
      %v3251 = vrot.slane %v3242, %v3250
      %v3252 = vlaneseq
      %v3253 = vshrl.u32 %v3252, 7
      %v3254 = vsub.s32 2, %v3253
      %v3255 = vrot.slane %v3242, %v3254
      %v3256 = vlaneseq
      %v3257 = vshrl.u32 %v3256, 7
      %v3258 = vsub.s32 3, %v3257
      %v3259 = vrot.slane %v3242, %v3258
      %v3296 = vunpack.c.l.b16 %v3210
      %v3297 = vunpack.c.h.b16 %v3210
      %v3298 = vunpack.c.l.b16 %v3211
      %v3299 = vunpack.c.h.b16 %v3211
      %v3300 = vunpack.c.l.b16 %v3212
      %v3301 = vunpack.c.h.b16 %v3212
      %v3302 = vunpack.c.l.b16 %v3213
      %v3303 = vunpack.c.h.b16 %v3213
      %v3304 = vunpack.c.l.b16 %v3214
      %v3305 = vunpack.c.h.b16 %v3214
      %v3306 = vunpack.c.l.b16 %v3215
      %v3307 = vunpack.c.h.b16 %v3215
      %v3308 = vunpack.c.l.b16 %v3216
      %v3309 = vunpack.c.h.b16 %v3216
      %v3310 = vunpack.c.l.b16 %v3217
      %v3311 = vunpack.c.h.b16 %v3217
      %v3312 = vunpack.c.l.b16 %v3218
      %v3313 = vunpack.c.h.b16 %v3218
      %v3314 = vunpack.c.l.b16 %v3219
      %v3315 = vunpack.c.h.b16 %v3219
      %v3316 = vunpack.c.l.b16 %v3220
      %v3317 = vunpack.c.h.b16 %v3220
      %v3318 = vunpack.c.l.b16 %v3221
      %v3319 = vunpack.c.h.b16 %v3221
      %v3320 = vunpack.c.l.b16 %v3222
      %v3321 = vunpack.c.h.b16 %v3222
      %v3322 = vunpack.c.l.b16 %v3223
      %v3323 = vunpack.c.h.b16 %v3223
      %v3324 = vunpack.c.l.b16 %v3224
      %v3325 = vunpack.c.h.b16 %v3224
      %v3326 = vunpack.c.l.b16 %v3225
      %v3327 = vunpack.c.h.b16 %v3225
      %v3328 = vunpack.c.l.b16 %v3226
      %v3329 = vunpack.c.h.b16 %v3226
      %v3330 = vunpack.c.l.b16 %v3227
      %v3331 = vunpack.c.h.b16 %v3227
      %v3332 = vunpack.c.l.b16 %v3228
      %v3333 = vunpack.c.h.b16 %v3228
      %v3334 = vunpack.c.l.b16 %v3229
      %v3335 = vunpack.c.h.b16 %v3229
      %v3336 = vunpack.c.l.b16 %v3230
      %v3337 = vunpack.c.h.b16 %v3230
      %v3338 = vunpack.c.l.b16 %v3231
      %v3339 = vunpack.c.h.b16 %v3231
      %v3340 = vunpack.c.l.b16 %v3232
      %v3341 = vunpack.c.h.b16 %v3232
      %v3342 = vunpack.c.l.b16 %v3233
      %v3343 = vunpack.c.h.b16 %v3233
      %v3344 = vunpack.c.l.b16 %v3234
      %v3345 = vunpack.c.h.b16 %v3234
      %v3346 = vunpack.c.l.b16 %v3235
      %v3347 = vunpack.c.h.b16 %v3235
      %v3348 = vunpack.c.l.b16 %v3236
      %v3349 = vunpack.c.h.b16 %v3236
      %v3350 = vunpack.c.l.b16 %v3237
      %v3351 = vunpack.c.h.b16 %v3237
      %v3352 = vunpack.c.l.b16 %v3238
      %v3353 = vunpack.c.h.b16 %v3238
      %v3354 = vunpack.c.l.b16 %v3239
      %v3355 = vunpack.c.h.b16 %v3239
      %v3356 = vunpack.c.l.b16 %v3240
      %v3357 = vunpack.c.h.b16 %v3240
      %v3358 = vunpack.c.l.b16 %v3241
      %v3359 = vunpack.c.h.b16 %v3241
      %v3360 = vpack.c.b16 %v3300, %v3296
      %v3361 = vpack.c.b16 %v3301, %v3297
      %v3362 = vpack.c.b16 %v3302, %v3298
      %v3363 = vpack.c.b16 %v3303, %v3299
      %v3364 = vpack.c.b16 %v3308, %v3304
      %v3365 = vpack.c.b16 %v3309, %v3305
      %v3366 = vpack.c.b16 %v3310, %v3306
      %v3367 = vpack.c.b16 %v3311, %v3307
      %v3368 = vpack.c.b16 %v3316, %v3312
      %v3369 = vpack.c.b16 %v3317, %v3313
      %v3370 = vpack.c.b16 %v3318, %v3314
      %v3371 = vpack.c.b16 %v3319, %v3315
      %v3372 = vpack.c.b16 %v3324, %v3320
      %v3373 = vpack.c.b16 %v3325, %v3321
      %v3374 = vpack.c.b16 %v3326, %v3322
      %v3375 = vpack.c.b16 %v3327, %v3323
      %v3376 = vpack.c.b16 %v3332, %v3328
      %v3377 = vpack.c.b16 %v3333, %v3329
      %v3378 = vpack.c.b16 %v3334, %v3330
      %v3379 = vpack.c.b16 %v3335, %v3331
      %v3380 = vpack.c.b16 %v3340, %v3336
      %v3381 = vpack.c.b16 %v3341, %v3337
      %v3382 = vpack.c.b16 %v3342, %v3338
      %v3383 = vpack.c.b16 %v3343, %v3339
      %v3384 = vpack.c.b16 %v3348, %v3344
      %v3385 = vpack.c.b16 %v3349, %v3345
      %v3386 = vpack.c.b16 %v3350, %v3346
      %v3387 = vpack.c.b16 %v3351, %v3347
      %v3388 = vpack.c.b16 %v3356, %v3352
      %v3389 = vpack.c.b16 %v3357, %v3353
      %v3390 = vpack.c.b16 %v3358, %v3354
      %v3391 = vpack.c.b16 %v3359, %v3355
      %3424 = vmatprep.subr.bf16.mxu0 %v3361
      %3425 = vmatpush1.bf16.msra.mxu0 %v3360
      %3426 = vmatprep.subr.bf16.mxu0 %v3365
      %3427 = vmatpush1.bf16.msra.mxu0 %v3364
      %3428 = vmatprep.subr.bf16.mxu0 %v3369
      %3429 = vmatpush1.bf16.msra.mxu0 %v3368
      %3430 = vmatprep.subr.bf16.mxu0 %v3373
      %3431 = vmatpush1.bf16.msra.mxu0 %v3372
      %3432 = vmatprep.subr.bf16.mxu0 %v3377
      %3433 = vmatpush1.bf16.msra.mxu0 %v3376
      %3434 = vmatprep.subr.bf16.mxu0 %v3381
      %3435 = vmatpush1.bf16.msra.mxu0 %v3380
      %3436 = vmatprep.subr.bf16.mxu0 %v3385
      %3437 = vmatpush1.bf16.msra.mxu0 %v3384
      %3438 = vmatprep.subr.bf16.mxu0 %v3389
      %3439 = vmatpush1.bf16.msra.mxu0 %v3388
      %3440 = vmatprep.subr.bf16.mxu0 0
      %3441 = vmatpush1.bf16.msra.mxu0 0
      %3442 = vmatprep.subr.bf16.mxu0 0
      %3443 = vmatpush1.bf16.msra.mxu0 0
      %3444 = vmatprep.subr.bf16.mxu0 0
      %3445 = vmatpush1.bf16.msra.mxu0 0
      %3446 = vmatprep.subr.bf16.mxu0 0
      %3447 = vmatpush1.bf16.msra.mxu0 0
      %3448 = vmatprep.subr.bf16.mxu0 0
      %3449 = vmatpush1.bf16.msra.mxu0 0
      %3450 = vmatprep.subr.bf16.mxu0 0
      %3451 = vmatpush1.bf16.msra.mxu0 0
      %3452 = vmatprep.subr.bf16.mxu0 0
      %3453 = vmatpush1.bf16.msra.mxu0 0
      %3454 = vmatprep.subr.bf16.mxu0 0
      %3455 = vmatpush1.bf16.msra.mxu0 0
      %3456 = vmatprep.mubr.bf16.mxu0 0
      %3457 = vmatmul.mubr.bf16.gmra.mrb[0].mxu0 %v3208
      %v3458 = vpop.f32.mrb[0].mxu0
      %v3459 = vadd.f32 %v3247, %v3458
      %v3460 = vpop.f32.mrb[0].mxu0
      %v3461 = vadd.f32 %v3251, %v3460
      %v3462 = vpop.f32.mrb[0].mxu0
      %v3463 = vadd.f32 %v3247, %v3462
      %v3464 = vpop.f32.mrb[0].mxu0
      %v3465 = vadd.f32 %v3251, %v3464
      %3466 = vmatprep.mubr.bf16.mxu0 0
      %3467 = vmatmul.mubr.bf16.gmra.mrb[0].mxu0 %v3209
      %v3468 = vpop.f32.mrb[0].mxu0
      %v3469 = vadd.f32 %v3247, %v3468
      %v3470 = vpop.f32.mrb[0].mxu0
      %v3471 = vadd.f32 %v3251, %v3470
      %v3472 = vpop.f32.mrb[0].mxu0
      %v3473 = vpop.f32.mrb[0].mxu0
      %3474 = vdwg.mxu0
      %3475 = vmatprep.subr.bf16.mxu0 %v3363
      %3476 = vmatpush1.bf16.msra.mxu0 %v3362
      %3477 = vmatprep.subr.bf16.mxu0 %v3367
      %3478 = vmatpush1.bf16.msra.mxu0 %v3366
      %3479 = vmatprep.subr.bf16.mxu0 %v3371
      %3480 = vmatpush1.bf16.msra.mxu0 %v3370
      %3481 = vmatprep.subr.bf16.mxu0 %v3375
      %3482 = vmatpush1.bf16.msra.mxu0 %v3374
      %3483 = vmatprep.subr.bf16.mxu0 %v3379
      %3484 = vmatpush1.bf16.msra.mxu0 %v3378
      %3485 = vmatprep.subr.bf16.mxu0 %v3383
      %3486 = vmatpush1.bf16.msra.mxu0 %v3382
      %3487 = vmatprep.subr.bf16.mxu0 %v3387
      %3488 = vmatpush1.bf16.msra.mxu0 %v3386
      %3489 = vmatprep.subr.bf16.mxu0 %v3391
      %3490 = vmatpush1.bf16.msra.mxu0 %v3390
      %3491 = vmatprep.subr.bf16.mxu0 0
      %3492 = vmatpush1.bf16.msra.mxu0 0
      %3493 = vmatprep.subr.bf16.mxu0 0
      %3494 = vmatpush1.bf16.msra.mxu0 0
      %3495 = vmatprep.subr.bf16.mxu0 0
      %3496 = vmatpush1.bf16.msra.mxu0 0
      %3497 = vmatprep.subr.bf16.mxu0 0
      %3498 = vmatpush1.bf16.msra.mxu0 0
      %3499 = vmatprep.subr.bf16.mxu0 0
      %3500 = vmatpush1.bf16.msra.mxu0 0
      %3501 = vmatprep.subr.bf16.mxu0 0
      %3502 = vmatpush1.bf16.msra.mxu0 0
      %3503 = vmatprep.subr.bf16.mxu0 0
      %3504 = vmatpush1.bf16.msra.mxu0 0
      %3505 = vmatprep.subr.bf16.mxu0 0
      %3506 = vmatpush1.bf16.msra.mxu0 0
      %3507 = vmatprep.mubr.bf16.mxu0 0
      %3508 = vmatmul.mubr.bf16.gmra.mrb[0].mxu0 %v3208
      %v3509 = vpop.f32.mrb[0].mxu0
      %v3510 = vadd.f32 %v3255, %v3509
      %v3511 = vpop.f32.mrb[0].mxu0
      %v3512 = vadd.f32 %v3259, %v3511
      %v3513 = vpop.f32.mrb[0].mxu0
      %v3514 = vadd.f32 %v3255, %v3513
      %v3515 = vpop.f32.mrb[0].mxu0
      %v3516 = vadd.f32 %v3259, %v3515
      %3517 = vmatprep.mubr.bf16.mxu0 0
      %3518 = vmatmul.mubr.bf16.gmra.mrb[0].mxu0 %v3209
      %v3519 = vpop.f32.mrb[0].mxu0
      %v3520 = vadd.f32 %v3255, %v3519
      %v3521 = vpop.f32.mrb[0].mxu0
      %v3522 = vadd.f32 %v3259, %v3521
      %v3523 = vpop.f32.mrb[0].mxu0
      %v3524 = vpop.f32.mrb[0].mxu0
      %3525 = vdwg.mxu0
      %v3526 = vmul.f32 %v3459, 0.5
      %v3527 = vmul.f32 %v3461, 0.5
      %v3528 = vmul.f32 %v3510, 0.5
      %v3529 = vmul.f32 %v3512, 0.5
      %v3530 = vmul.f32 %v3463, 0.5
      %v3531 = vmul.f32 %v3465, 0.5
      %v3532 = vmul.f32 %v3514, 0.5
      %v3533 = vmul.f32 %v3516, 0.5
      %v3534 = vmul.f32 %v3469, 0.5
      %v3535 = vmul.f32 %v3471, 0.5
      %v3536 = vmul.f32 %v3520, 0.5
      %v3537 = vmul.f32 %v3522, 0.5
      %v3538 = vmul.f32 %v3459, 0.044715
      %v3539 = vmul.f32 %v3461, 0.044715
      %v3540 = vmul.f32 %v3510, 0.044715
      %v3541 = vmul.f32 %v3512, 0.044715
      %v3542 = vmul.f32 %v3463, 0.044715
      %v3543 = vmul.f32 %v3465, 0.044715
      %v3544 = vmul.f32 %v3514, 0.044715
      %v3545 = vmul.f32 %v3516, 0.044715
      %v3546 = vmul.f32 %v3469, 0.044715
      %v3547 = vmul.f32 %v3471, 0.044715
      %v3548 = vmul.f32 %v3520, 0.044715
      %v3549 = vmul.f32 %v3522, 0.044715
      %v3550 = vmul.f32 %v3538, %v3459
      %v3551 = vmul.f32 %v3539, %v3461
      %v3552 = vmul.f32 %v3540, %v3510
      %v3553 = vmul.f32 %v3541, %v3512
      %v3554 = vmul.f32 %v3542, %v3463
      %v3555 = vmul.f32 %v3543, %v3465
      %v3556 = vmul.f32 %v3544, %v3514
      %v3557 = vmul.f32 %v3545, %v3516
      %v3558 = vmul.f32 %v3546, %v3469
      %v3559 = vmul.f32 %v3547, %v3471
      %v3560 = vmul.f32 %v3548, %v3520
      %v3561 = vmul.f32 %v3549, %v3522
      %v3562 = vmul.f32 %v3550, %v3459
      %v3563 = vmul.f32 %v3551, %v3461
      %v3564 = vmul.f32 %v3552, %v3510
      %v3565 = vmul.f32 %v3553, %v3512
      %v3566 = vmul.f32 %v3554, %v3463
      %v3567 = vmul.f32 %v3555, %v3465
      %v3568 = vmul.f32 %v3556, %v3514
      %v3569 = vmul.f32 %v3557, %v3516
      %v3570 = vmul.f32 %v3558, %v3469
      %v3571 = vmul.f32 %v3559, %v3471
      %v3572 = vmul.f32 %v3560, %v3520
      %v3573 = vmul.f32 %v3561, %v3522
      %v3574 = vadd.f32 %v3459, %v3562
      %v3575 = vadd.f32 %v3461, %v3563
      %v3576 = vadd.f32 %v3510, %v3564
      %v3577 = vadd.f32 %v3512, %v3565
      %v3578 = vadd.f32 %v3463, %v3566
      %v3579 = vadd.f32 %v3465, %v3567
      %v3580 = vadd.f32 %v3514, %v3568
      %v3581 = vadd.f32 %v3516, %v3569
      %v3582 = vadd.f32 %v3469, %v3570
      %v3583 = vadd.f32 %v3471, %v3571
      %v3584 = vadd.f32 %v3520, %v3572
      %v3585 = vadd.f32 %v3522, %v3573
      %v3586 = vmul.f32 %v3574, 0.7978846
      %v3587 = vmul.f32 %v3575, 0.7978846
      %v3588 = vmul.f32 %v3576, 0.7978846
      %v3589 = vmul.f32 %v3577, 0.7978846
      %v3590 = vmul.f32 %v3578, 0.7978846
      %v3591 = vmul.f32 %v3579, 0.7978846
      %v3592 = vmul.f32 %v3580, 0.7978846
      %v3593 = vmul.f32 %v3581, 0.7978846
      %v3594 = vmul.f32 %v3582, 0.7978846
      %v3595 = vmul.f32 %v3583, 0.7978846
      %v3596 = vmul.f32 %v3584, 0.7978846
      %v3597 = vmul.f32 %v3585, 0.7978846
      %v3598 = vtanh.pop %v3586
      %v3599 = vtanh.pop %v3587
      %v3600 = vtanh.pop %v3588
      %v3601 = vtanh.pop %v3589
      %v3602 = vtanh.pop %v3590
      %v3603 = vtanh.pop %v3591
      %v3604 = vtanh.pop %v3592
      %v3605 = vtanh.pop %v3593
      %v3606 = vtanh.pop %v3594
      %v3607 = vtanh.pop %v3595
      %v3608 = vtanh.pop %v3596
      %v3609 = vtanh.pop %v3597
      %v3610 = vadd.f32 %v3598, 1.0
      %v3611 = vadd.f32 %v3599, 1.0
      %v3612 = vadd.f32 %v3600, 1.0
      %v3613 = vadd.f32 %v3601, 1.0
      %v3614 = vadd.f32 %v3602, 1.0
      %v3615 = vadd.f32 %v3603, 1.0
      %v3616 = vadd.f32 %v3604, 1.0
      %v3617 = vadd.f32 %v3605, 1.0
      %v3618 = vadd.f32 %v3606, 1.0
      %v3619 = vadd.f32 %v3607, 1.0
      %v3620 = vadd.f32 %v3608, 1.0
      %v3621 = vadd.f32 %v3609, 1.0
      %v3622 = vmul.f32 %v3526, %v3610
      %v3623 = vmul.f32 %v3527, %v3611
      %v3624 = vmul.f32 %v3528, %v3612
      %v3625 = vmul.f32 %v3529, %v3613
      %v3626 = vmul.f32 %v3530, %v3614
      %v3627 = vmul.f32 %v3531, %v3615
      %v3628 = vmul.f32 %v3532, %v3616
      %v3629 = vmul.f32 %v3533, %v3617
      %v3630 = vmul.f32 %v3534, %v3618
      %v3631 = vmul.f32 %v3535, %v3619
      %v3632 = vmul.f32 %v3536, %v3620
      %v3633 = vmul.f32 %v3537, %v3621
      %v3634 = vpack.c.bf16 %v3626, %v3622
      %v3635 = vpack.c.bf16 %v3627, %v3623
      %v3636 = vpack.c.bf16 %v3628, %v3624
      %v3637 = vpack.c.bf16 %v3629, %v3625
      %v3638 = vpack.c.bf16 %v3630, %v3630
      %v3639 = vpack.c.bf16 %v3631, %v3631
      %v3640 = vpack.c.bf16 %v3632, %v3632
      %v3641 = vpack.c.bf16 %v3633, %v3633
      %v3642 = vld [vmem:[%s912] sm:$0xf]
      %v3643 = vld [vmem:[%s912 + $0x4] sm:$0xf]
      %v3644 = vld [vmem:[%s912 + $0x8] sm:$0xf]
      %v3645 = vld [vmem:[%s912 + $0xc] sm:$0xf]
      %v3646 = vld [vmem:[%s912 + $0x10] sm:$0xf]
      %v3647 = vld [vmem:[%s912 + $0x14] sm:$0xf]
      %v3648 = vld [vmem:[%s912 + $0x18] sm:$0xf]
      %v3649 = vld [vmem:[%s912 + $0x1c] sm:$0xf]
      %v3650 = vld [vmem:[%s912 + $0x20] sm:$0xf]
      %v3651 = vld [vmem:[%s912 + $0x24] sm:$0xf]
      %v3652 = vld [vmem:[%s912 + $0x28] sm:$0xf]
      %v3653 = vld [vmem:[%s912 + $0x2c] sm:$0xf]
      %v3654 = vld [vmem:[%s912 + $0x30] sm:$0xf]
      %v3655 = vld [vmem:[%s912 + $0x34] sm:$0xf]
      %v3656 = vld [vmem:[%s912 + $0x38] sm:$0xf]
      %v3657 = vld [vmem:[%s912 + $0x3c] sm:$0xf]
      %v3658 = vld [vmem:[%s912 + $0x40] sm:$0xf]
      %v3659 = vld [vmem:[%s912 + $0x44] sm:$0xf]
      %v3660 = vld [vmem:[%s912 + $0x48] sm:$0xf]
      %v3661 = vld [vmem:[%s912 + $0x4c] sm:$0xf]
      %v3662 = vld [vmem:[%s912 + $0x50] sm:$0xf]
      %v3663 = vld [vmem:[%s912 + $0x54] sm:$0xf]
      %v3664 = vld [vmem:[%s912 + $0x58] sm:$0xf]
      %v3665 = vld [vmem:[%s912 + $0x5c] sm:$0xf]
      %v3666 = vld [vmem:[%s912 + $0x60] sm:$0xf]
      %v3667 = vld [vmem:[%s912 + $0x64] sm:$0xf]
      %v3668 = vld [vmem:[%s912 + $0x68] sm:$0xf]
      %v3669 = vld [vmem:[%s912 + $0x6c] sm:$0xf]
      %v3670 = vld [vmem:[%s912 + $0x70] sm:$0xf]
      %v3671 = vld [vmem:[%s912 + $0x74] sm:$0xf]
      %v3672 = vld [vmem:[%s912 + $0x78] sm:$0xf]
      %v3673 = vld [vmem:[%s912 + $0x7c] sm:$0xf]
      %v3674 = vld [vmem:[%s912 + $0x80] sm:$0xf]
      %v3675 = vld [vmem:[%s912 + $0x84] sm:$0xf]
      %v3676 = vld [vmem:[%s912 + $0x88] sm:$0xf]
      %v3677 = vld [vmem:[%s912 + $0x8c] sm:$0xf]
      %v3678 = vld [vmem:[%s912 + $0x90] sm:$0xf]
      %v3679 = vld [vmem:[%s912 + $0x94] sm:$0xf]
      %v3680 = vld [vmem:[%s912 + $0x98] sm:$0xf]
      %v3681 = vld [vmem:[%s912 + $0x9c] sm:$0xf]
      %v3682 = vld [vmem:[%s912 + $0xa0] sm:$0xf]
      %v3683 = vld [vmem:[%s912 + $0xa4] sm:$0xf]
      %v3684 = vld [vmem:[%s912 + $0xa8] sm:$0xf]
      %v3685 = vld [vmem:[%s912 + $0xac] sm:$0xf]
      %v3686 = vld [vmem:[%s912 + $0xb0] sm:$0xf]
      %v3687 = vld [vmem:[%s912 + $0xb4] sm:$0xf]
      %v3688 = vld [vmem:[%s912 + $0xb8] sm:$0xf]
      %v3689 = vld [vmem:[%s912 + $0xbc] sm:$0xf]
      %v3690 = vld [vmem:[%s912 + $0xc0] sm:$0xf]
      %v3691 = vld [vmem:[%s912 + $0xc4] sm:$0xf]
      %v3692 = vld [vmem:[%s912 + $0xc8] sm:$0xf]
      %v3693 = vld [vmem:[%s912 + $0xcc] sm:$0xf]
      %v3694 = vld [vmem:[%s912 + $0xd0] sm:$0xf]
      %v3695 = vld [vmem:[%s912 + $0xd4] sm:$0xf]
      %v3696 = vld [vmem:[%s912 + $0xd8] sm:$0xf]
      %v3697 = vld [vmem:[%s912 + $0xdc] sm:$0xf]
      %v3698 = vld [vmem:[%s912 + $0xe0] sm:$0xf]
      %v3699 = vld [vmem:[%s912 + $0xe4] sm:$0xf]
      %v3700 = vld [vmem:[%s912 + $0xe8] sm:$0xf]
      %v3701 = vld [vmem:[%s912 + $0xec] sm:$0xf]
      %v3702 = vld [vmem:[%s912 + $0xf0] sm:$0xf]
      %v3703 = vld [vmem:[%s912 + $0xf4] sm:$0xf]
      %v3704 = vld [vmem:[%s912 + $0xf8] sm:$0xf]
      %v3705 = vld [vmem:[%s912 + $0xfc] sm:$0xf]
      %v3770 = vunpack.c.l.b16 %v3642
      %v3771 = vunpack.c.l.b16 %v3643
      %v3772 = vunpack.c.l.b16 %v3644
      %v3773 = vunpack.c.l.b16 %v3645
      %v3774 = vunpack.c.l.b16 %v3646
      %v3775 = vunpack.c.l.b16 %v3647
      %v3776 = vunpack.c.l.b16 %v3648
      %v3777 = vunpack.c.l.b16 %v3649
      %v3778 = vunpack.c.l.b16 %v3650
      %v3779 = vunpack.c.l.b16 %v3651
      %v3780 = vunpack.c.l.b16 %v3652
      %v3781 = vunpack.c.l.b16 %v3653
      %v3782 = vunpack.c.l.b16 %v3654
      %v3783 = vunpack.c.l.b16 %v3655
      %v3784 = vunpack.c.l.b16 %v3656
      %v3785 = vunpack.c.l.b16 %v3657
      %v3786 = vunpack.c.l.b16 %v3658
      %v3787 = vunpack.c.l.b16 %v3659
      %v3788 = vunpack.c.l.b16 %v3660
      %v3789 = vunpack.c.l.b16 %v3661
      %v3790 = vunpack.c.l.b16 %v3662
      %v3791 = vunpack.c.l.b16 %v3663
      %v3792 = vunpack.c.l.b16 %v3664
      %v3793 = vunpack.c.l.b16 %v3665
      %v3794 = vunpack.c.l.b16 %v3666
      %v3795 = vunpack.c.l.b16 %v3667
      %v3796 = vunpack.c.l.b16 %v3668
      %v3797 = vunpack.c.l.b16 %v3669
      %v3798 = vunpack.c.l.b16 %v3670
      %v3799 = vunpack.c.l.b16 %v3671
      %v3800 = vunpack.c.l.b16 %v3672
      %v3801 = vunpack.c.l.b16 %v3673
      %v3802 = vunpack.c.l.b16 %v3674
      %v3803 = vunpack.c.l.b16 %v3675
      %v3804 = vunpack.c.l.b16 %v3676
      %v3805 = vunpack.c.l.b16 %v3677
      %v3806 = vunpack.c.l.b16 %v3678
      %v3807 = vunpack.c.l.b16 %v3679
      %v3808 = vunpack.c.l.b16 %v3680
      %v3809 = vunpack.c.l.b16 %v3681
      %v3810 = vunpack.c.l.b16 %v3682
      %v3811 = vunpack.c.l.b16 %v3683
      %v3812 = vunpack.c.l.b16 %v3684
      %v3813 = vunpack.c.l.b16 %v3685
      %v3814 = vunpack.c.l.b16 %v3686
      %v3815 = vunpack.c.l.b16 %v3687
      %v3816 = vunpack.c.l.b16 %v3688
      %v3817 = vunpack.c.l.b16 %v3689
      %v3818 = vunpack.c.l.b16 %v3690
      %v3819 = vunpack.c.l.b16 %v3691
      %v3820 = vunpack.c.l.b16 %v3692
      %v3821 = vunpack.c.l.b16 %v3693
      %v3822 = vunpack.c.l.b16 %v3694
      %v3823 = vunpack.c.l.b16 %v3695
      %v3824 = vunpack.c.l.b16 %v3696
      %v3825 = vunpack.c.l.b16 %v3697
      %v3826 = vunpack.c.l.b16 %v3698
      %v3827 = vunpack.c.l.b16 %v3699
      %v3828 = vunpack.c.l.b16 %v3700
      %v3829 = vunpack.c.l.b16 %v3701
      %v3830 = vunpack.c.l.b16 %v3702
      %v3831 = vunpack.c.l.b16 %v3703
      %v3832 = vunpack.c.l.b16 %v3704
      %v3833 = vunpack.c.l.b16 %v3705
      %v3834 = vpack.c.b16 %v3771, %v3770
      %v3835 = vpack.c.b16 %v3773, %v3772
      %v3836 = vpack.c.b16 %v3775, %v3774
      %v3837 = vpack.c.b16 %v3777, %v3776
      %v3838 = vpack.c.b16 %v3779, %v3778
      %v3839 = vpack.c.b16 %v3781, %v3780
      %v3840 = vpack.c.b16 %v3783, %v3782
      %v3841 = vpack.c.b16 %v3785, %v3784
      %v3842 = vpack.c.b16 %v3787, %v3786
      %v3843 = vpack.c.b16 %v3789, %v3788
      %v3844 = vpack.c.b16 %v3791, %v3790
      %v3845 = vpack.c.b16 %v3793, %v3792
      %v3846 = vpack.c.b16 %v3795, %v3794
      %v3847 = vpack.c.b16 %v3797, %v3796
      %v3848 = vpack.c.b16 %v3799, %v3798
      %v3849 = vpack.c.b16 %v3801, %v3800
      %v3850 = vpack.c.b16 %v3803, %v3802
      %v3851 = vpack.c.b16 %v3805, %v3804
      %v3852 = vpack.c.b16 %v3807, %v3806
      %v3853 = vpack.c.b16 %v3809, %v3808
      %v3854 = vpack.c.b16 %v3811, %v3810
      %v3855 = vpack.c.b16 %v3813, %v3812
      %v3856 = vpack.c.b16 %v3815, %v3814
      %v3857 = vpack.c.b16 %v3817, %v3816
      %v3858 = vpack.c.b16 %v3819, %v3818
      %v3859 = vpack.c.b16 %v3821, %v3820
      %v3860 = vpack.c.b16 %v3823, %v3822
      %v3861 = vpack.c.b16 %v3825, %v3824
      %v3862 = vpack.c.b16 %v3827, %v3826
      %v3863 = vpack.c.b16 %v3829, %v3828
      %v3864 = vpack.c.b16 %v3831, %v3830
      %v3865 = vpack.c.b16 %v3833, %v3832
      %3898 = vmatprep.subr.bf16.mxu0 0
      %3899 = vmatpush1.bf16.msra.mxu0 %v3834
      %3900 = vmatprep.subr.bf16.mxu0 0
      %3901 = vmatpush1.bf16.msra.mxu0 %v3835
      %3902 = vmatprep.subr.bf16.mxu0 0
      %3903 = vmatpush1.bf16.msra.mxu0 %v3836
      %3904 = vmatprep.subr.bf16.mxu0 0
      %3905 = vmatpush1.bf16.msra.mxu0 %v3837
      %3906 = vmatprep.subr.bf16.mxu0 0
      %3907 = vmatpush1.bf16.msra.mxu0 %v3838
      %3908 = vmatprep.subr.bf16.mxu0 0
      %3909 = vmatpush1.bf16.msra.mxu0 %v3839
      %3910 = vmatprep.subr.bf16.mxu0 0
      %3911 = vmatpush1.bf16.msra.mxu0 %v3840
      %3912 = vmatprep.subr.bf16.mxu0 0
      %3913 = vmatpush1.bf16.msra.mxu0 %v3841
      %3914 = vmatprep.subr.bf16.mxu0 0
      %3915 = vmatpush1.bf16.msra.mxu0 %v3842
      %3916 = vmatprep.subr.bf16.mxu0 0
      %3917 = vmatpush1.bf16.msra.mxu0 %v3843
      %3918 = vmatprep.subr.bf16.mxu0 0
      %3919 = vmatpush1.bf16.msra.mxu0 %v3844
      %3920 = vmatprep.subr.bf16.mxu0 0
      %3921 = vmatpush1.bf16.msra.mxu0 %v3845
      %3922 = vmatprep.subr.bf16.mxu0 0
      %3923 = vmatpush1.bf16.msra.mxu0 %v3846
      %3924 = vmatprep.subr.bf16.mxu0 0
      %3925 = vmatpush1.bf16.msra.mxu0 %v3847
      %3926 = vmatprep.subr.bf16.mxu0 0
      %3927 = vmatpush1.bf16.msra.mxu0 %v3848
      %3928 = vmatprep.subr.bf16.mxu0 0
      %3929 = vmatpush1.bf16.msra.mxu0 %v3849
      %3930 = vmatprep.mubr.bf16.mxu0 %v3635
      %3931 = vmatmul.mubr.bf16.gmra.mrb[0].mxu0 %v3634
      %v3932 = vpop.f32.mrb[0].mxu0
      %v3933 = vadd.f32 0.0, %v3932
      %v3934 = vpop.f32.mrb[0].mxu0
      %v3935 = vpop.f32.mrb[0].mxu0
      %v3936 = vadd.f32 0.0, %v3935
      %v3937 = vpop.f32.mrb[0].mxu0
      %3938 = vmatprep.mubr.bf16.mxu0 %v3639
      %3939 = vmatmul.mubr.bf16.gmra.mrb[0].mxu0 %v3638
      %v3940 = vpop.f32.mrb[0].mxu0
      %v3941 = vadd.f32 0.0, %v3940
      %v3942 = vpop.f32.mrb[0].mxu0
      %v3943 = vpop.f32.mrb[0].mxu0
      %v3944 = vpop.f32.mrb[0].mxu0
      %3945 = vdwg.mxu0
      %3946 = vmatprep.subr.bf16.mxu0 0
      %3947 = vmatpush1.bf16.msra.mxu0 %v3850
      %3948 = vmatprep.subr.bf16.mxu0 0
      %3949 = vmatpush1.bf16.msra.mxu0 %v3851
      %3950 = vmatprep.subr.bf16.mxu0 0
      %3951 = vmatpush1.bf16.msra.mxu0 %v3852
      %3952 = vmatprep.subr.bf16.mxu0 0
      %3953 = vmatpush1.bf16.msra.mxu0 %v3853
      %3954 = vmatprep.subr.bf16.mxu0 0
      %3955 = vmatpush1.bf16.msra.mxu0 %v3854
      %3956 = vmatprep.subr.bf16.mxu0 0
      %3957 = vmatpush1.bf16.msra.mxu0 %v3855
      %3958 = vmatprep.subr.bf16.mxu0 0
      %3959 = vmatpush1.bf16.msra.mxu0 %v3856
      %3960 = vmatprep.subr.bf16.mxu0 0
      %3961 = vmatpush1.bf16.msra.mxu0 %v3857
      %3962 = vmatprep.subr.bf16.mxu0 0
      %3963 = vmatpush1.bf16.msra.mxu0 %v3858
      %3964 = vmatprep.subr.bf16.mxu0 0
      %3965 = vmatpush1.bf16.msra.mxu0 %v3859
      %3966 = vmatprep.subr.bf16.mxu0 0
      %3967 = vmatpush1.bf16.msra.mxu0 %v3860
      %3968 = vmatprep.subr.bf16.mxu0 0
      %3969 = vmatpush1.bf16.msra.mxu0 %v3861
      %3970 = vmatprep.subr.bf16.mxu0 0
      %3971 = vmatpush1.bf16.msra.mxu0 %v3862
      %3972 = vmatprep.subr.bf16.mxu0 0
      %3973 = vmatpush1.bf16.msra.mxu0 %v3863
      %3974 = vmatprep.subr.bf16.mxu0 0
      %3975 = vmatpush1.bf16.msra.mxu0 %v3864
      %3976 = vmatprep.subr.bf16.mxu0 0
      %3977 = vmatpush1.bf16.msra.mxu0 %v3865
      %3978 = vmatprep.mubr.bf16.mxu0 %v3637
      %3979 = vmatmul.mubr.bf16.gmra.mrb[0].mxu0 %v3636
      %v3980 = vpop.f32.mrb[0].mxu0
      %v3981 = vadd.f32 %v3933, %v3980
      %v3982 = vpop.f32.mrb[0].mxu0
      %v3983 = vpop.f32.mrb[0].mxu0
      %v3984 = vadd.f32 %v3936, %v3983
      %v3985 = vpop.f32.mrb[0].mxu0
      %3986 = vmatprep.mubr.bf16.mxu0 %v3641
      %3987 = vmatmul.mubr.bf16.gmra.mrb[0].mxu0 %v3640
      %v3988 = vpop.f32.mrb[0].mxu0
      %v3989 = vadd.f32 %v3941, %v3988
      %v3990 = vpop.f32.mrb[0].mxu0
      %v3991 = vpop.f32.mrb[0].mxu0
      %v3992 = vpop.f32.mrb[0].mxu0
      %3993 = vdwg.mxu0
      %v3994 = vadd.f32 %v3152, %v3981
      %v3995 = vadd.f32 %v3153, %v3984
      %v3996 = vadd.f32 %v3154, %v3989
      %v3997 = vld [vmem:[%s915] sm:$0x1]
      %v3999 = vlaneseq
      %v4000 = vshrl.u32 %v3999, 7
      %v4001 = vsub.s32 0, %v4000
      %v4002 = vrot.slane %v3997, %v4001
      %v4004 = vadd.f32 %v3994, %v4002
      %v4005 = vadd.f32 %v3995, %v4002
      %v4006 = vadd.f32 %v3996, %v4002
      %4007 = vst [vmem:[#allocation2] sm:$0xff] %v4004
      %4008 = vst [vmem:[#allocation2 + $0x8] sm:$0xff] %v4005
      %4009 = vst [vmem:[#allocation2 + $0x10] sm:$0xff] %v4006
      %p4010 = scmp.eq.s32.totalorder %s39, 1
      // Predicated region
      $region117: #{mae_forward.1} parent=111 // pred_check
        %p4011 = pneg %p4010
      $region118: #{mae_forward.1} parent=111 // pred_check_branch
        %4013 = sbr.rel (%p4011) target = $region120
      $region119: #{mae_forward.1} parent=111 // pred_region
        %v4014 = vld [vmem:[%s17] sm:$0x1]
        %v4015 = vld [vmem:[%s18] sm:$0x1]
        %4016 = vadd.xlane.f32.xlu0 %v4004
        %v4017 = vpop.xlane.xlu0 %4016
        %4018 = vadd.xlane.f32.xlu0 %v4005
        %v4019 = vpop.xlane.xlu0 %4018
        %v4020 = vmul.f32 %v4017, %v1829
        %v4021 = vmul.f32 %v4019, %v1829
        %v4022 = vsub.f32 %v4004, %v4020
        %v4023 = vsub.f32 %v4005, %v4021
        %v4024 = vmul.f32 %v4022, %v4022
        %v4025 = vmul.f32 %v4023, %v4023
        %4026 = vadd.xlane.f32.xlu0 %v4024
        %v4027 = vpop.xlane.xlu0 %4026
        %4028 = vadd.xlane.f32.xlu0 %v4025
        %v4029 = vpop.xlane.xlu0 %4028
        %v4030 = vmul.f32 %v4027, %v1829
        %v4031 = vmul.f32 %v4029, %v1829
        %v4032 = vadd.f32 %v4030, 1e-05
        %v4033 = vadd.f32 %v4031, 1e-05
        %v4034 = vrsqrt.pop %v4032
        %v4035 = vrsqrt.pop %v4033
        %v4036 = vmul.f32 %v4022, %v4034
        %v4037 = vmul.f32 %v4023, %v4035
        %v4039 = vlaneseq
        %v4040 = vshrl.u32 %v4039, 7
        %v4041 = vsub.s32 0, %v4040
        %v4042 = vrot.slane %v4014, %v4041
        %v4044 = vmul.f32 %v4036, %v4042
        %v4045 = vmul.f32 %v4037, %v4042
        %v4047 = vlaneseq
        %v4048 = vshrl.u32 %v4047, 7
        %v4049 = vsub.s32 0, %v4048
        %v4050 = vrot.slane %v4015, %v4049
        %v4052 = vadd.f32 %v4044, %v4050
        %v4053 = vadd.f32 %v4045, %v4050
        %v4054 = vpack.c.bf16 %v4053, %v4052
        %v4055 = vld [vmem:[%s19] sm:$0xff]
        %v4056 = vld [vmem:[%s19 + $0x8] sm:$0xff]
        %v4057 = vld [vmem:[%s19 + $0x10] sm:$0xff]
        %v4058 = vld [vmem:[%s19 + $0x18] sm:$0xff]
        %v4059 = vld [vmem:[%s19 + $0x20] sm:$0xff]
        %v4060 = vld [vmem:[%s19 + $0x28] sm:$0xff]
        %v4061 = vld [vmem:[%s19 + $0x30] sm:$0xff]
        %v4062 = vld [vmem:[%s19 + $0x38] sm:$0xff]
        %v4063 = vld [vmem:[%s19 + $0x40] sm:$0xff]
        %v4064 = vld [vmem:[%s19 + $0x48] sm:$0xff]
        %v4065 = vld [vmem:[%s19 + $0x50] sm:$0xff]
        %v4066 = vld [vmem:[%s19 + $0x58] sm:$0xff]
        %v4067 = vld [vmem:[%s19 + $0x60] sm:$0xff]
        %v4068 = vld [vmem:[%s19 + $0x68] sm:$0xff]
        %v4069 = vld [vmem:[%s19 + $0x70] sm:$0xff]
        %v4070 = vld [vmem:[%s19 + $0x78] sm:$0xff]
        %v4071 = vld [vmem:[%s20] sm:$0x3]
        %v4073 = vlaneseq
        %v4074 = vshrl.u32 %v4073, 7
        %v4075 = vsub.s32 0, %v4074
        %v4076 = vrot.slane %v4071, %v4075
        %v4077 = vlaneseq
        %v4078 = vshrl.u32 %v4077, 7
        %v4079 = vsub.s32 1, %v4078
        %v4080 = vrot.slane %v4071, %v4079
        %v4099 = vunpack.c.l.b16 %v4055
        %v4100 = vunpack.c.h.b16 %v4055
        %v4101 = vunpack.c.l.b16 %v4056
        %v4102 = vunpack.c.h.b16 %v4056
        %v4103 = vunpack.c.l.b16 %v4057
        %v4104 = vunpack.c.h.b16 %v4057
        %v4105 = vunpack.c.l.b16 %v4058
        %v4106 = vunpack.c.h.b16 %v4058
        %v4107 = vunpack.c.l.b16 %v4059
        %v4108 = vunpack.c.h.b16 %v4059
        %v4109 = vunpack.c.l.b16 %v4060
        %v4110 = vunpack.c.h.b16 %v4060
        %v4111 = vunpack.c.l.b16 %v4061
        %v4112 = vunpack.c.h.b16 %v4061
        %v4113 = vunpack.c.l.b16 %v4062
        %v4114 = vunpack.c.h.b16 %v4062
        %v4115 = vunpack.c.l.b16 %v4063
        %v4116 = vunpack.c.h.b16 %v4063
        %v4117 = vunpack.c.l.b16 %v4064
        %v4118 = vunpack.c.h.b16 %v4064
        %v4119 = vunpack.c.l.b16 %v4065
        %v4120 = vunpack.c.h.b16 %v4065
        %v4121 = vunpack.c.l.b16 %v4066
        %v4122 = vunpack.c.h.b16 %v4066
        %v4123 = vunpack.c.l.b16 %v4067
        %v4124 = vunpack.c.h.b16 %v4067
        %v4125 = vunpack.c.l.b16 %v4068
        %v4126 = vunpack.c.h.b16 %v4068
        %v4127 = vunpack.c.l.b16 %v4069
        %v4128 = vunpack.c.h.b16 %v4069
        %v4129 = vunpack.c.l.b16 %v4070
        %v4130 = vunpack.c.h.b16 %v4070
        %v4131 = vpack.c.b16 %v4101, %v4099
        %v4132 = vpack.c.b16 %v4102, %v4100
        %v4133 = vpack.c.b16 %v4105, %v4103
        %v4134 = vpack.c.b16 %v4106, %v4104
        %v4135 = vpack.c.b16 %v4109, %v4107
        %v4136 = vpack.c.b16 %v4110, %v4108
        %v4137 = vpack.c.b16 %v4113, %v4111
        %v4138 = vpack.c.b16 %v4114, %v4112
        %v4139 = vpack.c.b16 %v4117, %v4115
        %v4140 = vpack.c.b16 %v4118, %v4116
        %v4141 = vpack.c.b16 %v4121, %v4119
        %v4142 = vpack.c.b16 %v4122, %v4120
        %v4143 = vpack.c.b16 %v4125, %v4123
        %v4144 = vpack.c.b16 %v4126, %v4124
        %v4145 = vpack.c.b16 %v4129, %v4127
        %v4146 = vpack.c.b16 %v4130, %v4128
        %4163 = vmatprep.subr.bf16.mxu0 %v4132
        %4164 = vmatpush1.bf16.msra.mxu0 %v4131
        %4165 = vmatprep.subr.bf16.mxu0 %v4134
        %4166 = vmatpush1.bf16.msra.mxu0 %v4133
        %4167 = vmatprep.subr.bf16.mxu0 %v4136
        %4168 = vmatpush1.bf16.msra.mxu0 %v4135
        %4169 = vmatprep.subr.bf16.mxu0 %v4138
        %4170 = vmatpush1.bf16.msra.mxu0 %v4137
        %4171 = vmatprep.subr.bf16.mxu0 %v4140
        %4172 = vmatpush1.bf16.msra.mxu0 %v4139
        %4173 = vmatprep.subr.bf16.mxu0 %v4142
        %4174 = vmatpush1.bf16.msra.mxu0 %v4141
        %4175 = vmatprep.subr.bf16.mxu0 %v4144
        %4176 = vmatpush1.bf16.msra.mxu0 %v4143
        %4177 = vmatprep.subr.bf16.mxu0 %v4146
        %4178 = vmatpush1.bf16.msra.mxu0 %v4145
        %4179 = vmatprep.subr.bf16.mxu0 0
        %4180 = vmatpush1.bf16.msra.mxu0 0
        %4181 = vmatprep.subr.bf16.mxu0 0
        %4182 = vmatpush1.bf16.msra.mxu0 0
        %4183 = vmatprep.subr.bf16.mxu0 0
        %4184 = vmatpush1.bf16.msra.mxu0 0
        %4185 = vmatprep.subr.bf16.mxu0 0
        %4186 = vmatpush1.bf16.msra.mxu0 0
        %4187 = vmatprep.subr.bf16.mxu0 0
        %4188 = vmatpush1.bf16.msra.mxu0 0
        %4189 = vmatprep.subr.bf16.mxu0 0
        %4190 = vmatpush1.bf16.msra.mxu0 0
        %4191 = vmatprep.subr.bf16.mxu0 0
        %4192 = vmatpush1.bf16.msra.mxu0 0
        %4193 = vmatprep.subr.bf16.mxu0 0
        %4194 = vmatpush1.bf16.msra.mxu0 0
        %4195 = vmatprep.mubr.bf16.mxu0 0
        %4196 = vmatmul.mubr.bf16.gmra.mrb[0].mxu0 %v4054
        %v4197 = vpop.f32.mrb[0].mxu0
        %v4198 = vadd.f32 %v4076, %v4197
        %v4199 = vpop.f32.mrb[0].mxu0
        %v4200 = vadd.f32 %v4080, %v4199
        %v4201 = vpop.f32.mrb[0].mxu0
        %v4202 = vadd.f32 %v4076, %v4201
        %v4203 = vpop.f32.mrb[0].mxu0
        %v4204 = vadd.f32 %v4080, %v4203
        %4205 = vdwg.mxu0
        %v4206 = vpack.c.bf16 %v4202, %v4198
        %v4207 = vpack.c.bf16 %v4204, %v4200
        %v4208 = vld [vmem:[%s21] sm:$0xff]
        %v4209 = vld [vmem:[%s21 + $0x8] sm:$0xff]
        %v4210 = vld [vmem:[%s21 + $0x10] sm:$0xff]
        %v4211 = vld [vmem:[%s21 + $0x18] sm:$0xff]
        %v4212 = vld [vmem:[%s21 + $0x20] sm:$0xff]
        %v4213 = vld [vmem:[%s21 + $0x28] sm:$0xff]
        %v4214 = vld [vmem:[%s21 + $0x30] sm:$0xff]
        %v4215 = vld [vmem:[%s21 + $0x38] sm:$0xff]
        %v4216 = vld [vmem:[%s21 + $0x40] sm:$0xff]
        %v4217 = vld [vmem:[%s21 + $0x48] sm:$0xff]
        %v4218 = vld [vmem:[%s21 + $0x50] sm:$0xff]
        %v4219 = vld [vmem:[%s21 + $0x58] sm:$0xff]
        %v4220 = vld [vmem:[%s21 + $0x60] sm:$0xff]
        %v4221 = vld [vmem:[%s21 + $0x68] sm:$0xff]
        %v4222 = vld [vmem:[%s21 + $0x70] sm:$0xff]
        %v4223 = vld [vmem:[%s21 + $0x78] sm:$0xff]
        %v4224 = vld [vmem:[%s21 + $0x80] sm:$0xff]
        %v4225 = vld [vmem:[%s21 + $0x88] sm:$0xff]
        %v4226 = vld [vmem:[%s21 + $0x90] sm:$0xff]
        %v4227 = vld [vmem:[%s21 + $0x98] sm:$0xff]
        %v4228 = vld [vmem:[%s21 + $0xa0] sm:$0xff]
        %v4229 = vld [vmem:[%s21 + $0xa8] sm:$0xff]
        %v4230 = vld [vmem:[%s21 + $0xb0] sm:$0xff]
        %v4231 = vld [vmem:[%s21 + $0xb8] sm:$0xff]
        %v4232 = vld [vmem:[%s21 + $0xc0] sm:$0xff]
        %v4233 = vld [vmem:[%s21 + $0xc8] sm:$0xff]
        %v4234 = vld [vmem:[%s21 + $0xd0] sm:$0xff]
        %v4235 = vld [vmem:[%s21 + $0xd8] sm:$0xff]
        %v4236 = vld [vmem:[%s21 + $0xe0] sm:$0xff]
        %v4237 = vld [vmem:[%s21 + $0xe8] sm:$0xff]
        %v4238 = vld [vmem:[%s21 + $0xf0] sm:$0xff]
        %v4239 = vld [vmem:[%s21 + $0xf8] sm:$0xff]
        %v4240 = vld [vmem:[%s21 + $0x100] sm:$0xff]
        %v4241 = vld [vmem:[%s21 + $0x108] sm:$0xff]
        %v4242 = vld [vmem:[%s21 + $0x110] sm:$0xff]
        %v4243 = vld [vmem:[%s21 + $0x118] sm:$0xff]
        %v4244 = vld [vmem:[%s21 + $0x120] sm:$0xff]
        %v4245 = vld [vmem:[%s21 + $0x128] sm:$0xff]
        %v4246 = vld [vmem:[%s21 + $0x130] sm:$0xff]
        %v4247 = vld [vmem:[%s21 + $0x138] sm:$0xff]
        %v4248 = vld [vmem:[%s21 + $0x140] sm:$0xff]
        %v4249 = vld [vmem:[%s21 + $0x148] sm:$0xff]
        %v4250 = vld [vmem:[%s21 + $0x150] sm:$0xff]
        %v4251 = vld [vmem:[%s21 + $0x158] sm:$0xff]
        %v4252 = vld [vmem:[%s21 + $0x160] sm:$0xff]
        %v4253 = vld [vmem:[%s21 + $0x168] sm:$0xff]
        %v4254 = vld [vmem:[%s21 + $0x170] sm:$0xff]
        %v4255 = vld [vmem:[%s21 + $0x178] sm:$0xff]
        %v4256 = vld [vmem:[%s21 + $0x180] sm:$0xff]
        %v4257 = vld [vmem:[%s21 + $0x188] sm:$0xff]
        %v4258 = vld [vmem:[%s21 + $0x190] sm:$0xff]
        %v4259 = vld [vmem:[%s21 + $0x198] sm:$0xff]
        %v4260 = vld [vmem:[%s21 + $0x1a0] sm:$0xff]
        %v4261 = vld [vmem:[%s21 + $0x1a8] sm:$0xff]
        %v4262 = vld [vmem:[%s21 + $0x1b0] sm:$0xff]
        %v4263 = vld [vmem:[%s21 + $0x1b8] sm:$0xff]
        %v4264 = vld [vmem:[%s21 + $0x1c0] sm:$0xff]
        %v4265 = vld [vmem:[%s21 + $0x1c8] sm:$0xff]
        %v4266 = vld [vmem:[%s21 + $0x1d0] sm:$0xff]
        %v4267 = vld [vmem:[%s21 + $0x1d8] sm:$0xff]
        %v4268 = vld [vmem:[%s21 + $0x1e0] sm:$0xff]
        %v4269 = vld [vmem:[%s21 + $0x1e8] sm:$0xff]
        %v4270 = vld [vmem:[%s21 + $0x1f0] sm:$0xff]
        %v4271 = vld [vmem:[%s21 + $0x1f8] sm:$0xff]
        %v4272 = vld [vmem:[%s21 + $0x200] sm:$0xff]
        %v4273 = vld [vmem:[%s21 + $0x208] sm:$0xff]
        %v4274 = vld [vmem:[%s21 + $0x210] sm:$0xff]
        %v4275 = vld [vmem:[%s21 + $0x218] sm:$0xff]
        %v4276 = vld [vmem:[%s21 + $0x220] sm:$0xff]
        %v4277 = vld [vmem:[%s21 + $0x228] sm:$0xff]
        %v4278 = vld [vmem:[%s21 + $0x230] sm:$0xff]
        %v4279 = vld [vmem:[%s21 + $0x238] sm:$0xff]
        %v4280 = vld [vmem:[%s21 + $0x240] sm:$0xff]
        %v4281 = vld [vmem:[%s21 + $0x248] sm:$0xff]
        %v4282 = vld [vmem:[%s21 + $0x250] sm:$0xff]
        %v4283 = vld [vmem:[%s21 + $0x258] sm:$0xff]
        %v4284 = vld [vmem:[%s21 + $0x260] sm:$0xff]
        %v4285 = vld [vmem:[%s21 + $0x268] sm:$0xff]
        %v4286 = vld [vmem:[%s21 + $0x270] sm:$0xff]
        %v4287 = vld [vmem:[%s21 + $0x278] sm:$0xff]
        %v4288 = vld [vmem:[%s21 + $0x280] sm:$0xff]
        %v4289 = vld [vmem:[%s21 + $0x288] sm:$0xff]
        %v4290 = vld [vmem:[%s21 + $0x290] sm:$0xff]
        %v4291 = vld [vmem:[%s21 + $0x298] sm:$0xff]
        %v4292 = vld [vmem:[%s21 + $0x2a0] sm:$0xff]
        %v4293 = vld [vmem:[%s21 + $0x2a8] sm:$0xff]
        %v4294 = vld [vmem:[%s21 + $0x2b0] sm:$0xff]
        %v4295 = vld [vmem:[%s21 + $0x2b8] sm:$0xff]
        %v4296 = vld [vmem:[%s21 + $0x2c0] sm:$0xff]
        %v4297 = vld [vmem:[%s21 + $0x2c8] sm:$0xff]
        %v4298 = vld [vmem:[%s21 + $0x2d0] sm:$0xff]
        %v4299 = vld [vmem:[%s21 + $0x2d8] sm:$0xff]
        %v4300 = vld [vmem:[%s21 + $0x2e0] sm:$0xff]
        %v4301 = vld [vmem:[%s21 + $0x2e8] sm:$0xff]
        %v4302 = vld [vmem:[%s21 + $0x2f0] sm:$0xff]
        %v4303 = vld [vmem:[%s21 + $0x2f8] sm:$0xff]
        %v4304 = vld [vmem:[%s22] sm:$0xff]
        %v4306 = vlaneseq
        %v4307 = vshrl.u32 %v4306, 7
        %v4308 = vsub.s32 0, %v4307
        %v4309 = vrot.slane %v4304, %v4308
        %v4310 = vlaneseq
        %v4311 = vshrl.u32 %v4310, 7
        %v4312 = vsub.s32 1, %v4311
        %v4313 = vrot.slane %v4304, %v4312
        %v4314 = vlaneseq
        %v4315 = vshrl.u32 %v4314, 7
        %v4316 = vsub.s32 2, %v4315
        %v4317 = vrot.slane %v4304, %v4316
        %v4318 = vlaneseq
        %v4319 = vshrl.u32 %v4318, 7
        %v4320 = vsub.s32 3, %v4319
        %v4321 = vrot.slane %v4304, %v4320
        %v4322 = vlaneseq
        %v4323 = vshrl.u32 %v4322, 7
        %v4324 = vsub.s32 4, %v4323
        %v4325 = vrot.slane %v4304, %v4324
        %v4326 = vlaneseq
        %v4327 = vshrl.u32 %v4326, 7
        %v4328 = vsub.s32 5, %v4327
        %v4329 = vrot.slane %v4304, %v4328
        %v4330 = vlaneseq
        %v4331 = vshrl.u32 %v4330, 7
        %v4332 = vsub.s32 6, %v4331
        %v4333 = vrot.slane %v4304, %v4332
        %v4334 = vlaneseq
        %v4335 = vshrl.u32 %v4334, 7
        %v4336 = vsub.s32 7, %v4335
        %v4337 = vrot.slane %v4304, %v4336
        %v4442 = vunpack.c.l.b16 %v4208
        %v4443 = vunpack.c.h.b16 %v4208
        %v4444 = vunpack.c.l.b16 %v4209
        %v4445 = vunpack.c.h.b16 %v4209
        %v4446 = vunpack.c.l.b16 %v4210
        %v4447 = vunpack.c.h.b16 %v4210
        %v4448 = vunpack.c.l.b16 %v4211
        %v4449 = vunpack.c.h.b16 %v4211
        %v4450 = vunpack.c.l.b16 %v4212
        %v4451 = vunpack.c.h.b16 %v4212
        %v4452 = vunpack.c.l.b16 %v4213
        %v4453 = vunpack.c.h.b16 %v4213
        %v4454 = vunpack.c.l.b16 %v4214
        %v4455 = vunpack.c.h.b16 %v4214
        %v4456 = vunpack.c.l.b16 %v4215
        %v4457 = vunpack.c.h.b16 %v4215
        %v4458 = vunpack.c.l.b16 %v4216
        %v4459 = vunpack.c.h.b16 %v4216
        %v4460 = vunpack.c.l.b16 %v4217
        %v4461 = vunpack.c.h.b16 %v4217
        %v4462 = vunpack.c.l.b16 %v4218
        %v4463 = vunpack.c.h.b16 %v4218
        %v4464 = vunpack.c.l.b16 %v4219
        %v4465 = vunpack.c.h.b16 %v4219
        %v4466 = vunpack.c.l.b16 %v4220
        %v4467 = vunpack.c.h.b16 %v4220
        %v4468 = vunpack.c.l.b16 %v4221
        %v4469 = vunpack.c.h.b16 %v4221
        %v4470 = vunpack.c.l.b16 %v4222
        %v4471 = vunpack.c.h.b16 %v4222
        %v4472 = vunpack.c.l.b16 %v4223
        %v4473 = vunpack.c.h.b16 %v4223
        %v4474 = vunpack.c.l.b16 %v4224
        %v4475 = vunpack.c.h.b16 %v4224
        %v4476 = vunpack.c.l.b16 %v4225
        %v4477 = vunpack.c.h.b16 %v4225
        %v4478 = vunpack.c.l.b16 %v4226
        %v4479 = vunpack.c.h.b16 %v4226
        %v4480 = vunpack.c.l.b16 %v4227
        %v4481 = vunpack.c.h.b16 %v4227
        %v4482 = vunpack.c.l.b16 %v4228
        %v4483 = vunpack.c.h.b16 %v4228
        %v4484 = vunpack.c.l.b16 %v4229
        %v4485 = vunpack.c.h.b16 %v4229
        %v4486 = vunpack.c.l.b16 %v4230
        %v4487 = vunpack.c.h.b16 %v4230
        %v4488 = vunpack.c.l.b16 %v4231
        %v4489 = vunpack.c.h.b16 %v4231
        %v4490 = vunpack.c.l.b16 %v4232
        %v4491 = vunpack.c.h.b16 %v4232
        %v4492 = vunpack.c.l.b16 %v4233
        %v4493 = vunpack.c.h.b16 %v4233
        %v4494 = vunpack.c.l.b16 %v4234
        %v4495 = vunpack.c.h.b16 %v4234
        %v4496 = vunpack.c.l.b16 %v4235
        %v4497 = vunpack.c.h.b16 %v4235
        %v4498 = vunpack.c.l.b16 %v4236
        %v4499 = vunpack.c.h.b16 %v4236
        %v4500 = vunpack.c.l.b16 %v4237
        %v4501 = vunpack.c.h.b16 %v4237
        %v4502 = vunpack.c.l.b16 %v4238
        %v4503 = vunpack.c.h.b16 %v4238
        %v4504 = vunpack.c.l.b16 %v4239
        %v4505 = vunpack.c.h.b16 %v4239
        %v4506 = vunpack.c.l.b16 %v4240
        %v4507 = vunpack.c.h.b16 %v4240
        %v4508 = vunpack.c.l.b16 %v4241
        %v4509 = vunpack.c.h.b16 %v4241
        %v4510 = vunpack.c.l.b16 %v4242
        %v4511 = vunpack.c.h.b16 %v4242
        %v4512 = vunpack.c.l.b16 %v4243
        %v4513 = vunpack.c.h.b16 %v4243
        %v4514 = vunpack.c.l.b16 %v4244
        %v4515 = vunpack.c.h.b16 %v4244
        %v4516 = vunpack.c.l.b16 %v4245
        %v4517 = vunpack.c.h.b16 %v4245
        %v4518 = vunpack.c.l.b16 %v4246
        %v4519 = vunpack.c.h.b16 %v4246
        %v4520 = vunpack.c.l.b16 %v4247
        %v4521 = vunpack.c.h.b16 %v4247
        %v4522 = vunpack.c.l.b16 %v4248
        %v4523 = vunpack.c.h.b16 %v4248
        %v4524 = vunpack.c.l.b16 %v4249
        %v4525 = vunpack.c.h.b16 %v4249
        %v4526 = vunpack.c.l.b16 %v4250
        %v4527 = vunpack.c.h.b16 %v4250
        %v4528 = vunpack.c.l.b16 %v4251
        %v4529 = vunpack.c.h.b16 %v4251
        %v4530 = vunpack.c.l.b16 %v4252
        %v4531 = vunpack.c.h.b16 %v4252
        %v4532 = vunpack.c.l.b16 %v4253
        %v4533 = vunpack.c.h.b16 %v4253
        %v4534 = vunpack.c.l.b16 %v4254
        %v4535 = vunpack.c.h.b16 %v4254
        %v4536 = vunpack.c.l.b16 %v4255
        %v4537 = vunpack.c.h.b16 %v4255
        %v4538 = vunpack.c.l.b16 %v4256
        %v4539 = vunpack.c.h.b16 %v4256
        %v4540 = vunpack.c.l.b16 %v4257
        %v4541 = vunpack.c.h.b16 %v4257
        %v4542 = vunpack.c.l.b16 %v4258
        %v4543 = vunpack.c.h.b16 %v4258
        %v4544 = vunpack.c.l.b16 %v4259
        %v4545 = vunpack.c.h.b16 %v4259
        %v4546 = vunpack.c.l.b16 %v4260
        %v4547 = vunpack.c.h.b16 %v4260
        %v4548 = vunpack.c.l.b16 %v4261
        %v4549 = vunpack.c.h.b16 %v4261
        %v4550 = vunpack.c.l.b16 %v4262
        %v4551 = vunpack.c.h.b16 %v4262
        %v4552 = vunpack.c.l.b16 %v4263
        %v4553 = vunpack.c.h.b16 %v4263
        %v4554 = vunpack.c.l.b16 %v4264
        %v4555 = vunpack.c.h.b16 %v4264
        %v4556 = vunpack.c.l.b16 %v4265
        %v4557 = vunpack.c.h.b16 %v4265
        %v4558 = vunpack.c.l.b16 %v4266
        %v4559 = vunpack.c.h.b16 %v4266
        %v4560 = vunpack.c.l.b16 %v4267
        %v4561 = vunpack.c.h.b16 %v4267
        %v4562 = vunpack.c.l.b16 %v4268
        %v4563 = vunpack.c.h.b16 %v4268
        %v4564 = vunpack.c.l.b16 %v4269
        %v4565 = vunpack.c.h.b16 %v4269
        %v4566 = vunpack.c.l.b16 %v4270
        %v4567 = vunpack.c.h.b16 %v4270
        %v4568 = vunpack.c.l.b16 %v4271
        %v4569 = vunpack.c.h.b16 %v4271
        %v4570 = vunpack.c.l.b16 %v4272
        %v4571 = vunpack.c.h.b16 %v4272
        %v4572 = vunpack.c.l.b16 %v4273
        %v4573 = vunpack.c.h.b16 %v4273
        %v4574 = vunpack.c.l.b16 %v4274
        %v4575 = vunpack.c.h.b16 %v4274
        %v4576 = vunpack.c.l.b16 %v4275
        %v4577 = vunpack.c.h.b16 %v4275
        %v4578 = vunpack.c.l.b16 %v4276
        %v4579 = vunpack.c.h.b16 %v4276
        %v4580 = vunpack.c.l.b16 %v4277
        %v4581 = vunpack.c.h.b16 %v4277
        %v4582 = vunpack.c.l.b16 %v4278
        %v4583 = vunpack.c.h.b16 %v4278
        %v4584 = vunpack.c.l.b16 %v4279
        %v4585 = vunpack.c.h.b16 %v4279
        %v4586 = vunpack.c.l.b16 %v4280
        %v4587 = vunpack.c.h.b16 %v4280
        %v4588 = vunpack.c.l.b16 %v4281
        %v4589 = vunpack.c.h.b16 %v4281
        %v4590 = vunpack.c.l.b16 %v4282
        %v4591 = vunpack.c.h.b16 %v4282
        %v4592 = vunpack.c.l.b16 %v4283
        %v4593 = vunpack.c.h.b16 %v4283
        %v4594 = vunpack.c.l.b16 %v4284
        %v4595 = vunpack.c.h.b16 %v4284
        %v4596 = vunpack.c.l.b16 %v4285
        %v4597 = vunpack.c.h.b16 %v4285
        %v4598 = vunpack.c.l.b16 %v4286
        %v4599 = vunpack.c.h.b16 %v4286
        %v4600 = vunpack.c.l.b16 %v4287
        %v4601 = vunpack.c.h.b16 %v4287
        %v4602 = vunpack.c.l.b16 %v4288
        %v4603 = vunpack.c.h.b16 %v4288
        %v4604 = vunpack.c.l.b16 %v4289
        %v4605 = vunpack.c.h.b16 %v4289
        %v4606 = vunpack.c.l.b16 %v4290
        %v4607 = vunpack.c.h.b16 %v4290
        %v4608 = vunpack.c.l.b16 %v4291
        %v4609 = vunpack.c.h.b16 %v4291
        %v4610 = vunpack.c.l.b16 %v4292
        %v4611 = vunpack.c.h.b16 %v4292
        %v4612 = vunpack.c.l.b16 %v4293
        %v4613 = vunpack.c.h.b16 %v4293
        %v4614 = vunpack.c.l.b16 %v4294
        %v4615 = vunpack.c.h.b16 %v4294
        %v4616 = vunpack.c.l.b16 %v4295
        %v4617 = vunpack.c.h.b16 %v4295
        %v4618 = vunpack.c.l.b16 %v4296
        %v4619 = vunpack.c.h.b16 %v4296
        %v4620 = vunpack.c.l.b16 %v4297
        %v4621 = vunpack.c.h.b16 %v4297
        %v4622 = vunpack.c.l.b16 %v4298
        %v4623 = vunpack.c.h.b16 %v4298
        %v4624 = vunpack.c.l.b16 %v4299
        %v4625 = vunpack.c.h.b16 %v4299
        %v4626 = vunpack.c.l.b16 %v4300
        %v4627 = vunpack.c.h.b16 %v4300
        %v4628 = vunpack.c.l.b16 %v4301
        %v4629 = vunpack.c.h.b16 %v4301
        %v4630 = vunpack.c.l.b16 %v4302
        %v4631 = vunpack.c.h.b16 %v4302
        %v4632 = vunpack.c.l.b16 %v4303
        %v4633 = vunpack.c.h.b16 %v4303
        %v4634 = vpack.c.b16 %v4450, %v4442
        %v4635 = vpack.c.b16 %v4451, %v4443
        %v4636 = vpack.c.b16 %v4452, %v4444
        %v4637 = vpack.c.b16 %v4453, %v4445
        %v4638 = vpack.c.b16 %v4454, %v4446
        %v4639 = vpack.c.b16 %v4455, %v4447
        %v4640 = vpack.c.b16 %v4456, %v4448
        %v4641 = vpack.c.b16 %v4457, %v4449
        %v4642 = vpack.c.b16 %v4466, %v4458
        %v4643 = vpack.c.b16 %v4467, %v4459
        %v4644 = vpack.c.b16 %v4468, %v4460
        %v4645 = vpack.c.b16 %v4469, %v4461
        %v4646 = vpack.c.b16 %v4470, %v4462
        %v4647 = vpack.c.b16 %v4471, %v4463
        %v4648 = vpack.c.b16 %v4472, %v4464
        %v4649 = vpack.c.b16 %v4473, %v4465
        %v4650 = vpack.c.b16 %v4482, %v4474
        %v4651 = vpack.c.b16 %v4483, %v4475
        %v4652 = vpack.c.b16 %v4484, %v4476
        %v4653 = vpack.c.b16 %v4485, %v4477
        %v4654 = vpack.c.b16 %v4486, %v4478
        %v4655 = vpack.c.b16 %v4487, %v4479
        %v4656 = vpack.c.b16 %v4488, %v4480
        %v4657 = vpack.c.b16 %v4489, %v4481
        %v4658 = vpack.c.b16 %v4498, %v4490
        %v4659 = vpack.c.b16 %v4499, %v4491
        %v4660 = vpack.c.b16 %v4500, %v4492
        %v4661 = vpack.c.b16 %v4501, %v4493
        %v4662 = vpack.c.b16 %v4502, %v4494
        %v4663 = vpack.c.b16 %v4503, %v4495
        %v4664 = vpack.c.b16 %v4504, %v4496
        %v4665 = vpack.c.b16 %v4505, %v4497
        %v4666 = vpack.c.b16 %v4514, %v4506
        %v4667 = vpack.c.b16 %v4515, %v4507
        %v4668 = vpack.c.b16 %v4516, %v4508
        %v4669 = vpack.c.b16 %v4517, %v4509
        %v4670 = vpack.c.b16 %v4518, %v4510
        %v4671 = vpack.c.b16 %v4519, %v4511
        %v4672 = vpack.c.b16 %v4520, %v4512
        %v4673 = vpack.c.b16 %v4521, %v4513
        %v4674 = vpack.c.b16 %v4530, %v4522
        %v4675 = vpack.c.b16 %v4531, %v4523
        %v4676 = vpack.c.b16 %v4532, %v4524
        %v4677 = vpack.c.b16 %v4533, %v4525
        %v4678 = vpack.c.b16 %v4534, %v4526
        %v4679 = vpack.c.b16 %v4535, %v4527
        %v4680 = vpack.c.b16 %v4536, %v4528
        %v4681 = vpack.c.b16 %v4537, %v4529
        %v4682 = vpack.c.b16 %v4546, %v4538
        %v4683 = vpack.c.b16 %v4547, %v4539
        %v4684 = vpack.c.b16 %v4548, %v4540
        %v4685 = vpack.c.b16 %v4549, %v4541
        %v4686 = vpack.c.b16 %v4550, %v4542
        %v4687 = vpack.c.b16 %v4551, %v4543
        %v4688 = vpack.c.b16 %v4552, %v4544
        %v4689 = vpack.c.b16 %v4553, %v4545
        %v4690 = vpack.c.b16 %v4562, %v4554
        %v4691 = vpack.c.b16 %v4563, %v4555
        %v4692 = vpack.c.b16 %v4564, %v4556
        %v4693 = vpack.c.b16 %v4565, %v4557
        %v4694 = vpack.c.b16 %v4566, %v4558
        %v4695 = vpack.c.b16 %v4567, %v4559
        %v4696 = vpack.c.b16 %v4568, %v4560
        %v4697 = vpack.c.b16 %v4569, %v4561
        %v4698 = vpack.c.b16 %v4578, %v4570
        %v4699 = vpack.c.b16 %v4579, %v4571
        %v4700 = vpack.c.b16 %v4580, %v4572
        %v4701 = vpack.c.b16 %v4581, %v4573
        %v4702 = vpack.c.b16 %v4582, %v4574
        %v4703 = vpack.c.b16 %v4583, %v4575
        %v4704 = vpack.c.b16 %v4584, %v4576
        %v4705 = vpack.c.b16 %v4585, %v4577
        %v4706 = vpack.c.b16 %v4594, %v4586
        %v4707 = vpack.c.b16 %v4595, %v4587
        %v4708 = vpack.c.b16 %v4596, %v4588
        %v4709 = vpack.c.b16 %v4597, %v4589
        %v4710 = vpack.c.b16 %v4598, %v4590
        %v4711 = vpack.c.b16 %v4599, %v4591
        %v4712 = vpack.c.b16 %v4600, %v4592
        %v4713 = vpack.c.b16 %v4601, %v4593
        %v4714 = vpack.c.b16 %v4610, %v4602
        %v4715 = vpack.c.b16 %v4611, %v4603
        %v4716 = vpack.c.b16 %v4612, %v4604
        %v4717 = vpack.c.b16 %v4613, %v4605
        %v4718 = vpack.c.b16 %v4614, %v4606
        %v4719 = vpack.c.b16 %v4615, %v4607
        %v4720 = vpack.c.b16 %v4616, %v4608
        %v4721 = vpack.c.b16 %v4617, %v4609
        %v4722 = vpack.c.b16 %v4626, %v4618
        %v4723 = vpack.c.b16 %v4627, %v4619
        %v4724 = vpack.c.b16 %v4628, %v4620
        %v4725 = vpack.c.b16 %v4629, %v4621
        %v4726 = vpack.c.b16 %v4630, %v4622
        %v4727 = vpack.c.b16 %v4631, %v4623
        %v4728 = vpack.c.b16 %v4632, %v4624
        %v4729 = vpack.c.b16 %v4633, %v4625
        %v4827 = vsel %vm3020, %v4207, 0
        %4829 = vmatprep.subr.bf16.mxu0 %v4635
        %4830 = vmatpush1.bf16.msra.mxu0 %v4634
        %4831 = vmatprep.subr.bf16.mxu0 %v4643
        %4832 = vmatpush1.bf16.msra.mxu0 %v4642
        %4833 = vmatprep.subr.bf16.mxu0 %v4651
        %4834 = vmatpush1.bf16.msra.mxu0 %v4650
        %4835 = vmatprep.subr.bf16.mxu0 %v4659
        %4836 = vmatpush1.bf16.msra.mxu0 %v4658
        %4837 = vmatprep.subr.bf16.mxu0 %v4667
        %4838 = vmatpush1.bf16.msra.mxu0 %v4666
        %4839 = vmatprep.subr.bf16.mxu0 %v4675
        %4840 = vmatpush1.bf16.msra.mxu0 %v4674
        %4841 = vmatprep.subr.bf16.mxu0 %v4683
        %4842 = vmatpush1.bf16.msra.mxu0 %v4682
        %4843 = vmatprep.subr.bf16.mxu0 %v4691
        %4844 = vmatpush1.bf16.msra.mxu0 %v4690
        %4845 = vmatprep.subr.bf16.mxu0 %v4699
        %4846 = vmatpush1.bf16.msra.mxu0 %v4698
        %4847 = vmatprep.subr.bf16.mxu0 %v4707
        %4848 = vmatpush1.bf16.msra.mxu0 %v4706
        %4849 = vmatprep.subr.bf16.mxu0 %v4715
        %4850 = vmatpush1.bf16.msra.mxu0 %v4714
        %4851 = vmatprep.subr.bf16.mxu0 %v4723
        %4852 = vmatpush1.bf16.msra.mxu0 %v4722
        %4853 = vmatprep.subr.bf16.mxu0 0
        %4854 = vmatpush1.bf16.msra.mxu0 0
        %4855 = vmatprep.subr.bf16.mxu0 0
        %4856 = vmatpush1.bf16.msra.mxu0 0
        %4857 = vmatprep.subr.bf16.mxu0 0
        %4858 = vmatpush1.bf16.msra.mxu0 0
        %4859 = vmatprep.subr.bf16.mxu0 0
        %4860 = vmatpush1.bf16.msra.mxu0 0
        %4861 = vmatprep.mubr.bf16.mxu0 %v4827
        %4862 = vmatmul.mubr.bf16.gmra.mrb[0].mxu0 %v4206
        %v4863 = vpop.f32.mrb[0].mxu0
        %v4864 = vadd.f32 %v4309, %v4863
        %v4865 = vpop.f32.mrb[0].mxu0
        %v4866 = vadd.f32 %v4313, %v4865
        %v4867 = vpop.f32.mrb[0].mxu0
        %v4868 = vadd.f32 %v4309, %v4867
        %v4869 = vpop.f32.mrb[0].mxu0
        %v4870 = vadd.f32 %v4313, %v4869
        %4871 = vdwg.mxu0
        %4872 = vmatprep.subr.bf16.mxu0 %v4637
        %4873 = vmatpush1.bf16.msra.mxu0 %v4636
        %4874 = vmatprep.subr.bf16.mxu0 %v4645
        %4875 = vmatpush1.bf16.msra.mxu0 %v4644
        %4876 = vmatprep.subr.bf16.mxu0 %v4653
        %4877 = vmatpush1.bf16.msra.mxu0 %v4652
        %4878 = vmatprep.subr.bf16.mxu0 %v4661
        %4879 = vmatpush1.bf16.msra.mxu0 %v4660
        %4880 = vmatprep.subr.bf16.mxu0 %v4669
        %4881 = vmatpush1.bf16.msra.mxu0 %v4668
        %4882 = vmatprep.subr.bf16.mxu0 %v4677
        %4883 = vmatpush1.bf16.msra.mxu0 %v4676
        %4884 = vmatprep.subr.bf16.mxu0 %v4685
        %4885 = vmatpush1.bf16.msra.mxu0 %v4684
        %4886 = vmatprep.subr.bf16.mxu0 %v4693
        %4887 = vmatpush1.bf16.msra.mxu0 %v4692
        %4888 = vmatprep.subr.bf16.mxu0 %v4701
        %4889 = vmatpush1.bf16.msra.mxu0 %v4700
        %4890 = vmatprep.subr.bf16.mxu0 %v4709
        %4891 = vmatpush1.bf16.msra.mxu0 %v4708
        %4892 = vmatprep.subr.bf16.mxu0 %v4717
        %4893 = vmatpush1.bf16.msra.mxu0 %v4716
        %4894 = vmatprep.subr.bf16.mxu0 %v4725
        %4895 = vmatpush1.bf16.msra.mxu0 %v4724
        %4896 = vmatprep.subr.bf16.mxu0 0
        %4897 = vmatpush1.bf16.msra.mxu0 0
        %4898 = vmatprep.subr.bf16.mxu0 0
        %4899 = vmatpush1.bf16.msra.mxu0 0
        %4900 = vmatprep.subr.bf16.mxu0 0
        %4901 = vmatpush1.bf16.msra.mxu0 0
        %4902 = vmatprep.subr.bf16.mxu0 0
        %4903 = vmatpush1.bf16.msra.mxu0 0
        %4904 = vmatprep.mubr.bf16.mxu0 %v4827
        %4905 = vmatmul.mubr.bf16.gmra.mrb[0].mxu0 %v4206
        %v4906 = vpop.f32.mrb[0].mxu0
        %v4907 = vadd.f32 %v4317, %v4906
        %v4908 = vpop.f32.mrb[0].mxu0
        %v4909 = vadd.f32 %v4321, %v4908
        %v4910 = vpop.f32.mrb[0].mxu0
        %v4911 = vadd.f32 %v4317, %v4910
        %v4912 = vpop.f32.mrb[0].mxu0
        %v4913 = vadd.f32 %v4321, %v4912
        %4914 = vdwg.mxu0
        %4915 = vmatprep.subr.bf16.mxu0 %v4639
        %4916 = vmatpush1.bf16.msra.mxu0 %v4638
        %4917 = vmatprep.subr.bf16.mxu0 %v4647
        %4918 = vmatpush1.bf16.msra.mxu0 %v4646
        %4919 = vmatprep.subr.bf16.mxu0 %v4655
        %4920 = vmatpush1.bf16.msra.mxu0 %v4654
        %4921 = vmatprep.subr.bf16.mxu0 %v4663
        %4922 = vmatpush1.bf16.msra.mxu0 %v4662
        %4923 = vmatprep.subr.bf16.mxu0 %v4671
        %4924 = vmatpush1.bf16.msra.mxu0 %v4670
        %4925 = vmatprep.subr.bf16.mxu0 %v4679
        %4926 = vmatpush1.bf16.msra.mxu0 %v4678
        %4927 = vmatprep.subr.bf16.mxu0 %v4687
        %4928 = vmatpush1.bf16.msra.mxu0 %v4686
        %4929 = vmatprep.subr.bf16.mxu0 %v4695
        %4930 = vmatpush1.bf16.msra.mxu0 %v4694
        %4931 = vmatprep.subr.bf16.mxu0 %v4703
        %4932 = vmatpush1.bf16.msra.mxu0 %v4702
        %4933 = vmatprep.subr.bf16.mxu0 %v4711
        %4934 = vmatpush1.bf16.msra.mxu0 %v4710
        %4935 = vmatprep.subr.bf16.mxu0 %v4719
        %4936 = vmatpush1.bf16.msra.mxu0 %v4718
        %4937 = vmatprep.subr.bf16.mxu0 %v4727
        %4938 = vmatpush1.bf16.msra.mxu0 %v4726
        %4939 = vmatprep.subr.bf16.mxu0 0
        %4940 = vmatpush1.bf16.msra.mxu0 0
        %4941 = vmatprep.subr.bf16.mxu0 0
        %4942 = vmatpush1.bf16.msra.mxu0 0
        %4943 = vmatprep.subr.bf16.mxu0 0
        %4944 = vmatpush1.bf16.msra.mxu0 0
        %4945 = vmatprep.subr.bf16.mxu0 0
        %4946 = vmatpush1.bf16.msra.mxu0 0
        %4947 = vmatprep.mubr.bf16.mxu0 %v4827
        %4948 = vmatmul.mubr.bf16.gmra.mrb[0].mxu0 %v4206
        %v4949 = vpop.f32.mrb[0].mxu0
        %v4950 = vadd.f32 %v4325, %v4949
        %v4951 = vpop.f32.mrb[0].mxu0
        %v4952 = vadd.f32 %v4329, %v4951
        %v4953 = vpop.f32.mrb[0].mxu0
        %v4954 = vadd.f32 %v4325, %v4953
        %v4955 = vpop.f32.mrb[0].mxu0
        %v4956 = vadd.f32 %v4329, %v4955
        %4957 = vdwg.mxu0
        %4958 = vmatprep.subr.bf16.mxu0 %v4641
        %4959 = vmatpush1.bf16.msra.mxu0 %v4640
        %4960 = vmatprep.subr.bf16.mxu0 %v4649
        %4961 = vmatpush1.bf16.msra.mxu0 %v4648
        %4962 = vmatprep.subr.bf16.mxu0 %v4657
        %4963 = vmatpush1.bf16.msra.mxu0 %v4656
        %4964 = vmatprep.subr.bf16.mxu0 %v4665
        %4965 = vmatpush1.bf16.msra.mxu0 %v4664
        %4966 = vmatprep.subr.bf16.mxu0 %v4673
        %4967 = vmatpush1.bf16.msra.mxu0 %v4672
        %4968 = vmatprep.subr.bf16.mxu0 %v4681
        %4969 = vmatpush1.bf16.msra.mxu0 %v4680
        %4970 = vmatprep.subr.bf16.mxu0 %v4689
        %4971 = vmatpush1.bf16.msra.mxu0 %v4688
        %4972 = vmatprep.subr.bf16.mxu0 %v4697
        %4973 = vmatpush1.bf16.msra.mxu0 %v4696
        %4974 = vmatprep.subr.bf16.mxu0 %v4705
        %4975 = vmatpush1.bf16.msra.mxu0 %v4704
        %4976 = vmatprep.subr.bf16.mxu0 %v4713
        %4977 = vmatpush1.bf16.msra.mxu0 %v4712
        %4978 = vmatprep.subr.bf16.mxu0 %v4721
        %4979 = vmatpush1.bf16.msra.mxu0 %v4720
        %4980 = vmatprep.subr.bf16.mxu0 %v4729
        %4981 = vmatpush1.bf16.msra.mxu0 %v4728
        %4982 = vmatprep.subr.bf16.mxu0 0
        %4983 = vmatpush1.bf16.msra.mxu0 0
        %4984 = vmatprep.subr.bf16.mxu0 0
        %4985 = vmatpush1.bf16.msra.mxu0 0
        %4986 = vmatprep.subr.bf16.mxu0 0
        %4987 = vmatpush1.bf16.msra.mxu0 0
        %4988 = vmatprep.subr.bf16.mxu0 0
        %4989 = vmatpush1.bf16.msra.mxu0 0
        %4990 = vmatprep.mubr.bf16.mxu0 %v4827
        %4991 = vmatmul.mubr.bf16.gmra.mrb[0].mxu0 %v4206
        %v4992 = vpop.f32.mrb[0].mxu0
        %v4993 = vadd.f32 %v4333, %v4992
        %v4994 = vpop.f32.mrb[0].mxu0
        %v4995 = vadd.f32 %v4337, %v4994
        %v4996 = vpop.f32.mrb[0].mxu0
        %v4997 = vadd.f32 %v4333, %v4996
        %v4998 = vpop.f32.mrb[0].mxu0
        %v4999 = vadd.f32 %v4337, %v4998
        %5000 = vdwg.mxu0
        %5001 = vst [vmem:[%s920] sm:$0xff] %v4864
        %5002 = vst [vmem:[%s920 + $0x8] sm:$0xff] %v4866
        %5003 = vst [vmem:[%s920 + $0x10] sm:$0xff] %v4907
        %5004 = vst [vmem:[%s920 + $0x18] sm:$0xff] %v4909
        %5005 = vst [vmem:[%s920 + $0x20] sm:$0xff] %v4950
        %5006 = vst [vmem:[%s920 + $0x28] sm:$0xff] %v4952
        %5007 = vst [vmem:[%s920 + $0x30] sm:$0xff] %v4993
        %5008 = vst [vmem:[%s920 + $0x38] sm:$0xff] %v4995
        %5009 = vst [vmem:[%s920 + $0x40] sm:$0xff] %v4868
        %5010 = vst [vmem:[%s920 + $0x48] sm:$0xff] %v4870
        %5011 = vst [vmem:[%s920 + $0x50] sm:$0xff] %v4911
        %5012 = vst [vmem:[%s920 + $0x58] sm:$0xff] %v4913
        %5013 = vst [vmem:[%s920 + $0x60] sm:$0xff] %v4954
        %5014 = vst [vmem:[%s920 + $0x68] sm:$0xff] %v4956
        %5015 = vst [vmem:[%s920 + $0x70] sm:$0xff] %v4997
        %5016 = vst [vmem:[%s920 + $0x78] sm:$0xff] %v4999
      $region120: #{mae_forward.1} parent=111 // pred_fallthru
        _
      %p5017 = scmp.lt.s32.totalorder %s38, 1
      %s5018 = scalar_select %p5017, %s38, 1
      %s5019 = smul.addr %s5018, 16
      %s5020 = smul.addr %s5019, 8
      %s5021 = scalar_lea.vmem %s23, %s5020
      // Predicated region
      $region121: #{mae_forward.1} parent=111 // pred_check
        %p5022 = pneg %p612
      $region122: #{mae_forward.1} parent=111 // pred_check_branch
        %5024 = sbr.rel (%p5022) target = $region124
      $region123: #{mae_forward.1} parent=111 // pred_region
        _
      $region124: #{mae_forward.1} parent=111 // pred_fallthru
        _
    $region112: #{mae_forward.1} parent=5 // pred_fallthru
      _
    %p5025 = scmp.le.s32.totalorder 2, %s29
    // Predicated region
    $region125: #{mae_forward.1} parent=5 // pred_check
      %p5026 = pneg %p5025
    $region126: #{mae_forward.1} parent=5 // pred_check_branch
      %5028 = sbr.rel (%p5026) target = $region128
    $region127: #{mae_forward.1} parent=5 // pred_region
      %s5029 = ssub.s32 %s29, 2
      // Predicated region
      $region129: #{mae_forward.1} parent=127 // pred_check
        %p5030 = pneg %p618
      $region130: #{mae_forward.1} parent=127 // pred_check_branch
        %5032 = sbr.rel (%p5030) target = $region132
      $region131: #{mae_forward.1} parent=127 // pred_region
        %p5033 = scmp.lt.s32.totalorder %s40, 1
        %s5034 = scalar_select %p5033, %s40, 1
        %s5035 = smul.addr %s5034, 16
        %s5036 = smul.addr %s5035, 8
        %s5037 = scalar_lea.vmem %s23, %s5036
      $region132: #{mae_forward.1} parent=127 // pred_fallthru
        _
    $region128: #{mae_forward.1} parent=5 // pred_fallthru
      _
  $region6: #{mae_forward.1} parent=0 // loop_footer
    %s33 = sadd.s32 1, %s29
  $region7: #{mae_forward.1} parent=0 // loop_footer_branch
    %28 = sbr.rel target = $region3
  $region8: #{mae_forward.1} parent=0 // loop_exit
    _

</llo_original>
